<compile_context>
chip_gen: v7x
topology: tpu7x:2x2x1
jax: 0.10.0
libtpu: 0.0.40
codegen_flags: <defaults>
</compile_context>

<pallas_src>
import math
import numpy as np
import jax
import jax.numpy as jnp
from jax.experimental import pallas as pl
from jax.experimental.pallas import tpu as pltpu

SIZE = 65          # Gaussian kernel size
SIGMA = 1.0 / 40   # module default
ITERS = 7          # module default
PAD = 32           # reflection pad used by ConfidenceDrivenMaskLayer


# ----------------------------- parameter construction (glue, plain numpy) -----------------------

def _gauss_factors(size, sigma):
    """Reproduces gauss_kernel(size, sigma) deterministically and its separable factor."""
    interval = (2.0 * sigma + 1.0) / size
    x = np.linspace(-sigma - interval / 2.0, sigma + interval / 2.0, size + 1)
    cdf = np.array([0.5 * (1.0 + math.erf(v / math.sqrt(2.0))) for v in x], dtype=np.float64)
    ker1d = np.diff(cdf)
    kernel_raw = np.sqrt(np.outer(ker1d, ker1d))
    norm = kernel_raw.sum()
    kernel2d = (kernel_raw / norm).astype(np.float32)   # exact 65x65 conv weight
    k1d = np.sqrt(ker1d) / np.sqrt(norm)                 # outer(k1d, k1d) == kernel2d
    return k1d, kernel2d


def _reflect(t, n):
    if t < 0:
        return -t
    if t >= n:
        return 2 * (n - 1) - t
    return t


def _build_blur_matrix(n, k1d, pad):
    """M[i, p] = sum_a k1d[a] * [reflect(i + a - pad) == p]  ->  blur = M @ img @ M.T"""
    size = k1d.shape[0]
    M = np.zeros((n, n), dtype=np.float64)
    for i in range(n):
        for a in range(size):
            p = _reflect(i + a - pad, n)
            M[i, p] += k1d[a]
    return M.astype(np.float32)


# ------------------------------------- Pallas kernel ---------------------------------------------

def _cdm_kernel(mask_ref, mr_ref, mct_ref, out_ref):
    # mask_ref: (B, H, W) bf16  -- B images in natural layout
    # mr_ref:   (H, H)    bf16  -- row-blur weight (shared across images)
    # mct_ref:  (W, W)    bf16  -- column-blur weight, right-multiply form (shared)
    # out_ref:  (B, H, W) f32
    B, H, W = mask_ref.shape

    mask = mask_ref[...].astype(jnp.float32)      # elementwise math in f32 (v5e-friendly)
    one_minus_mask = 1.0 - mask                   # exact for a 0/1 mask

    # Broadcast the shared row weight once (hoisted out of the unrolled loop).
    mr_b = jnp.broadcast_to(mr_ref[...], (B, H, H))   # bf16, tiny
    mct = mct_ref[...]                                # bf16 (W, W)

    init = one_minus_mask
    conf = one_minus_mask                         # overwritten on the first iteration (ITERS >= 1)

    # ITERS is a small static constant -> unrolled Python loop.
    for it in range(ITERS):
        # row blur, per image: (H,H) @ (H,W).  Batched bf16 matmul, f32 accumulate.
        rb = jnp.einsum("bhk,bkw->bhw", mr_b, init.astype(jnp.bfloat16),
                        preferred_element_type=jnp.float32)
        # column blur: all B*H rows against the shared (W,W) weight in ONE 2-D matmul
        # (M = B*H = 256 at B=4 -> fills the MXU height; no kron zero padding).
        cb = jnp.dot(rb.reshape(B * H, W).astype(jnp.bfloat16), mct,
                     preferred_element_type=jnp.float32).reshape(B, H, W)
        conf = cb * mask
        if it + 1 < ITERS:                        # peel: the final init update is dead work
            init = conf + one_minus_mask

    out_ref[...] = conf


# ------------------------------------- host wrapper ----------------------------------------------

def confidence_driven_mask(mask_nchw, batch=4):
    """NCHW (C=1) mask -> NCHW confidence map. `batch` images are processed per grid step."""
    N, C, H, W = mask_nchw.shape
    assert C == 1, "ConfidenceDrivenMaskLayer operates on single-channel masks"
    assert H >= PAD + 1 and W >= PAD + 1, "ReflectionPad2d(32) requires H, W >= 33"

    B = max(1, min(batch, N))
    n_blocks = (N + B - 1) // B
    N_pad = n_blocks * B

    # host-side weight construction (tiny, numpy)
    k1d, _ = _gauss_factors(SIZE, SIGMA)
    Mr = _build_blur_matrix(H, k1d, PAD)                    # (H, H)  left-multiply (row blur)
    McT = _build_blur_matrix(W, k1d, PAD).T                 # (W, W)  right-multiply (column blur)

    mr = jnp.asarray(Mr, dtype=jnp.bfloat16)
    mct = jnp.asarray(McT, dtype=jnp.bfloat16)

    # Natural layout straight into the kernel; bf16 is exact for a binary mask and halves the
    # input DMA.  (No transposes: the reshape is free and the cast fuses with the producer.)
    mask = mask_nchw.reshape(N, H, W).astype(jnp.bfloat16)
    if N_pad != N:
        mask = jnp.pad(mask, ((0, N_pad - N), (0, 0), (0, 0)))   # zero-mask tail, sliced off below

    out = pl.pallas_call(
        _cdm_kernel,
        out_shape=jax.ShapeDtypeStruct((N_pad, H, W), jnp.float32),
        grid=(n_blocks,),
        in_specs=[
            pl.BlockSpec((B, H, W), lambda n: (n, 0, 0)),   # per-step batch of B images
            pl.BlockSpec((H, H), lambda n: (0, 0)),         # grid-invariant weights
            pl.BlockSpec((W, W), lambda n: (0, 0)),
        ],
        out_specs=pl.BlockSpec((B, H, W), lambda n: (n, 0, 0)),
        compiler_params=pltpu.CompilerParams(dimension_semantics=("parallel",)),
    )(mask, mr, mct)

    return out[:N][:, None, :, :]                            # back to NCHW, no relayout needed


# ----------------------------- pure-JAX references (for verification) -----------------------------

def _reference_conv(mask_nchw, kernel2d):
    """Exact module semantics: reflect-pad + 65x65 conv, f32 HIGHEST."""
    k = jnp.asarray(kernel2d)[None, None]                   # (1,1,65,65) OIHW
    init = 1.0 - mask_nchw
    conf = None
    for _ in range(ITERS):
        x = jnp.pad(init, ((0, 0), (0, 0), (PAD, PAD), (PAD, PAD)), mode="reflect")
        blurred = jax.lax.conv_general_dilated(
            x, k, window_strides=(1, 1), padding="VALID",
            precision=jax.lax.Precision.HIGHEST)
        conf = blurred * mask_nchw
        init = conf + (1.0 - mask_nchw)
    return conf


def _reference_separable_bf16(mask_nchw, Mr, McT):
    """Same separable math with matched bf16 MXU operands / f32 accumulation and peeled tail."""
    mr = jnp.asarray(Mr, jnp.bfloat16)
    mct = jnp.asarray(McT, jnp.bfloat16)
    mask = mask_nchw[:, 0].astype(jnp.bfloat16).astype(jnp.float32)
    omm = 1.0 - mask
    init = omm
    conf = omm
    for it in range(ITERS):
        rb = jnp.einsum("hk,nkw->nhw", mr, init.astype(jnp.bfloat16),
                        preferred_element_type=jnp.float32)
        cb = jnp.einsum("nhw,wv->nhv", rb.astype(jnp.bfloat16), mct,
                        preferred_element_type=jnp.float32)
        conf = cb * mask
        if it + 1 < ITERS:
            init = conf + omm
    return conf[:, None, :, :]


# -------------------------------------------- main -----------------------------------------------

if __name__ == "__main__":
    N, C, H, W = 8, 1, 64, 64   # 8 images, batch=4 -> 2 grid steps (even: good for v7x megacore)

    key = jax.random.PRNGKey(0)
    # binary hole mask (1 = known, 0 = hole), as the layer expects
    mask = (jax.random.uniform(key, (N, C, H, W)) > 0.7).astype(jnp.float32)

    out = confidence_driven_mask(mask, batch=4)
    out = jax.block_until_ready(out)

    k1d, kernel2d = _gauss_factors(SIZE, SIGMA)
    Mr = _build_blur_matrix(H, k1d, PAD)
    McT = _build_blur_matrix(W, k1d, PAD).T

    # Tight check vs a matched-precision (bf16-operand) separable reference: validates the
    # Pallas plumbing (natural-layout blocks, batched row blur, fused (B*H,W)x(W,W) column blur).
    ref_matched = jax.block_until_ready(_reference_separable_bf16(mask, Mr, McT))
    np.testing.assert_allclose(np.asarray(out), np.asarray(ref_matched), rtol=1e-2, atol=1e-2)

    # Loose check vs the exact f32 conv reference (module semantics). Tolerance reflects the
    # 7 iterations of compounded single-pass-bf16 MXU rounding adopted per the perf review.
    ref_exact = jax.block_until_ready(_reference_conv(mask, kernel2d))
    np.testing.assert_allclose(np.asarray(out), np.asarray(ref_exact), rtol=5e-2, atol=5e-2)

    print("KERNEL_OK")
</pallas_src>

<mosaic_0001>
module attributes {stable_mosaic.version = 11 : i64} {
  func.func @_cdm_kernel(%arg0: i32, %arg1: memref<4x64x64xbf16, #tpu.memory_space<vmem>>, %arg2: memref<64x64xbf16, #tpu.memory_space<vmem>>, %arg3: memref<64x64xbf16, #tpu.memory_space<vmem>>, %arg4: memref<4x64x64xf32, #tpu.memory_space<vmem>>) attributes {dimension_semantics = [#tpu.dimension_semantics<parallel>], iteration_bounds = array<i64: 2>, scalar_prefetch = 0 : i64, scratch_operands = 0 : i64, tpu.core_type = #tpu.core_type<tc>, window_params = [{transform_indices = @transform_0, window_bounds = array<i64: 4, 64, 64>}, {pipeline_mode = #tpu.pipeline_mode<synchronous>, transform_indices = @transform_1, window_bounds = array<i64: 64, 64>}, {pipeline_mode = #tpu.pipeline_mode<synchronous>, transform_indices = @transform_2, window_bounds = array<i64: 64, 64>}, {transform_indices = @transform_3, window_bounds = array<i64: 4, 64, 64>}]} {
    %c0 = arith.constant 0 : index
    %c0_0 = arith.constant 0 : index
    %c0_1 = arith.constant 0 : index
    %0 = vector.load %arg1[%c0, %c0_0, %c0_1] : memref<4x64x64xbf16, #tpu.memory_space<vmem>>, vector<4x64x64xbf16>
    %1 = arith.extf %0 : vector<4x64x64xbf16> to vector<4x64x64xf32>
    %cst = arith.constant 1.000000e+00 : f32
    %2 = vector.broadcast %cst : f32 to vector<4x64x64xf32>
    %3 = arith.subf %2, %1 : vector<4x64x64xf32>
    %c0_2 = arith.constant 0 : index
    %c0_3 = arith.constant 0 : index
    %4 = vector.load %arg2[%c0_2, %c0_3] : memref<64x64xbf16, #tpu.memory_space<vmem>>, vector<64x64xbf16>
    %5 = vector.shape_cast %4 : vector<64x64xbf16> to vector<1x64x64xbf16>
    %6 = vector.broadcast %5 : vector<1x64x64xbf16> to vector<4x64x64xbf16>
    %c0_4 = arith.constant 0 : index
    %c0_5 = arith.constant 0 : index
    %7 = vector.load %arg3[%c0_4, %c0_5] : memref<64x64xbf16, #tpu.memory_space<vmem>>, vector<64x64xbf16>
    %8 = arith.truncf %3 : vector<4x64x64xf32> to vector<4x64x64xbf16>
    "tpu.trace_start"() <{level = 10 : i32, message = "bhk,bkw->bhw"}> : () -> ()
    %cst_6 = arith.constant dense<0.000000e+00> : vector<4x64x64xf32>
    %9 = tpu.matmul %6, %8, %cst_6 {dimension_numbers = #tpu.dot_dimension_numbers<[2], [1], [1], [2], [0, 0, 0, 1, 1, 2], [0], [0]>} : vector<4x64x64xbf16>, vector<4x64x64xbf16>, vector<4x64x64xf32> -> vector<4x64x64xf32>
    "tpu.trace_stop"() : () -> ()
    %10 = vector.shape_cast %9 : vector<4x64x64xf32> to vector<256x64xf32>
    %11 = arith.truncf %10 : vector<256x64xf32> to vector<256x64xbf16>
    %cst_7 = arith.constant dense<0.000000e+00> : vector<256x64xf32>
    %12 = tpu.matmul %11, %7, %cst_7 {dimension_numbers = #tpu.dot_dimension_numbers<[1], [0], [0], [1], [0, 0, 1, 1], [], []>} : vector<256x64xbf16>, vector<64x64xbf16>, vector<256x64xf32> -> vector<256x64xf32>
    %13 = vector.shape_cast %12 : vector<256x64xf32> to vector<4x64x64xf32>
    %14 = arith.mulf %13, %1 : vector<4x64x64xf32>
    %15 = arith.addf %14, %3 : vector<4x64x64xf32>
    %16 = arith.truncf %15 : vector<4x64x64xf32> to vector<4x64x64xbf16>
    "tpu.trace_start"() <{level = 10 : i32, message = "bhk,bkw->bhw"}> : () -> ()
    %cst_8 = arith.constant dense<0.000000e+00> : vector<4x64x64xf32>
    %17 = tpu.matmul %6, %16, %cst_8 {dimension_numbers = #tpu.dot_dimension_numbers<[2], [1], [1], [2], [0, 0, 0, 1, 1, 2], [0], [0]>} : vector<4x64x64xbf16>, vector<4x64x64xbf16>, vector<4x64x64xf32> -> vector<4x64x64xf32>
    "tpu.trace_stop"() : () -> ()
    %18 = vector.shape_cast %17 : vector<4x64x64xf32> to vector<256x64xf32>
    %19 = arith.truncf %18 : vector<256x64xf32> to vector<256x64xbf16>
    %cst_9 = arith.constant dense<0.000000e+00> : vector<256x64xf32>
    %20 = tpu.matmul %19, %7, %cst_9 {dimension_numbers = #tpu.dot_dimension_numbers<[1], [0], [0], [1], [0, 0, 1, 1], [], []>} : vector<256x64xbf16>, vector<64x64xbf16>, vector<256x64xf32> -> vector<256x64xf32>
    %21 = vector.shape_cast %20 : vector<256x64xf32> to vector<4x64x64xf32>
    %22 = arith.mulf %21, %1 : vector<4x64x64xf32>
    %23 = arith.addf %22, %3 : vector<4x64x64xf32>
    %24 = arith.truncf %23 : vector<4x64x64xf32> to vector<4x64x64xbf16>
    "tpu.trace_start"() <{level = 10 : i32, message = "bhk,bkw->bhw"}> : () -> ()
    %cst_10 = arith.constant dense<0.000000e+00> : vector<4x64x64xf32>
    %25 = tpu.matmul %6, %24, %cst_10 {dimension_numbers = #tpu.dot_dimension_numbers<[2], [1], [1], [2], [0, 0, 0, 1, 1, 2], [0], [0]>} : vector<4x64x64xbf16>, vector<4x64x64xbf16>, vector<4x64x64xf32> -> vector<4x64x64xf32>
    "tpu.trace_stop"() : () -> ()
    %26 = vector.shape_cast %25 : vector<4x64x64xf32> to vector<256x64xf32>
    %27 = arith.truncf %26 : vector<256x64xf32> to vector<256x64xbf16>
    %cst_11 = arith.constant dense<0.000000e+00> : vector<256x64xf32>
    %28 = tpu.matmul %27, %7, %cst_11 {dimension_numbers = #tpu.dot_dimension_numbers<[1], [0], [0], [1], [0, 0, 1, 1], [], []>} : vector<256x64xbf16>, vector<64x64xbf16>, vector<256x64xf32> -> vector<256x64xf32>
    %29 = vector.shape_cast %28 : vector<256x64xf32> to vector<4x64x64xf32>
    %30 = arith.mulf %29, %1 : vector<4x64x64xf32>
    %31 = arith.addf %30, %3 : vector<4x64x64xf32>
    %32 = arith.truncf %31 : vector<4x64x64xf32> to vector<4x64x64xbf16>
    "tpu.trace_start"() <{level = 10 : i32, message = "bhk,bkw->bhw"}> : () -> ()
    %cst_12 = arith.constant dense<0.000000e+00> : vector<4x64x64xf32>
    %33 = tpu.matmul %6, %32, %cst_12 {dimension_numbers = #tpu.dot_dimension_numbers<[2], [1], [1], [2], [0, 0, 0, 1, 1, 2], [0], [0]>} : vector<4x64x64xbf16>, vector<4x64x64xbf16>, vector<4x64x64xf32> -> vector<4x64x64xf32>
    "tpu.trace_stop"() : () -> ()
    %34 = vector.shape_cast %33 : vector<4x64x64xf32> to vector<256x64xf32>
    %35 = arith.truncf %34 : vector<256x64xf32> to vector<256x64xbf16>
    %cst_13 = arith.constant dense<0.000000e+00> : vector<256x64xf32>
    %36 = tpu.matmul %35, %7, %cst_13 {dimension_numbers = #tpu.dot_dimension_numbers<[1], [0], [0], [1], [0, 0, 1, 1], [], []>} : vector<256x64xbf16>, vector<64x64xbf16>, vector<256x64xf32> -> vector<256x64xf32>
    %37 = vector.shape_cast %36 : vector<256x64xf32> to vector<4x64x64xf32>
    %38 = arith.mulf %37, %1 : vector<4x64x64xf32>
    %39 = arith.addf %38, %3 : vector<4x64x64xf32>
    %40 = arith.truncf %39 : vector<4x64x64xf32> to vector<4x64x64xbf16>
    "tpu.trace_start"() <{level = 10 : i32, message = "bhk,bkw->bhw"}> : () -> ()
    %cst_14 = arith.constant dense<0.000000e+00> : vector<4x64x64xf32>
    %41 = tpu.matmul %6, %40, %cst_14 {dimension_numbers = #tpu.dot_dimension_numbers<[2], [1], [1], [2], [0, 0, 0, 1, 1, 2], [0], [0]>} : vector<4x64x64xbf16>, vector<4x64x64xbf16>, vector<4x64x64xf32> -> vector<4x64x64xf32>
    "tpu.trace_stop"() : () -> ()
    %42 = vector.shape_cast %41 : vector<4x64x64xf32> to vector<256x64xf32>
    %43 = arith.truncf %42 : vector<256x64xf32> to vector<256x64xbf16>
    %cst_15 = arith.constant dense<0.000000e+00> : vector<256x64xf32>
    %44 = tpu.matmul %43, %7, %cst_15 {dimension_numbers = #tpu.dot_dimension_numbers<[1], [0], [0], [1], [0, 0, 1, 1], [], []>} : vector<256x64xbf16>, vector<64x64xbf16>, vector<256x64xf32> -> vector<256x64xf32>
    %45 = vector.shape_cast %44 : vector<256x64xf32> to vector<4x64x64xf32>
    %46 = arith.mulf %45, %1 : vector<4x64x64xf32>
    %47 = arith.addf %46, %3 : vector<4x64x64xf32>
    %48 = arith.truncf %47 : vector<4x64x64xf32> to vector<4x64x64xbf16>
    "tpu.trace_start"() <{level = 10 : i32, message = "bhk,bkw->bhw"}> : () -> ()
    %cst_16 = arith.constant dense<0.000000e+00> : vector<4x64x64xf32>
    %49 = tpu.matmul %6, %48, %cst_16 {dimension_numbers = #tpu.dot_dimension_numbers<[2], [1], [1], [2], [0, 0, 0, 1, 1, 2], [0], [0]>} : vector<4x64x64xbf16>, vector<4x64x64xbf16>, vector<4x64x64xf32> -> vector<4x64x64xf32>
    "tpu.trace_stop"() : () -> ()
    %50 = vector.shape_cast %49 : vector<4x64x64xf32> to vector<256x64xf32>
    %51 = arith.truncf %50 : vector<256x64xf32> to vector<256x64xbf16>
    %cst_17 = arith.constant dense<0.000000e+00> : vector<256x64xf32>
    %52 = tpu.matmul %51, %7, %cst_17 {dimension_numbers = #tpu.dot_dimension_numbers<[1], [0], [0], [1], [0, 0, 1, 1], [], []>} : vector<256x64xbf16>, vector<64x64xbf16>, vector<256x64xf32> -> vector<256x64xf32>
    %53 = vector.shape_cast %52 : vector<256x64xf32> to vector<4x64x64xf32>
    %54 = arith.mulf %53, %1 : vector<4x64x64xf32>
    %55 = arith.addf %54, %3 : vector<4x64x64xf32>
    %56 = arith.truncf %55 : vector<4x64x64xf32> to vector<4x64x64xbf16>
    "tpu.trace_start"() <{level = 10 : i32, message = "bhk,bkw->bhw"}> : () -> ()
    %cst_18 = arith.constant dense<0.000000e+00> : vector<4x64x64xf32>
    %57 = tpu.matmul %6, %56, %cst_18 {dimension_numbers = #tpu.dot_dimension_numbers<[2], [1], [1], [2], [0, 0, 0, 1, 1, 2], [0], [0]>} : vector<4x64x64xbf16>, vector<4x64x64xbf16>, vector<4x64x64xf32> -> vector<4x64x64xf32>
    "tpu.trace_stop"() : () -> ()
    %58 = vector.shape_cast %57 : vector<4x64x64xf32> to vector<256x64xf32>
    %59 = arith.truncf %58 : vector<256x64xf32> to vector<256x64xbf16>
    %cst_19 = arith.constant dense<0.000000e+00> : vector<256x64xf32>
    %60 = tpu.matmul %59, %7, %cst_19 {dimension_numbers = #tpu.dot_dimension_numbers<[1], [0], [0], [1], [0, 0, 1, 1], [], []>} : vector<256x64xbf16>, vector<64x64xbf16>, vector<256x64xf32> -> vector<256x64xf32>
    %61 = vector.shape_cast %60 : vector<256x64xf32> to vector<4x64x64xf32>
    %62 = arith.mulf %61, %1 : vector<4x64x64xf32>
    %c0_20 = arith.constant 0 : index
    %c0_21 = arith.constant 0 : index
    %c0_22 = arith.constant 0 : index
    %63 = vector.load %arg4[%c0_20, %c0_21, %c0_22] : memref<4x64x64xf32, #tpu.memory_space<vmem>>, vector<4x64x64xf32>
    tpu.vector_store %arg4[%c0_20, %c0_21, %c0_22], %62 {strides = array<i32>} : memref<4x64x64xf32, #tpu.memory_space<vmem>>, vector<4x64x64xf32>,
    return
  }
  func.func @transform_0(%arg0: i32) -> (i32, i32, i32) {
    %c0_i32 = arith.constant 0 : i32
    %c0_i32_0 = arith.constant 0 : i32
    %c0_i32_1 = arith.constant 0 : i32
    return %arg0, %c0_i32, %c0_i32_0 : i32, i32, i32
  }
  func.func @transform_1(%arg0: i32) -> (i32, i32) {
    %c0_i32 = arith.constant 0 : i32
    %c0_i32_0 = arith.constant 0 : i32
    %c0_i32_1 = arith.constant 0 : i32
    return %c0_i32, %c0_i32_0 : i32, i32
  }
  func.func @transform_2(%arg0: i32) -> (i32, i32) {
    %c0_i32 = arith.constant 0 : i32
    %c0_i32_0 = arith.constant 0 : i32
    %c0_i32_1 = arith.constant 0 : i32
    return %c0_i32, %c0_i32_0 : i32, i32
  }
  func.func @transform_3(%arg0: i32) -> (i32, i32, i32) {
    %c0_i32 = arith.constant 0 : i32
    %c0_i32_0 = arith.constant 0 : i32
    %c0_i32_1 = arith.constant 0 : i32
    return %arg0, %c0_i32, %c0_i32_0 : i32, i32, i32
  }
}

</mosaic_0001>

<llo_original>
// kernel: tpu_custom_call.1
$region0: #{tpu_custom_call.1}
  #allocation0 [shape = 'u32[]', space=smem, size = 0x4, offset = 0x4, fixed_abs, tag = 'smem constant byte address 0x4 - core index']
  #allocation1 [shape = 'u32[144,128]{1,0:T(1,128)}', space=vmem, size = 0x12000, scoped, tag = 'internal scratch']
  %s0 = inlined_call_operand.hbm [shape: bf16[8,64,64], index: 0, kind: input, shape index: {}]
  %s1 = inlined_call_operand.hbm [shape: bf16[64,64], index: 1, kind: input, shape index: {}]
  %s2 = inlined_call_operand.hbm [shape: bf16[64,64], index: 2, kind: input, shape index: {}]
  %s3 = inlined_call_operand.hbm [shape: f32[8,64,64], index: 3, kind: output, shape index: {}]
  %s4 = sld [smem:[#allocation0]]
  $region57: #{tpu_custom_call.1} parent=0
    _
  %s6 = ssub.s32 1, %s4
  %s7 = scalar_select 0, %s6, %s4
  $region1: #{tpu_custom_call.1} parent=0
    #allocation2 [shape = 'u8[131072]{0}', space=vmem, size = 0x20000, scoped, tag = 'input window, operand 0']
    #allocation3 [shape = 's32[2]{0}', space=sflag, size = 0x8, scoped, tag = 'scoped memory for tpu_custom_call.1']
    #allocation4 [shape = 's32[2]{0}', space=sflag, size = 0x8, scoped, tag = 'scoped memory for tpu_custom_call.1']
    #allocation5 [shape = 'u8[16384]{0}', space=vmem, size = 0x4000, scoped, tag = 'input window, operand 1, single buffered']
    #allocation6 [shape = 's32[1]{0}', space=sflag, size = 0x4, scoped, tag = 'scoped memory for tpu_custom_call.1']
    #allocation7 [shape = 'u8[16384]{0}', space=vmem, size = 0x4000, scoped, tag = 'input window, operand 2, single buffered']
    #allocation8 [shape = 'u8[262144]{0}', space=vmem, size = 0x40000, scoped, tag = 'output window, operand 0']
    %8 = vsyncpa [#allocation3], 0
    %s9 = scalar_lea.sflag [#allocation3], 1
    %10 = vsyncpa %s9, 0
    %11 = vsyncpa [#allocation6], 0
    %12 = vsyncpa [#allocation4], 0
    %s13 = scalar_lea.sflag [#allocation4], 1
    %14 = vsyncpa %s13, 0
    loop: start=0, step=1, limit=4
    $region2: #{tpu_custom_call.1} parent=1 // loop_pre_header
      _
    $region3: #{tpu_custom_call.1} parent=1 // loop_header
      %s16 = sphi 0, %s20
      %p17 = scmp.ge.s32.totalorder %s16, 4
      %s26 = sphi 0, %s28
      %s29 = sphi 0, %s26
      %s30 = sphi 0, %s29
      %s46 = sphi 0, %s30
      %s50 = sphi 0, %s50
      %s52 = sphi 0, %s50
      %s53 = sphi 0, %s52
      %s67 = sphi 0, %s53
      %s71 = sphi 0, %s71
      %s73 = sphi 0, %s71
      %s74 = sphi 0, %s73
      %s88 = sphi 0, %s74
      %s94 = sphi 0, %s96
      %s97 = sphi 0, %s94
      %s98 = sphi 0, %s97
      %s114 = sphi 0, %s98
    $region4: #{tpu_custom_call.1} parent=1 // loop_header_branch
      %19 = sbr.rel (%p17) target = $region8
    $region5: #{tpu_custom_call.1} parent=1 // loop_body
      %s21 = ssub.s32 %s16, 1
      %s22 = ssub.s32 %s16, 2
      %s23 = sadd.s32 %s16, 1
      %s24 = ssub.s32 %s16, %s23
      %p25 = scmp.eq.s32.totalorder %s24, 0
      %s27 = sadd.s32 %s26, 1
      %s28 = scalar_select %p25, %s26, %s27
      %p31 = pneg %p25
      %p32 = scmp.eq.s32.totalorder %s16, 1
      %p33 = por %p31, %p32
      %p34 = scmp.ne.s32.totalorder %s26, %s29
      %p35 = scmp.eq.s32.totalorder %s16, 0
      %p36 = por %p34, %p35
      %p37 = scmp.ne.s32.totalorder %s26, %s29
      %p38 = scmp.eq.s32.totalorder %s21, 1
      %p39 = por %p37, %p38
      %p40 = scmp.ne.s32.totalorder %s29, %s30
      %p41 = scmp.eq.s32.totalorder %s21, 0
      %p42 = por %p40, %p41
      %p43 = scmp.ne.s32.totalorder %s29, %s30
      %p44 = scmp.eq.s32.totalorder %s22, 1
      %p45 = por %p43, %p44
      %p47 = scmp.ne.s32.totalorder %s30, %s46
      %p48 = scmp.eq.s32.totalorder %s22, 0
      %p49 = por %p47, %p48
      %s51 = sadd.s32 %s50, 1
      %p54 = scmp.eq.s32.totalorder %s16, 1
      %p55 = scmp.ne.s32.totalorder %s50, %s52
      %p56 = scmp.eq.s32.totalorder %s16, 0
      %p57 = por %p55, %p56
      %p58 = scmp.ne.s32.totalorder %s50, %s52
      %p59 = scmp.eq.s32.totalorder %s21, 1
      %p60 = por %p58, %p59
      %p61 = scmp.ne.s32.totalorder %s52, %s53
      %p62 = scmp.eq.s32.totalorder %s21, 0
      %p63 = por %p61, %p62
      %p64 = scmp.ne.s32.totalorder %s52, %s53
      %p65 = scmp.eq.s32.totalorder %s22, 1
      %p66 = por %p64, %p65
      %p68 = scmp.ne.s32.totalorder %s53, %s67
      %p69 = scmp.eq.s32.totalorder %s22, 0
      %p70 = por %p68, %p69
      %s72 = sadd.s32 %s71, 1
      %p75 = scmp.eq.s32.totalorder %s16, 1
      %p76 = scmp.ne.s32.totalorder %s71, %s73
      %p77 = scmp.eq.s32.totalorder %s16, 0
      %p78 = por %p76, %p77
      %p79 = scmp.ne.s32.totalorder %s71, %s73
      %p80 = scmp.eq.s32.totalorder %s21, 1
      %p81 = por %p79, %p80
      %p82 = scmp.ne.s32.totalorder %s73, %s74
      %p83 = scmp.eq.s32.totalorder %s21, 0
      %p84 = por %p82, %p83
      %p85 = scmp.ne.s32.totalorder %s73, %s74
      %p86 = scmp.eq.s32.totalorder %s22, 1
      %p87 = por %p85, %p86
      %p89 = scmp.ne.s32.totalorder %s74, %s88
      %p90 = scmp.eq.s32.totalorder %s22, 0
      %p91 = por %p89, %p90
      %s92 = ssub.s32 %s16, %s23
      %p93 = scmp.eq.s32.totalorder %s92, 0
      %s95 = sadd.s32 %s94, 1
      %s96 = scalar_select %p93, %s94, %s95
      %p99 = pneg %p93
      %p100 = scmp.eq.s32.totalorder %s16, 1
      %p101 = por %p99, %p100
      %p102 = scmp.ne.s32.totalorder %s94, %s97
      %p103 = scmp.eq.s32.totalorder %s16, 0
      %p104 = por %p102, %p103
      %p105 = scmp.ne.s32.totalorder %s94, %s97
      %p106 = scmp.eq.s32.totalorder %s21, 1
      %p107 = por %p105, %p106
      %p108 = scmp.ne.s32.totalorder %s97, %s98
      %p109 = scmp.eq.s32.totalorder %s21, 0
      %p110 = por %p108, %p109
      %p111 = scmp.ne.s32.totalorder %s97, %s98
      %p112 = scmp.eq.s32.totalorder %s22, 1
      %p113 = por %p111, %p112
      %p115 = scmp.ne.s32.totalorder %s98, %s114
      %p116 = scmp.eq.s32.totalorder %s22, 0
      %p117 = por %p115, %p116
      %p118 = scmp.le.s32.totalorder 1, %s16
      %p119 = scmp.lt.s32.totalorder %s16, 3
      %p120 = pnand %p118, %p119
      %p121 = pneg %p120
      // Predicated region
      $region9: #{tpu_custom_call.1} parent=5 // pred_check
        _
      $region10: #{tpu_custom_call.1} parent=5 // pred_check_branch
        %123 = sbr.rel (%p120) target = $region12
      $region11: #{tpu_custom_call.1} parent=5 // pred_region
        %s124 = ssub.s32 %s16, 1
        // Predicated region
        $region13: #{tpu_custom_call.1} parent=11 // pred_check
          %p125 = pneg %p63
        $region14: #{tpu_custom_call.1} parent=11 // pred_check_branch
          %127 = sbr.rel (%p125) target = $region16
        $region15: #{tpu_custom_call.1} parent=11 // pred_region
          %s129 = ssub.s32 512, 512
          %130 = vsyncadd [#allocation6], %s129
          %s131 = sshll.u32 [#allocation5], 4
          %s132 = int_to_ptr.vmem [resolvable:$true] %s131
          %137 = dma.hbm_to_vmem [thread:$0]  %s1, 512, %s132, [#allocation6], 64, 64, 4
        $region16: #{tpu_custom_call.1} parent=11 // pred_fallthru
          _
        // Predicated region
        $region17: #{tpu_custom_call.1} parent=11 // pred_check
          %p138 = pneg %p84
        $region18: #{tpu_custom_call.1} parent=11 // pred_check_branch
          %140 = sbr.rel (%p138) target = $region20
        $region19: #{tpu_custom_call.1} parent=11 // pred_region
          %s142 = ssub.s32 512, 512
          %143 = vsyncadd [#allocation6], %s142
          %s144 = sshll.u32 [#allocation7], 4
          %s145 = int_to_ptr.vmem [resolvable:$true] %s144
          %150 = dma.hbm_to_vmem [thread:$0]  %s2, 512, %s145, [#allocation6], 64, 64, 4
        $region20: #{tpu_custom_call.1} parent=11 // pred_fallthru
          _
      $region12: #{tpu_custom_call.1} parent=5 // pred_fallthru
        _
      %p151 = scmp.lt.s32.totalorder %s16, 2
      // Predicated region
      $region21: #{tpu_custom_call.1} parent=5 // pred_check
        %p152 = pneg %p151
      $region22: #{tpu_custom_call.1} parent=5 // pred_check_branch
        %154 = sbr.rel (%p152) target = $region24
      $region23: #{tpu_custom_call.1} parent=5 // pred_region
        // Predicated region
        $region25: #{tpu_custom_call.1} parent=23 // pred_check
          %p155 = pneg %p36
        $region26: #{tpu_custom_call.1} parent=23 // pred_check_branch
          %157 = sbr.rel (%p155) target = $region28
        $region27: #{tpu_custom_call.1} parent=23 // pred_region
          %s158 = sand.u32 %s26, 1
          %s159 = scalar_lea.sflag [#allocation3], %s158
          %s160 = sand.u32 %s26, 1
          %s161 = smul.addr %s160, 128
          %s162 = scalar_lea.vmem [#allocation2], %s161
          %s163 = smul.u32 4, %s16
          %s165 = ssub.s32 2048, 2048
          %166 = vsyncadd %s159, %s165
          %s167 = smul.addr %s163, 8
          %s168 = smul.addr %s167, 64
          %s169 = scalar_lea.hbm %s0, %s168
          %s170 = sshll.u32 %s162, 4
          %s171 = int_to_ptr.vmem [resolvable:$true] %s170
          %176 = dma.hbm_to_vmem [thread:$0]  %s169, 2048, %s171, %s159, 64, 64, 4
        $region28: #{tpu_custom_call.1} parent=23 // pred_fallthru
          _
      $region24: #{tpu_custom_call.1} parent=5 // pred_fallthru
        _
      %p177 = scmp.le.s32.totalorder 1, %s16
      %p178 = scmp.lt.s32.totalorder %s16, 3
      %p179 = pnand %p177, %p178
      %p180 = pneg %p179
      // Predicated region
      $region29: #{tpu_custom_call.1} parent=5 // pred_check
        _
      $region30: #{tpu_custom_call.1} parent=5 // pred_check_branch
        %182 = sbr.rel (%p179) target = $region32
      $region31: #{tpu_custom_call.1} parent=5 // pred_region
        %s183 = ssub.s32 %s16, 1
        %s184 = sand.u32 %s29, 1
        %s185 = scalar_lea.sflag [#allocation3], %s184
        %s186 = sand.u32 %s29, 1
        %s187 = smul.addr %s186, 128
        %s188 = scalar_lea.vmem [#allocation2], %s187
        // Predicated region
        $region33: #{tpu_custom_call.1} parent=31 // pred_check
          %p189 = pneg %p42
        $region34: #{tpu_custom_call.1} parent=31 // pred_check_branch
          %191 = sbr.rel (%p189) target = $region36
        $region35: #{tpu_custom_call.1} parent=31 // pred_region
          %192 = dma.done %s185, 2048
        $region36: #{tpu_custom_call.1} parent=31 // pred_fallthru
          _
        // Predicated region
        $region37: #{tpu_custom_call.1} parent=31 // pred_check
          %p193 = pneg %p63
        $region38: #{tpu_custom_call.1} parent=31 // pred_check_branch
          %195 = sbr.rel (%p193) target = $region40
        $region39: #{tpu_custom_call.1} parent=31 // pred_region
          %196 = dma.done [#allocation6], 512
        $region40: #{tpu_custom_call.1} parent=31 // pred_fallthru
          _
        // Predicated region
        $region41: #{tpu_custom_call.1} parent=31 // pred_check
          %p197 = pneg %p84
        $region42: #{tpu_custom_call.1} parent=31 // pred_check_branch
          %199 = sbr.rel (%p197) target = $region44
        $region43: #{tpu_custom_call.1} parent=31 // pred_region
          %200 = dma.done [#allocation6], 512
        $region44: #{tpu_custom_call.1} parent=31 // pred_fallthru
          _
        %s201 = sand.u32 %s29, 1
        %s202 = scalar_lea.sflag [#allocation3], %s201
        %s203 = sand.u32 %s29, 1
        %s204 = smul.addr %s203, 128
        %s205 = scalar_lea.vmem [#allocation2], %s204
        %p206 = pneg %p42
        %p207 = pneg %p39
        %p208 = pneg %p63
        %p209 = pneg %p60
        %p210 = pneg %p84
        %p211 = pneg %p81
        %p212 = pneg %p110
        %p213 = pneg %p107
        %s214 = sand.u32 %s97, 1
        %s215 = scalar_lea.sflag [#allocation4], %s214
        %s216 = sand.u32 %s97, 1
        %s217 = smul.addr %s216, 256
        %s218 = scalar_lea.vmem [#allocation8], %s217
        %s219 = smul.u32 4, %s21
        %s220 = smul.u32 4, %s21
        %v222 = vld [vmem:[%s188] sm:$0xf]
        %v223 = vld [vmem:[%s188 + $0x4] sm:$0xf]
        %v224 = vld [vmem:[%s188 + $0x8] sm:$0xf]
        %v225 = vld [vmem:[%s188 + $0xc] sm:$0xf]
        %v226 = vld [vmem:[%s188 + $0x10] sm:$0xf]
        %v227 = vld [vmem:[%s188 + $0x14] sm:$0xf]
        %v228 = vld [vmem:[%s188 + $0x18] sm:$0xf]
        %v229 = vld [vmem:[%s188 + $0x1c] sm:$0xf]
        %v230 = vld [vmem:[%s188 + $0x20] sm:$0xf]
        %v231 = vld [vmem:[%s188 + $0x24] sm:$0xf]
        %v232 = vld [vmem:[%s188 + $0x28] sm:$0xf]
        %v233 = vld [vmem:[%s188 + $0x2c] sm:$0xf]
        %v234 = vld [vmem:[%s188 + $0x30] sm:$0xf]
        %v235 = vld [vmem:[%s188 + $0x34] sm:$0xf]
        %v236 = vld [vmem:[%s188 + $0x38] sm:$0xf]
        %v237 = vld [vmem:[%s188 + $0x3c] sm:$0xf]
        %v238 = vld [vmem:[%s188 + $0x40] sm:$0xf]
        %v239 = vld [vmem:[%s188 + $0x44] sm:$0xf]
        %v240 = vld [vmem:[%s188 + $0x48] sm:$0xf]
        %v241 = vld [vmem:[%s188 + $0x4c] sm:$0xf]
        %v242 = vld [vmem:[%s188 + $0x50] sm:$0xf]
        %v243 = vld [vmem:[%s188 + $0x54] sm:$0xf]
        %v244 = vld [vmem:[%s188 + $0x58] sm:$0xf]
        %v245 = vld [vmem:[%s188 + $0x5c] sm:$0xf]
        %v246 = vld [vmem:[%s188 + $0x60] sm:$0xf]
        %v247 = vld [vmem:[%s188 + $0x64] sm:$0xf]
        %v248 = vld [vmem:[%s188 + $0x68] sm:$0xf]
        %v249 = vld [vmem:[%s188 + $0x6c] sm:$0xf]
        %v250 = vld [vmem:[%s188 + $0x70] sm:$0xf]
        %v251 = vld [vmem:[%s188 + $0x74] sm:$0xf]
        %v252 = vld [vmem:[%s188 + $0x78] sm:$0xf]
        %v253 = vld [vmem:[%s188 + $0x7c] sm:$0xf]
        %v254 = vunpack.c.l.bf16 %v222
        %v255 = vunpack.c.l.bf16 %v223
        %v256 = vunpack.c.l.bf16 %v224
        %v257 = vunpack.c.l.bf16 %v225
        %v258 = vunpack.c.l.bf16 %v226
        %v259 = vunpack.c.l.bf16 %v227
        %v260 = vunpack.c.l.bf16 %v228
        %v261 = vunpack.c.l.bf16 %v229
        %v262 = vunpack.c.l.bf16 %v230
        %v263 = vunpack.c.l.bf16 %v231
        %v264 = vunpack.c.l.bf16 %v232
        %v265 = vunpack.c.l.bf16 %v233
        %v266 = vunpack.c.l.bf16 %v234
        %v267 = vunpack.c.l.bf16 %v235
        %v268 = vunpack.c.l.bf16 %v236
        %v269 = vunpack.c.l.bf16 %v237
        %v270 = vunpack.c.l.bf16 %v238
        %v271 = vunpack.c.l.bf16 %v239
        %v272 = vunpack.c.l.bf16 %v240
        %v273 = vunpack.c.l.bf16 %v241
        %v274 = vunpack.c.l.bf16 %v242
        %v275 = vunpack.c.l.bf16 %v243
        %v276 = vunpack.c.l.bf16 %v244
        %v277 = vunpack.c.l.bf16 %v245
        %v278 = vunpack.c.l.bf16 %v246
        %v279 = vunpack.c.l.bf16 %v247
        %v280 = vunpack.c.l.bf16 %v248
        %v281 = vunpack.c.l.bf16 %v249
        %v282 = vunpack.c.l.bf16 %v250
        %v283 = vunpack.c.l.bf16 %v251
        %v284 = vunpack.c.l.bf16 %v252
        %v285 = vunpack.c.l.bf16 %v253
        %v286 = vsub.f32 1.0, %v254
        %v287 = vsub.f32 1.0, %v255
        %v288 = vsub.f32 1.0, %v256
        %v289 = vsub.f32 1.0, %v257
        %v290 = vsub.f32 1.0, %v258
        %v291 = vsub.f32 1.0, %v259
        %v292 = vsub.f32 1.0, %v260
        %v293 = vsub.f32 1.0, %v261
        %v294 = vsub.f32 1.0, %v262
        %v295 = vsub.f32 1.0, %v263
        %v296 = vsub.f32 1.0, %v264
        %v297 = vsub.f32 1.0, %v265
        %v298 = vsub.f32 1.0, %v266
        %v299 = vsub.f32 1.0, %v267
        %v300 = vsub.f32 1.0, %v268
        %v301 = vsub.f32 1.0, %v269
        %v302 = vsub.f32 1.0, %v270
        %v303 = vsub.f32 1.0, %v271
        %v304 = vsub.f32 1.0, %v272
        %v305 = vsub.f32 1.0, %v273
        %v306 = vsub.f32 1.0, %v274
        %v307 = vsub.f32 1.0, %v275
        %v308 = vsub.f32 1.0, %v276
        %v309 = vsub.f32 1.0, %v277
        %v310 = vsub.f32 1.0, %v278
        %v311 = vsub.f32 1.0, %v279
        %v312 = vsub.f32 1.0, %v280
        %v313 = vsub.f32 1.0, %v281
        %v314 = vsub.f32 1.0, %v282
        %v315 = vsub.f32 1.0, %v283
        %v316 = vsub.f32 1.0, %v284
        %v317 = vsub.f32 1.0, %v285
        %v318 = vld [vmem:[#allocation5] sm:$0xf]
        %v319 = vld [vmem:[#allocation5 + $0x4] sm:$0xf]
        %v320 = vld [vmem:[#allocation5 + $0x8] sm:$0xf]
        %v321 = vld [vmem:[#allocation5 + $0xc] sm:$0xf]
        %v322 = vld [vmem:[#allocation5 + $0x10] sm:$0xf]
        %v323 = vld [vmem:[#allocation5 + $0x14] sm:$0xf]
        %v324 = vld [vmem:[#allocation5 + $0x18] sm:$0xf]
        %v325 = vld [vmem:[#allocation5 + $0x1c] sm:$0xf]
        %v326 = vld [vmem:[#allocation7] sm:$0xf]
        %v327 = vld [vmem:[#allocation7 + $0x4] sm:$0xf]
        %v328 = vld [vmem:[#allocation7 + $0x8] sm:$0xf]
        %v329 = vld [vmem:[#allocation7 + $0xc] sm:$0xf]
        %v330 = vld [vmem:[#allocation7 + $0x10] sm:$0xf]
        %v331 = vld [vmem:[#allocation7 + $0x14] sm:$0xf]
        %v332 = vld [vmem:[#allocation7 + $0x18] sm:$0xf]
        %v333 = vld [vmem:[#allocation7 + $0x1c] sm:$0xf]
        %v334 = vpack.c.bf16 %v287, %v286
        %v335 = vpack.c.bf16 %v289, %v288
        %v336 = vpack.c.bf16 %v291, %v290
        %v337 = vpack.c.bf16 %v293, %v292
        %v338 = vpack.c.bf16 %v295, %v294
        %v339 = vpack.c.bf16 %v297, %v296
        %v340 = vpack.c.bf16 %v299, %v298
        %v341 = vpack.c.bf16 %v301, %v300
        %v342 = vpack.c.bf16 %v303, %v302
        %v343 = vpack.c.bf16 %v305, %v304
        %v344 = vpack.c.bf16 %v307, %v306
        %v345 = vpack.c.bf16 %v309, %v308
        %v346 = vpack.c.bf16 %v311, %v310
        %v347 = vpack.c.bf16 %v313, %v312
        %v348 = vpack.c.bf16 %v315, %v314
        %v349 = vpack.c.bf16 %v317, %v316
        %v358 = vunpack.c.l.b16 %v318
        %v359 = vunpack.c.l.b16 %v319
        %v360 = vunpack.c.l.b16 %v320
        %v361 = vunpack.c.l.b16 %v321
        %v362 = vunpack.c.l.b16 %v322
        %v363 = vunpack.c.l.b16 %v323
        %v364 = vunpack.c.l.b16 %v324
        %v365 = vunpack.c.l.b16 %v325
        %v366 = vpack.c.b16 %v359, %v358
        %v367 = vpack.c.b16 %v361, %v360
        %v368 = vpack.c.b16 %v363, %v362
        %v369 = vpack.c.b16 %v365, %v364
        %vm370 = vcmask 523264
        %v372 = vsel %vm370, %v366, 0
        %v375 = vsel %vm370, %v367, 0
        %v378 = vsel %vm370, %v368, 0
        %v381 = vsel %vm370, %v369, 0
        %383 = vmatprep.subr.bf16.mxu0 0
        %384 = vmatpush1.bf16.msra.mxu0 %v334
        %385 = vmatprep.subr.bf16.mxu0 0
        %386 = vmatpush1.bf16.msra.mxu0 %v335
        %387 = vmatprep.subr.bf16.mxu0 0
        %388 = vmatpush1.bf16.msra.mxu0 %v336
        %389 = vmatprep.subr.bf16.mxu0 0
        %390 = vmatpush1.bf16.msra.mxu0 %v337
        %391 = vmatprep.subr.bf16.mxu0 0
        %392 = vmatpush1.bf16.msra.mxu0 0
        %393 = vmatprep.subr.bf16.mxu0 0
        %394 = vmatpush1.bf16.msra.mxu0 0
        %395 = vmatprep.subr.bf16.mxu0 0
        %396 = vmatpush1.bf16.msra.mxu0 0
        %397 = vmatprep.subr.bf16.mxu0 0
        %398 = vmatpush1.bf16.msra.mxu0 0
        %399 = vmatprep.subr.bf16.mxu0 0
        %400 = vmatpush1.bf16.msra.mxu0 0
        %401 = vmatprep.subr.bf16.mxu0 0
        %402 = vmatpush1.bf16.msra.mxu0 0
        %403 = vmatprep.subr.bf16.mxu0 0
        %404 = vmatpush1.bf16.msra.mxu0 0
        %405 = vmatprep.subr.bf16.mxu0 0
        %406 = vmatpush1.bf16.msra.mxu0 0
        %407 = vmatprep.subr.bf16.mxu0 0
        %408 = vmatpush1.bf16.msra.mxu0 0
        %409 = vmatprep.subr.bf16.mxu0 0
        %410 = vmatpush1.bf16.msra.mxu0 0
        %411 = vmatprep.subr.bf16.mxu0 0
        %412 = vmatpush1.bf16.msra.mxu0 0
        %413 = vmatprep.subr.bf16.mxu0 0
        %414 = vmatpush1.bf16.msra.mxu0 0
        %415 = vmatprep.mubr.bf16.mxu0 0
        %416 = vmatmul.mubr.bf16.gmra.mrb[0].mxu0 %v372
        %v417 = vpop.f32.mrb[0].mxu0
        %v418 = vadd.f32 0.0, %v417
        %v419 = vpop.f32.mrb[0].mxu0
        %v420 = vpop.f32.mrb[0].mxu0
        %v421 = vadd.f32 0.0, %v420
        %v422 = vpop.f32.mrb[0].mxu0
        %423 = vmatprep.mubr.bf16.mxu0 0
        %424 = vmatmul.mubr.bf16.gmra.mrb[0].mxu0 %v375
        %v425 = vpop.f32.mrb[0].mxu0
        %v426 = vadd.f32 0.0, %v425
        %v427 = vpop.f32.mrb[0].mxu0
        %v428 = vpop.f32.mrb[0].mxu0
        %v429 = vadd.f32 0.0, %v428
        %v430 = vpop.f32.mrb[0].mxu0
        %431 = vmatprep.mubr.bf16.mxu0 0
        %432 = vmatmul.mubr.bf16.gmra.mrb[0].mxu0 %v378
        %v433 = vpop.f32.mrb[0].mxu0
        %v434 = vadd.f32 0.0, %v433
        %v435 = vpop.f32.mrb[0].mxu0
        %v436 = vpop.f32.mrb[0].mxu0
        %v437 = vadd.f32 0.0, %v436
        %v438 = vpop.f32.mrb[0].mxu0
        %439 = vmatprep.mubr.bf16.mxu0 0
        %440 = vmatmul.mubr.bf16.gmra.mrb[0].mxu0 %v381
        %v441 = vpop.f32.mrb[0].mxu0
        %v442 = vadd.f32 0.0, %v441
        %v443 = vpop.f32.mrb[0].mxu0
        %v444 = vpop.f32.mrb[0].mxu0
        %v445 = vadd.f32 0.0, %v444
        %v446 = vpop.f32.mrb[0].mxu0
        %447 = vdwg.mxu0
        %448 = vmatprep.subr.bf16.mxu0 0
        %449 = vmatpush1.bf16.msra.mxu0 %v338
        %450 = vmatprep.subr.bf16.mxu0 0
        %451 = vmatpush1.bf16.msra.mxu0 %v339
        %452 = vmatprep.subr.bf16.mxu0 0
        %453 = vmatpush1.bf16.msra.mxu0 %v340
        %454 = vmatprep.subr.bf16.mxu0 0
        %455 = vmatpush1.bf16.msra.mxu0 %v341
        %456 = vmatprep.subr.bf16.mxu0 0
        %457 = vmatpush1.bf16.msra.mxu0 0
        %458 = vmatprep.subr.bf16.mxu0 0
        %459 = vmatpush1.bf16.msra.mxu0 0
        %460 = vmatprep.subr.bf16.mxu0 0
        %461 = vmatpush1.bf16.msra.mxu0 0
        %462 = vmatprep.subr.bf16.mxu0 0
        %463 = vmatpush1.bf16.msra.mxu0 0
        %464 = vmatprep.subr.bf16.mxu0 0
        %465 = vmatpush1.bf16.msra.mxu0 0
        %466 = vmatprep.subr.bf16.mxu0 0
        %467 = vmatpush1.bf16.msra.mxu0 0
        %468 = vmatprep.subr.bf16.mxu0 0
        %469 = vmatpush1.bf16.msra.mxu0 0
        %470 = vmatprep.subr.bf16.mxu0 0
        %471 = vmatpush1.bf16.msra.mxu0 0
        %472 = vmatprep.subr.bf16.mxu0 0
        %473 = vmatpush1.bf16.msra.mxu0 0
        %474 = vmatprep.subr.bf16.mxu0 0
        %475 = vmatpush1.bf16.msra.mxu0 0
        %476 = vmatprep.subr.bf16.mxu0 0
        %477 = vmatpush1.bf16.msra.mxu0 0
        %478 = vmatprep.subr.bf16.mxu0 0
        %479 = vmatpush1.bf16.msra.mxu0 0
        %480 = vmatprep.mubr.bf16.mxu0 0
        %481 = vmatmul.mubr.bf16.gmra.mrb[0].mxu0 %v372
        %v482 = vpop.f32.mrb[0].mxu0
        %v483 = vadd.f32 0.0, %v482
        %v484 = vpop.f32.mrb[0].mxu0
        %v485 = vpop.f32.mrb[0].mxu0
        %v486 = vadd.f32 0.0, %v485
        %v487 = vpop.f32.mrb[0].mxu0
        %488 = vmatprep.mubr.bf16.mxu0 0
        %489 = vmatmul.mubr.bf16.gmra.mrb[0].mxu0 %v375
        %v490 = vpop.f32.mrb[0].mxu0
        %v491 = vadd.f32 0.0, %v490
        %v492 = vpop.f32.mrb[0].mxu0
        %v493 = vpop.f32.mrb[0].mxu0
        %v494 = vadd.f32 0.0, %v493
        %v495 = vpop.f32.mrb[0].mxu0
        %496 = vmatprep.mubr.bf16.mxu0 0
        %497 = vmatmul.mubr.bf16.gmra.mrb[0].mxu0 %v378
        %v498 = vpop.f32.mrb[0].mxu0
        %v499 = vadd.f32 0.0, %v498
        %v500 = vpop.f32.mrb[0].mxu0
        %v501 = vpop.f32.mrb[0].mxu0
        %v502 = vadd.f32 0.0, %v501
        %v503 = vpop.f32.mrb[0].mxu0
        %504 = vmatprep.mubr.bf16.mxu0 0
        %505 = vmatmul.mubr.bf16.gmra.mrb[0].mxu0 %v381
        %v506 = vpop.f32.mrb[0].mxu0
        %v507 = vadd.f32 0.0, %v506
        %v508 = vpop.f32.mrb[0].mxu0
        %v509 = vpop.f32.mrb[0].mxu0
        %v510 = vadd.f32 0.0, %v509
        %v511 = vpop.f32.mrb[0].mxu0
        %512 = vdwg.mxu0
        %513 = vmatprep.subr.bf16.mxu0 0
        %514 = vmatpush1.bf16.msra.mxu0 %v342
        %515 = vmatprep.subr.bf16.mxu0 0
        %516 = vmatpush1.bf16.msra.mxu0 %v343
        %517 = vmatprep.subr.bf16.mxu0 0
        %518 = vmatpush1.bf16.msra.mxu0 %v344
        %519 = vmatprep.subr.bf16.mxu0 0
        %520 = vmatpush1.bf16.msra.mxu0 %v345
        %521 = vmatprep.subr.bf16.mxu0 0
        %522 = vmatpush1.bf16.msra.mxu0 0
        %523 = vmatprep.subr.bf16.mxu0 0
        %524 = vmatpush1.bf16.msra.mxu0 0
        %525 = vmatprep.subr.bf16.mxu0 0
        %526 = vmatpush1.bf16.msra.mxu0 0
        %527 = vmatprep.subr.bf16.mxu0 0
        %528 = vmatpush1.bf16.msra.mxu0 0
        %529 = vmatprep.subr.bf16.mxu0 0
        %530 = vmatpush1.bf16.msra.mxu0 0
        %531 = vmatprep.subr.bf16.mxu0 0
        %532 = vmatpush1.bf16.msra.mxu0 0
        %533 = vmatprep.subr.bf16.mxu0 0
        %534 = vmatpush1.bf16.msra.mxu0 0
        %535 = vmatprep.subr.bf16.mxu0 0
        %536 = vmatpush1.bf16.msra.mxu0 0
        %537 = vmatprep.subr.bf16.mxu0 0
        %538 = vmatpush1.bf16.msra.mxu0 0
        %539 = vmatprep.subr.bf16.mxu0 0
        %540 = vmatpush1.bf16.msra.mxu0 0
        %541 = vmatprep.subr.bf16.mxu0 0
        %542 = vmatpush1.bf16.msra.mxu0 0
        %543 = vmatprep.subr.bf16.mxu0 0
        %544 = vmatpush1.bf16.msra.mxu0 0
        %545 = vmatprep.mubr.bf16.mxu0 0
        %546 = vmatmul.mubr.bf16.gmra.mrb[0].mxu0 %v372
        %v547 = vpop.f32.mrb[0].mxu0
        %v548 = vadd.f32 0.0, %v547
        %v549 = vpop.f32.mrb[0].mxu0
        %v550 = vpop.f32.mrb[0].mxu0
        %v551 = vadd.f32 0.0, %v550
        %v552 = vpop.f32.mrb[0].mxu0
        %553 = vmatprep.mubr.bf16.mxu0 0
        %554 = vmatmul.mubr.bf16.gmra.mrb[0].mxu0 %v375
        %v555 = vpop.f32.mrb[0].mxu0
        %v556 = vadd.f32 0.0, %v555
        %v557 = vpop.f32.mrb[0].mxu0
        %v558 = vpop.f32.mrb[0].mxu0
        %v559 = vadd.f32 0.0, %v558
        %v560 = vpop.f32.mrb[0].mxu0
        %561 = vmatprep.mubr.bf16.mxu0 0
        %562 = vmatmul.mubr.bf16.gmra.mrb[0].mxu0 %v378
        %v563 = vpop.f32.mrb[0].mxu0
        %v564 = vadd.f32 0.0, %v563
        %v565 = vpop.f32.mrb[0].mxu0
        %v566 = vpop.f32.mrb[0].mxu0
        %v567 = vadd.f32 0.0, %v566
        %v568 = vpop.f32.mrb[0].mxu0
        %569 = vmatprep.mubr.bf16.mxu0 0
        %570 = vmatmul.mubr.bf16.gmra.mrb[0].mxu0 %v381
        %v571 = vpop.f32.mrb[0].mxu0
        %v572 = vadd.f32 0.0, %v571
        %v573 = vpop.f32.mrb[0].mxu0
        %v574 = vpop.f32.mrb[0].mxu0
        %v575 = vadd.f32 0.0, %v574
        %v576 = vpop.f32.mrb[0].mxu0
        %577 = vdwg.mxu0
        %578 = vmatprep.subr.bf16.mxu0 0
        %579 = vmatpush1.bf16.msra.mxu0 %v346
        %580 = vmatprep.subr.bf16.mxu0 0
        %581 = vmatpush1.bf16.msra.mxu0 %v347
        %582 = vmatprep.subr.bf16.mxu0 0
        %583 = vmatpush1.bf16.msra.mxu0 %v348
        %584 = vmatprep.subr.bf16.mxu0 0
        %585 = vmatpush1.bf16.msra.mxu0 %v349
        %586 = vmatprep.subr.bf16.mxu0 0
        %587 = vmatpush1.bf16.msra.mxu0 0
        %588 = vmatprep.subr.bf16.mxu0 0
        %589 = vmatpush1.bf16.msra.mxu0 0
        %590 = vmatprep.subr.bf16.mxu0 0
        %591 = vmatpush1.bf16.msra.mxu0 0
        %592 = vmatprep.subr.bf16.mxu0 0
        %593 = vmatpush1.bf16.msra.mxu0 0
        %594 = vmatprep.subr.bf16.mxu0 0
        %595 = vmatpush1.bf16.msra.mxu0 0
        %596 = vmatprep.subr.bf16.mxu0 0
        %597 = vmatpush1.bf16.msra.mxu0 0
        %598 = vmatprep.subr.bf16.mxu0 0
        %599 = vmatpush1.bf16.msra.mxu0 0
        %600 = vmatprep.subr.bf16.mxu0 0
        %601 = vmatpush1.bf16.msra.mxu0 0
        %602 = vmatprep.subr.bf16.mxu0 0
        %603 = vmatpush1.bf16.msra.mxu0 0
        %604 = vmatprep.subr.bf16.mxu0 0
        %605 = vmatpush1.bf16.msra.mxu0 0
        %606 = vmatprep.subr.bf16.mxu0 0
        %607 = vmatpush1.bf16.msra.mxu0 0
        %608 = vmatprep.subr.bf16.mxu0 0
        %609 = vmatpush1.bf16.msra.mxu0 0
        %610 = vmatprep.mubr.bf16.mxu0 0
        %611 = vmatmul.mubr.bf16.gmra.mrb[0].mxu0 %v372
        %v612 = vpop.f32.mrb[0].mxu0
        %v613 = vadd.f32 0.0, %v612
        %v614 = vpop.f32.mrb[0].mxu0
        %v615 = vpop.f32.mrb[0].mxu0
        %v616 = vadd.f32 0.0, %v615
        %v617 = vpop.f32.mrb[0].mxu0
        %618 = vmatprep.mubr.bf16.mxu0 0
        %619 = vmatmul.mubr.bf16.gmra.mrb[0].mxu0 %v375
        %v620 = vpop.f32.mrb[0].mxu0
        %v621 = vadd.f32 0.0, %v620
        %v622 = vpop.f32.mrb[0].mxu0
        %v623 = vpop.f32.mrb[0].mxu0
        %v624 = vadd.f32 0.0, %v623
        %v625 = vpop.f32.mrb[0].mxu0
        %626 = vmatprep.mubr.bf16.mxu0 0
        %627 = vmatmul.mubr.bf16.gmra.mrb[0].mxu0 %v378
        %v628 = vpop.f32.mrb[0].mxu0
        %v629 = vadd.f32 0.0, %v628
        %v630 = vpop.f32.mrb[0].mxu0
        %v631 = vpop.f32.mrb[0].mxu0
        %v632 = vadd.f32 0.0, %v631
        %v633 = vpop.f32.mrb[0].mxu0
        %634 = vmatprep.mubr.bf16.mxu0 0
        %635 = vmatmul.mubr.bf16.gmra.mrb[0].mxu0 %v381
        %v636 = vpop.f32.mrb[0].mxu0
        %v637 = vadd.f32 0.0, %v636
        %v638 = vpop.f32.mrb[0].mxu0
        %v639 = vpop.f32.mrb[0].mxu0
        %v640 = vadd.f32 0.0, %v639
        %v641 = vpop.f32.mrb[0].mxu0
        %642 = vdwg.mxu0
        %v643 = vpack.c.bf16 %v421, %v418
        %v644 = vpack.c.bf16 %v429, %v426
        %v645 = vpack.c.bf16 %v437, %v434
        %v646 = vpack.c.bf16 %v445, %v442
        %v647 = vpack.c.bf16 %v486, %v483
        %v648 = vpack.c.bf16 %v494, %v491
        %v649 = vpack.c.bf16 %v502, %v499
        %v650 = vpack.c.bf16 %v510, %v507
        %v651 = vpack.c.bf16 %v551, %v548
        %v652 = vpack.c.bf16 %v559, %v556
        %v653 = vpack.c.bf16 %v567, %v564
        %v654 = vpack.c.bf16 %v575, %v572
        %v655 = vpack.c.bf16 %v616, %v613
        %v656 = vpack.c.bf16 %v624, %v621
        %v657 = vpack.c.bf16 %v632, %v629
        %v658 = vpack.c.bf16 %v640, %v637
        %v667 = vunpack.c.l.b16 %v326
        %v668 = vunpack.c.l.b16 %v327
        %v669 = vunpack.c.l.b16 %v328
        %v670 = vunpack.c.l.b16 %v329
        %v671 = vunpack.c.l.b16 %v330
        %v672 = vunpack.c.l.b16 %v331
        %v673 = vunpack.c.l.b16 %v332
        %v674 = vunpack.c.l.b16 %v333
        %v675 = vpack.c.b16 %v668, %v667
        %v676 = vpack.c.b16 %v670, %v669
        %v677 = vpack.c.b16 %v672, %v671
        %v678 = vpack.c.b16 %v674, %v673
        %v684 = vsel %vm370, %v643, 0
        %v687 = vsel %vm370, %v644, 0
        %v690 = vsel %vm370, %v645, 0
        %v693 = vsel %vm370, %v646, 0
        %v696 = vsel %vm370, %v647, 0
        %v699 = vsel %vm370, %v648, 0
        %v702 = vsel %vm370, %v649, 0
        %v705 = vsel %vm370, %v650, 0
        %v708 = vsel %vm370, %v651, 0
        %v711 = vsel %vm370, %v652, 0
        %v714 = vsel %vm370, %v653, 0
        %v717 = vsel %vm370, %v654, 0
        %v720 = vsel %vm370, %v655, 0
        %v723 = vsel %vm370, %v656, 0
        %v726 = vsel %vm370, %v657, 0
        %v729 = vsel %vm370, %v658, 0
        %731 = vmatprep.subr.bf16.mxu0 0
        %732 = vmatpush1.bf16.msra.mxu0 %v675
        %733 = vmatprep.subr.bf16.mxu0 0
        %734 = vmatpush1.bf16.msra.mxu0 %v676
        %735 = vmatprep.subr.bf16.mxu0 0
        %736 = vmatpush1.bf16.msra.mxu0 %v677
        %737 = vmatprep.subr.bf16.mxu0 0
        %738 = vmatpush1.bf16.msra.mxu0 %v678
        %739 = vmatprep.subr.bf16.mxu0 0
        %740 = vmatpush1.bf16.msra.mxu0 0
        %741 = vmatprep.subr.bf16.mxu0 0
        %742 = vmatpush1.bf16.msra.mxu0 0
        %743 = vmatprep.subr.bf16.mxu0 0
        %744 = vmatpush1.bf16.msra.mxu0 0
        %745 = vmatprep.subr.bf16.mxu0 0
        %746 = vmatpush1.bf16.msra.mxu0 0
        %747 = vmatprep.subr.bf16.mxu0 0
        %748 = vmatpush1.bf16.msra.mxu0 0
        %749 = vmatprep.subr.bf16.mxu0 0
        %750 = vmatpush1.bf16.msra.mxu0 0
        %751 = vmatprep.subr.bf16.mxu0 0
        %752 = vmatpush1.bf16.msra.mxu0 0
        %753 = vmatprep.subr.bf16.mxu0 0
        %754 = vmatpush1.bf16.msra.mxu0 0
        %755 = vmatprep.subr.bf16.mxu0 0
        %756 = vmatpush1.bf16.msra.mxu0 0
        %757 = vmatprep.subr.bf16.mxu0 0
        %758 = vmatpush1.bf16.msra.mxu0 0
        %759 = vmatprep.subr.bf16.mxu0 0
        %760 = vmatpush1.bf16.msra.mxu0 0
        %761 = vmatprep.subr.bf16.mxu0 0
        %762 = vmatpush1.bf16.msra.mxu0 0
        %763 = vmatprep.mubr.bf16.mxu0 0
        %764 = vmatmul.mubr.bf16.gmra.mrb[0].mxu0 %v684
        %v765 = vpop.f32.mrb[0].mxu0
        %v766 = vadd.f32 0.0, %v765
        %v767 = vpop.f32.mrb[0].mxu0
        %v768 = vpop.f32.mrb[0].mxu0
        %v769 = vadd.f32 0.0, %v768
        %v770 = vpop.f32.mrb[0].mxu0
        %771 = vmatprep.mubr.bf16.mxu0 0
        %772 = vmatmul.mubr.bf16.gmra.mrb[0].mxu0 %v687
        %v773 = vpop.f32.mrb[0].mxu0
        %v774 = vadd.f32 0.0, %v773
        %v775 = vpop.f32.mrb[0].mxu0
        %v776 = vpop.f32.mrb[0].mxu0
        %v777 = vadd.f32 0.0, %v776
        %v778 = vpop.f32.mrb[0].mxu0
        %779 = vmatprep.mubr.bf16.mxu0 0
        %780 = vmatmul.mubr.bf16.gmra.mrb[0].mxu0 %v690
        %v781 = vpop.f32.mrb[0].mxu0
        %v782 = vadd.f32 0.0, %v781
        %v783 = vpop.f32.mrb[0].mxu0
        %v784 = vpop.f32.mrb[0].mxu0
        %v785 = vadd.f32 0.0, %v784
        %v786 = vpop.f32.mrb[0].mxu0
        %787 = vmatprep.mubr.bf16.mxu0 0
        %788 = vmatmul.mubr.bf16.gmra.mrb[0].mxu0 %v693
        %v789 = vpop.f32.mrb[0].mxu0
        %v790 = vadd.f32 0.0, %v789
        %v791 = vpop.f32.mrb[0].mxu0
        %v792 = vpop.f32.mrb[0].mxu0
        %v793 = vadd.f32 0.0, %v792
        %v794 = vpop.f32.mrb[0].mxu0
        %795 = vmatprep.mubr.bf16.mxu0 0
        %796 = vmatmul.mubr.bf16.gmra.mrb[0].mxu0 %v696
        %v797 = vpop.f32.mrb[0].mxu0
        %v798 = vadd.f32 0.0, %v797
        %v799 = vpop.f32.mrb[0].mxu0
        %v800 = vpop.f32.mrb[0].mxu0
        %v801 = vadd.f32 0.0, %v800
        %v802 = vpop.f32.mrb[0].mxu0
        %803 = vmatprep.mubr.bf16.mxu0 0
        %804 = vmatmul.mubr.bf16.gmra.mrb[0].mxu0 %v699
        %v805 = vpop.f32.mrb[0].mxu0
        %v806 = vadd.f32 0.0, %v805
        %v807 = vpop.f32.mrb[0].mxu0
        %v808 = vpop.f32.mrb[0].mxu0
        %v809 = vadd.f32 0.0, %v808
        %v810 = vpop.f32.mrb[0].mxu0
        %811 = vmatprep.mubr.bf16.mxu0 0
        %812 = vmatmul.mubr.bf16.gmra.mrb[0].mxu0 %v702
        %v813 = vpop.f32.mrb[0].mxu0
        %v814 = vadd.f32 0.0, %v813
        %v815 = vpop.f32.mrb[0].mxu0
        %v816 = vpop.f32.mrb[0].mxu0
        %v817 = vadd.f32 0.0, %v816
        %v818 = vpop.f32.mrb[0].mxu0
        %819 = vmatprep.mubr.bf16.mxu0 0
        %820 = vmatmul.mubr.bf16.gmra.mrb[0].mxu0 %v705
        %v821 = vpop.f32.mrb[0].mxu0
        %v822 = vadd.f32 0.0, %v821
        %v823 = vpop.f32.mrb[0].mxu0
        %v824 = vpop.f32.mrb[0].mxu0
        %v825 = vadd.f32 0.0, %v824
        %v826 = vpop.f32.mrb[0].mxu0
        %827 = vmatprep.mubr.bf16.mxu0 0
        %828 = vmatmul.mubr.bf16.gmra.mrb[0].mxu0 %v708
        %v829 = vpop.f32.mrb[0].mxu0
        %v830 = vadd.f32 0.0, %v829
        %v831 = vpop.f32.mrb[0].mxu0
        %v832 = vpop.f32.mrb[0].mxu0
        %v833 = vadd.f32 0.0, %v832
        %v834 = vpop.f32.mrb[0].mxu0
        %835 = vmatprep.mubr.bf16.mxu0 0
        %836 = vmatmul.mubr.bf16.gmra.mrb[0].mxu0 %v711
        %v837 = vpop.f32.mrb[0].mxu0
        %v838 = vadd.f32 0.0, %v837
        %v839 = vpop.f32.mrb[0].mxu0
        %v840 = vpop.f32.mrb[0].mxu0
        %v841 = vadd.f32 0.0, %v840
        %v842 = vpop.f32.mrb[0].mxu0
        %843 = vmatprep.mubr.bf16.mxu0 0
        %844 = vmatmul.mubr.bf16.gmra.mrb[0].mxu0 %v714
        %v845 = vpop.f32.mrb[0].mxu0
        %v846 = vadd.f32 0.0, %v845
        %v847 = vpop.f32.mrb[0].mxu0
        %v848 = vpop.f32.mrb[0].mxu0
        %v849 = vadd.f32 0.0, %v848
        %v850 = vpop.f32.mrb[0].mxu0
        %851 = vmatprep.mubr.bf16.mxu0 0
        %852 = vmatmul.mubr.bf16.gmra.mrb[0].mxu0 %v717
        %v853 = vpop.f32.mrb[0].mxu0
        %v854 = vadd.f32 0.0, %v853
        %v855 = vpop.f32.mrb[0].mxu0
        %v856 = vpop.f32.mrb[0].mxu0
        %v857 = vadd.f32 0.0, %v856
        %v858 = vpop.f32.mrb[0].mxu0
        %859 = vmatprep.mubr.bf16.mxu0 0
        %860 = vmatmul.mubr.bf16.gmra.mrb[0].mxu0 %v720
        %v861 = vpop.f32.mrb[0].mxu0
        %v862 = vadd.f32 0.0, %v861
        %v863 = vpop.f32.mrb[0].mxu0
        %v864 = vpop.f32.mrb[0].mxu0
        %v865 = vadd.f32 0.0, %v864
        %v866 = vpop.f32.mrb[0].mxu0
        %867 = vmatprep.mubr.bf16.mxu0 0
        %868 = vmatmul.mubr.bf16.gmra.mrb[0].mxu0 %v723
        %v869 = vpop.f32.mrb[0].mxu0
        %v870 = vadd.f32 0.0, %v869
        %v871 = vpop.f32.mrb[0].mxu0
        %v872 = vpop.f32.mrb[0].mxu0
        %v873 = vadd.f32 0.0, %v872
        %v874 = vpop.f32.mrb[0].mxu0
        %875 = vmatprep.mubr.bf16.mxu0 0
        %876 = vmatmul.mubr.bf16.gmra.mrb[0].mxu0 %v726
        %v877 = vpop.f32.mrb[0].mxu0
        %v878 = vadd.f32 0.0, %v877
        %v879 = vpop.f32.mrb[0].mxu0
        %v880 = vpop.f32.mrb[0].mxu0
        %v881 = vadd.f32 0.0, %v880
        %v882 = vpop.f32.mrb[0].mxu0
        %883 = vmatprep.mubr.bf16.mxu0 0
        %884 = vmatmul.mubr.bf16.gmra.mrb[0].mxu0 %v729
        %v885 = vpop.f32.mrb[0].mxu0
        %v886 = vadd.f32 0.0, %v885
        %v887 = vpop.f32.mrb[0].mxu0
        %v888 = vpop.f32.mrb[0].mxu0
        %v889 = vadd.f32 0.0, %v888
        %v890 = vpop.f32.mrb[0].mxu0
        %891 = vdwg.mxu0
        %v892 = vmul.f32 %v766, %v254
        %v893 = vmul.f32 %v769, %v255
        %v894 = vmul.f32 %v774, %v256
        %v895 = vmul.f32 %v777, %v257
        %v896 = vmul.f32 %v782, %v258
        %v897 = vmul.f32 %v785, %v259
        %v898 = vmul.f32 %v790, %v260
        %v899 = vmul.f32 %v793, %v261
        %v900 = vmul.f32 %v798, %v262
        %v901 = vmul.f32 %v801, %v263
        %v902 = vmul.f32 %v806, %v264
        %v903 = vmul.f32 %v809, %v265
        %v904 = vmul.f32 %v814, %v266
        %v905 = vmul.f32 %v817, %v267
        %v906 = vmul.f32 %v822, %v268
        %v907 = vmul.f32 %v825, %v269
        %v908 = vmul.f32 %v830, %v270
        %v909 = vmul.f32 %v833, %v271
        %v910 = vmul.f32 %v838, %v272
        %v911 = vmul.f32 %v841, %v273
        %v912 = vmul.f32 %v846, %v274
        %v913 = vmul.f32 %v849, %v275
        %v914 = vmul.f32 %v854, %v276
        %v915 = vmul.f32 %v857, %v277
        %v916 = vmul.f32 %v862, %v278
        %v917 = vmul.f32 %v865, %v279
        %v918 = vmul.f32 %v870, %v280
        %v919 = vmul.f32 %v873, %v281
        %v920 = vmul.f32 %v878, %v282
        %v921 = vmul.f32 %v881, %v283
        %v922 = vmul.f32 %v886, %v284
        %v923 = vmul.f32 %v889, %v285
        %v924 = vadd.f32 %v892, %v286
        %v925 = vadd.f32 %v893, %v287
        %v926 = vadd.f32 %v894, %v288
        %v927 = vadd.f32 %v895, %v289
        %v928 = vadd.f32 %v896, %v290
        %v929 = vadd.f32 %v897, %v291
        %v930 = vadd.f32 %v898, %v292
        %v931 = vadd.f32 %v899, %v293
        %v932 = vadd.f32 %v900, %v294
        %v933 = vadd.f32 %v901, %v295
        %v934 = vadd.f32 %v902, %v296
        %v935 = vadd.f32 %v903, %v297
        %v936 = vadd.f32 %v904, %v298
        %v937 = vadd.f32 %v905, %v299
        %v938 = vadd.f32 %v906, %v300
        %v939 = vadd.f32 %v907, %v301
        %v940 = vadd.f32 %v908, %v302
        %v941 = vadd.f32 %v909, %v303
        %v942 = vadd.f32 %v910, %v304
        %v943 = vadd.f32 %v911, %v305
        %v944 = vadd.f32 %v912, %v306
        %v945 = vadd.f32 %v913, %v307
        %v946 = vadd.f32 %v914, %v308
        %v947 = vadd.f32 %v915, %v309
        %v948 = vadd.f32 %v916, %v310
        %v949 = vadd.f32 %v917, %v311
        %v950 = vadd.f32 %v918, %v312
        %v951 = vadd.f32 %v919, %v313
        %v952 = vadd.f32 %v920, %v314
        %v953 = vadd.f32 %v921, %v315
        %v954 = vadd.f32 %v922, %v316
        %v955 = vadd.f32 %v923, %v317
        %v956 = vpack.c.bf16 %v925, %v924
        %v957 = vpack.c.bf16 %v927, %v926
        %v958 = vpack.c.bf16 %v929, %v928
        %v959 = vpack.c.bf16 %v931, %v930
        %v960 = vpack.c.bf16 %v933, %v932
        %v961 = vpack.c.bf16 %v935, %v934
        %v962 = vpack.c.bf16 %v937, %v936
        %v963 = vpack.c.bf16 %v939, %v938
        %v964 = vpack.c.bf16 %v941, %v940
        %v965 = vpack.c.bf16 %v943, %v942
        %v966 = vpack.c.bf16 %v945, %v944
        %v967 = vpack.c.bf16 %v947, %v946
        %v968 = vpack.c.bf16 %v949, %v948
        %v969 = vpack.c.bf16 %v951, %v950
        %v970 = vpack.c.bf16 %v953, %v952
        %v971 = vpack.c.bf16 %v955, %v954
        %972 = vmatprep.subr.bf16.mxu0 0
        %973 = vmatpush1.bf16.msra.mxu0 %v956
        %974 = vmatprep.subr.bf16.mxu0 0
        %975 = vmatpush1.bf16.msra.mxu0 %v957
        %976 = vmatprep.subr.bf16.mxu0 0
        %977 = vmatpush1.bf16.msra.mxu0 %v958
        %978 = vmatprep.subr.bf16.mxu0 0
        %979 = vmatpush1.bf16.msra.mxu0 %v959
        %980 = vmatprep.subr.bf16.mxu0 0
        %981 = vmatpush1.bf16.msra.mxu0 0
        %982 = vmatprep.subr.bf16.mxu0 0
        %983 = vmatpush1.bf16.msra.mxu0 0
        %984 = vmatprep.subr.bf16.mxu0 0
        %985 = vmatpush1.bf16.msra.mxu0 0
        %986 = vmatprep.subr.bf16.mxu0 0
        %987 = vmatpush1.bf16.msra.mxu0 0
        %988 = vmatprep.subr.bf16.mxu0 0
        %989 = vmatpush1.bf16.msra.mxu0 0
        %990 = vmatprep.subr.bf16.mxu0 0
        %991 = vmatpush1.bf16.msra.mxu0 0
        %992 = vmatprep.subr.bf16.mxu0 0
        %993 = vmatpush1.bf16.msra.mxu0 0
        %994 = vmatprep.subr.bf16.mxu0 0
        %995 = vmatpush1.bf16.msra.mxu0 0
        %996 = vmatprep.subr.bf16.mxu0 0
        %997 = vmatpush1.bf16.msra.mxu0 0
        %998 = vmatprep.subr.bf16.mxu0 0
        %999 = vmatpush1.bf16.msra.mxu0 0
        %1000 = vmatprep.subr.bf16.mxu0 0
        %1001 = vmatpush1.bf16.msra.mxu0 0
        %1002 = vmatprep.subr.bf16.mxu0 0
        %1003 = vmatpush1.bf16.msra.mxu0 0
        %1004 = vmatprep.mubr.bf16.mxu0 0
        %1005 = vmatmul.mubr.bf16.gmra.mrb[0].mxu0 %v372
        %v1006 = vpop.f32.mrb[0].mxu0
        %v1007 = vadd.f32 0.0, %v1006
        %v1008 = vpop.f32.mrb[0].mxu0
        %v1009 = vpop.f32.mrb[0].mxu0
        %v1010 = vadd.f32 0.0, %v1009
        %v1011 = vpop.f32.mrb[0].mxu0
        %1012 = vmatprep.mubr.bf16.mxu0 0
        %1013 = vmatmul.mubr.bf16.gmra.mrb[0].mxu0 %v375
        %v1014 = vpop.f32.mrb[0].mxu0
        %v1015 = vadd.f32 0.0, %v1014
        %v1016 = vpop.f32.mrb[0].mxu0
        %v1017 = vpop.f32.mrb[0].mxu0
        %v1018 = vadd.f32 0.0, %v1017
        %v1019 = vpop.f32.mrb[0].mxu0
        %1020 = vmatprep.mubr.bf16.mxu0 0
        %1021 = vmatmul.mubr.bf16.gmra.mrb[0].mxu0 %v378
        %v1022 = vpop.f32.mrb[0].mxu0
        %v1023 = vadd.f32 0.0, %v1022
        %v1024 = vpop.f32.mrb[0].mxu0
        %v1025 = vpop.f32.mrb[0].mxu0
        %v1026 = vadd.f32 0.0, %v1025
        %v1027 = vpop.f32.mrb[0].mxu0
        %1028 = vmatprep.mubr.bf16.mxu0 0
        %1029 = vmatmul.mubr.bf16.gmra.mrb[0].mxu0 %v381
        %v1030 = vpop.f32.mrb[0].mxu0
        %v1031 = vadd.f32 0.0, %v1030
        %v1032 = vpop.f32.mrb[0].mxu0
        %v1033 = vpop.f32.mrb[0].mxu0
        %v1034 = vadd.f32 0.0, %v1033
        %v1035 = vpop.f32.mrb[0].mxu0
        %1036 = vdwg.mxu0
        %1037 = vmatprep.subr.bf16.mxu0 0
        %1038 = vmatpush1.bf16.msra.mxu0 %v960
        %1039 = vmatprep.subr.bf16.mxu0 0
        %1040 = vmatpush1.bf16.msra.mxu0 %v961
        %1041 = vmatprep.subr.bf16.mxu0 0
        %1042 = vmatpush1.bf16.msra.mxu0 %v962
        %1043 = vmatprep.subr.bf16.mxu0 0
        %1044 = vmatpush1.bf16.msra.mxu0 %v963
        %1045 = vmatprep.subr.bf16.mxu0 0
        %1046 = vmatpush1.bf16.msra.mxu0 0
        %1047 = vmatprep.subr.bf16.mxu0 0
        %1048 = vmatpush1.bf16.msra.mxu0 0
        %1049 = vmatprep.subr.bf16.mxu0 0
        %1050 = vmatpush1.bf16.msra.mxu0 0
        %1051 = vmatprep.subr.bf16.mxu0 0
        %1052 = vmatpush1.bf16.msra.mxu0 0
        %1053 = vmatprep.subr.bf16.mxu0 0
        %1054 = vmatpush1.bf16.msra.mxu0 0
        %1055 = vmatprep.subr.bf16.mxu0 0
        %1056 = vmatpush1.bf16.msra.mxu0 0
        %1057 = vmatprep.subr.bf16.mxu0 0
        %1058 = vmatpush1.bf16.msra.mxu0 0
        %1059 = vmatprep.subr.bf16.mxu0 0
        %1060 = vmatpush1.bf16.msra.mxu0 0
        %1061 = vmatprep.subr.bf16.mxu0 0
        %1062 = vmatpush1.bf16.msra.mxu0 0
        %1063 = vmatprep.subr.bf16.mxu0 0
        %1064 = vmatpush1.bf16.msra.mxu0 0
        %1065 = vmatprep.subr.bf16.mxu0 0
        %1066 = vmatpush1.bf16.msra.mxu0 0
        %1067 = vmatprep.subr.bf16.mxu0 0
        %1068 = vmatpush1.bf16.msra.mxu0 0
        %1069 = vmatprep.mubr.bf16.mxu0 0
        %1070 = vmatmul.mubr.bf16.gmra.mrb[0].mxu0 %v372
        %v1071 = vpop.f32.mrb[0].mxu0
        %v1072 = vadd.f32 0.0, %v1071
        %v1073 = vpop.f32.mrb[0].mxu0
        %v1074 = vpop.f32.mrb[0].mxu0
        %v1075 = vadd.f32 0.0, %v1074
        %v1076 = vpop.f32.mrb[0].mxu0
        %1077 = vmatprep.mubr.bf16.mxu0 0
        %1078 = vmatmul.mubr.bf16.gmra.mrb[0].mxu0 %v375
        %v1079 = vpop.f32.mrb[0].mxu0
        %v1080 = vadd.f32 0.0, %v1079
        %v1081 = vpop.f32.mrb[0].mxu0
        %v1082 = vpop.f32.mrb[0].mxu0
        %v1083 = vadd.f32 0.0, %v1082
        %v1084 = vpop.f32.mrb[0].mxu0
        %1085 = vmatprep.mubr.bf16.mxu0 0
        %1086 = vmatmul.mubr.bf16.gmra.mrb[0].mxu0 %v378
        %v1087 = vpop.f32.mrb[0].mxu0
        %v1088 = vadd.f32 0.0, %v1087
        %v1089 = vpop.f32.mrb[0].mxu0
        %v1090 = vpop.f32.mrb[0].mxu0
        %v1091 = vadd.f32 0.0, %v1090
        %v1092 = vpop.f32.mrb[0].mxu0
        %1093 = vmatprep.mubr.bf16.mxu0 0
        %1094 = vmatmul.mubr.bf16.gmra.mrb[0].mxu0 %v381
        %v1095 = vpop.f32.mrb[0].mxu0
        %v1096 = vadd.f32 0.0, %v1095
        %v1097 = vpop.f32.mrb[0].mxu0
        %v1098 = vpop.f32.mrb[0].mxu0
        %v1099 = vadd.f32 0.0, %v1098
        %v1100 = vpop.f32.mrb[0].mxu0
        %1101 = vdwg.mxu0
        %1102 = vmatprep.subr.bf16.mxu0 0
        %1103 = vmatpush1.bf16.msra.mxu0 %v964
        %1104 = vmatprep.subr.bf16.mxu0 0
        %1105 = vmatpush1.bf16.msra.mxu0 %v965
        %1106 = vmatprep.subr.bf16.mxu0 0
        %1107 = vmatpush1.bf16.msra.mxu0 %v966
        %1108 = vmatprep.subr.bf16.mxu0 0
        %1109 = vmatpush1.bf16.msra.mxu0 %v967
        %1110 = vmatprep.subr.bf16.mxu0 0
        %1111 = vmatpush1.bf16.msra.mxu0 0
        %1112 = vmatprep.subr.bf16.mxu0 0
        %1113 = vmatpush1.bf16.msra.mxu0 0
        %1114 = vmatprep.subr.bf16.mxu0 0
        %1115 = vmatpush1.bf16.msra.mxu0 0
        %1116 = vmatprep.subr.bf16.mxu0 0
        %1117 = vmatpush1.bf16.msra.mxu0 0
        %1118 = vmatprep.subr.bf16.mxu0 0
        %1119 = vmatpush1.bf16.msra.mxu0 0
        %1120 = vmatprep.subr.bf16.mxu0 0
        %1121 = vmatpush1.bf16.msra.mxu0 0
        %1122 = vmatprep.subr.bf16.mxu0 0
        %1123 = vmatpush1.bf16.msra.mxu0 0
        %1124 = vmatprep.subr.bf16.mxu0 0
        %1125 = vmatpush1.bf16.msra.mxu0 0
        %1126 = vmatprep.subr.bf16.mxu0 0
        %1127 = vmatpush1.bf16.msra.mxu0 0
        %1128 = vmatprep.subr.bf16.mxu0 0
        %1129 = vmatpush1.bf16.msra.mxu0 0
        %1130 = vmatprep.subr.bf16.mxu0 0
        %1131 = vmatpush1.bf16.msra.mxu0 0
        %1132 = vmatprep.subr.bf16.mxu0 0
        %1133 = vmatpush1.bf16.msra.mxu0 0
        %1134 = vmatprep.mubr.bf16.mxu0 0
        %1135 = vmatmul.mubr.bf16.gmra.mrb[0].mxu0 %v372
        %v1136 = vpop.f32.mrb[0].mxu0
        %v1137 = vadd.f32 0.0, %v1136
        %v1138 = vpop.f32.mrb[0].mxu0
        %v1139 = vpop.f32.mrb[0].mxu0
        %v1140 = vadd.f32 0.0, %v1139
        %v1141 = vpop.f32.mrb[0].mxu0
        %1142 = vmatprep.mubr.bf16.mxu0 0
        %1143 = vmatmul.mubr.bf16.gmra.mrb[0].mxu0 %v375
        %v1144 = vpop.f32.mrb[0].mxu0
        %v1145 = vadd.f32 0.0, %v1144
        %v1146 = vpop.f32.mrb[0].mxu0
        %v1147 = vpop.f32.mrb[0].mxu0
        %v1148 = vadd.f32 0.0, %v1147
        %v1149 = vpop.f32.mrb[0].mxu0
        %1150 = vmatprep.mubr.bf16.mxu0 0
        %1151 = vmatmul.mubr.bf16.gmra.mrb[0].mxu0 %v378
        %v1152 = vpop.f32.mrb[0].mxu0
        %v1153 = vadd.f32 0.0, %v1152
        %v1154 = vpop.f32.mrb[0].mxu0
        %v1155 = vpop.f32.mrb[0].mxu0
        %v1156 = vadd.f32 0.0, %v1155
        %v1157 = vpop.f32.mrb[0].mxu0
        %1158 = vmatprep.mubr.bf16.mxu0 0
        %1159 = vmatmul.mubr.bf16.gmra.mrb[0].mxu0 %v381
        %v1160 = vpop.f32.mrb[0].mxu0
        %v1161 = vadd.f32 0.0, %v1160
        %v1162 = vpop.f32.mrb[0].mxu0
        %v1163 = vpop.f32.mrb[0].mxu0
        %v1164 = vadd.f32 0.0, %v1163
        %v1165 = vpop.f32.mrb[0].mxu0
        %1166 = vdwg.mxu0
        %1167 = vmatprep.subr.bf16.mxu0 0
        %1168 = vmatpush1.bf16.msra.mxu0 %v968
        %1169 = vmatprep.subr.bf16.mxu0 0
        %1170 = vmatpush1.bf16.msra.mxu0 %v969
        %1171 = vmatprep.subr.bf16.mxu0 0
        %1172 = vmatpush1.bf16.msra.mxu0 %v970
        %1173 = vmatprep.subr.bf16.mxu0 0
        %1174 = vmatpush1.bf16.msra.mxu0 %v971
        %1175 = vmatprep.subr.bf16.mxu0 0
        %1176 = vmatpush1.bf16.msra.mxu0 0
        %1177 = vmatprep.subr.bf16.mxu0 0
        %1178 = vmatpush1.bf16.msra.mxu0 0
        %1179 = vmatprep.subr.bf16.mxu0 0
        %1180 = vmatpush1.bf16.msra.mxu0 0
        %1181 = vmatprep.subr.bf16.mxu0 0
        %1182 = vmatpush1.bf16.msra.mxu0 0
        %1183 = vmatprep.subr.bf16.mxu0 0
        %1184 = vmatpush1.bf16.msra.mxu0 0
        %1185 = vmatprep.subr.bf16.mxu0 0
        %1186 = vmatpush1.bf16.msra.mxu0 0
        %1187 = vmatprep.subr.bf16.mxu0 0
        %1188 = vmatpush1.bf16.msra.mxu0 0
        %1189 = vmatprep.subr.bf16.mxu0 0
        %1190 = vmatpush1.bf16.msra.mxu0 0
        %1191 = vmatprep.subr.bf16.mxu0 0
        %1192 = vmatpush1.bf16.msra.mxu0 0
        %1193 = vmatprep.subr.bf16.mxu0 0
        %1194 = vmatpush1.bf16.msra.mxu0 0
        %1195 = vmatprep.subr.bf16.mxu0 0
        %1196 = vmatpush1.bf16.msra.mxu0 0
        %1197 = vmatprep.subr.bf16.mxu0 0
        %1198 = vmatpush1.bf16.msra.mxu0 0
        %1199 = vmatprep.mubr.bf16.mxu0 0
        %1200 = vmatmul.mubr.bf16.gmra.mrb[0].mxu0 %v372
        %v1201 = vpop.f32.mrb[0].mxu0
        %v1202 = vadd.f32 0.0, %v1201
        %v1203 = vpop.f32.mrb[0].mxu0
        %v1204 = vpop.f32.mrb[0].mxu0
        %v1205 = vadd.f32 0.0, %v1204
        %v1206 = vpop.f32.mrb[0].mxu0
        %1207 = vmatprep.mubr.bf16.mxu0 0
        %1208 = vmatmul.mubr.bf16.gmra.mrb[0].mxu0 %v375
        %v1209 = vpop.f32.mrb[0].mxu0
        %v1210 = vadd.f32 0.0, %v1209
        %v1211 = vpop.f32.mrb[0].mxu0
        %v1212 = vpop.f32.mrb[0].mxu0
        %v1213 = vadd.f32 0.0, %v1212
        %v1214 = vpop.f32.mrb[0].mxu0
        %1215 = vmatprep.mubr.bf16.mxu0 0
        %1216 = vmatmul.mubr.bf16.gmra.mrb[0].mxu0 %v378
        %v1217 = vpop.f32.mrb[0].mxu0
        %v1218 = vadd.f32 0.0, %v1217
        %v1219 = vpop.f32.mrb[0].mxu0
        %v1220 = vpop.f32.mrb[0].mxu0
        %v1221 = vadd.f32 0.0, %v1220
        %v1222 = vpop.f32.mrb[0].mxu0
        %1223 = vmatprep.mubr.bf16.mxu0 0
        %1224 = vmatmul.mubr.bf16.gmra.mrb[0].mxu0 %v381
        %v1225 = vpop.f32.mrb[0].mxu0
        %v1226 = vadd.f32 0.0, %v1225
        %v1227 = vpop.f32.mrb[0].mxu0
        %v1228 = vpop.f32.mrb[0].mxu0
        %v1229 = vadd.f32 0.0, %v1228
        %v1230 = vpop.f32.mrb[0].mxu0
        %1231 = vdwg.mxu0
        %v1232 = vpack.c.bf16 %v1010, %v1007
        %v1233 = vpack.c.bf16 %v1018, %v1015
        %v1234 = vpack.c.bf16 %v1026, %v1023
        %v1235 = vpack.c.bf16 %v1034, %v1031
        %v1236 = vpack.c.bf16 %v1075, %v1072
        %v1237 = vpack.c.bf16 %v1083, %v1080
        %v1238 = vpack.c.bf16 %v1091, %v1088
        %v1239 = vpack.c.bf16 %v1099, %v1096
        %v1240 = vpack.c.bf16 %v1140, %v1137
        %v1241 = vpack.c.bf16 %v1148, %v1145
        %v1242 = vpack.c.bf16 %v1156, %v1153
        %v1243 = vpack.c.bf16 %v1164, %v1161
        %v1244 = vpack.c.bf16 %v1205, %v1202
        %v1245 = vpack.c.bf16 %v1213, %v1210
        %v1246 = vpack.c.bf16 %v1221, %v1218
        %v1247 = vpack.c.bf16 %v1229, %v1226
        %v1249 = vsel %vm370, %v1232, 0
        %v1252 = vsel %vm370, %v1233, 0
        %v1255 = vsel %vm370, %v1234, 0
        %v1258 = vsel %vm370, %v1235, 0
        %v1261 = vsel %vm370, %v1236, 0
        %v1264 = vsel %vm370, %v1237, 0
        %v1267 = vsel %vm370, %v1238, 0
        %v1270 = vsel %vm370, %v1239, 0
        %v1273 = vsel %vm370, %v1240, 0
        %v1276 = vsel %vm370, %v1241, 0
        %v1279 = vsel %vm370, %v1242, 0
        %v1282 = vsel %vm370, %v1243, 0
        %v1285 = vsel %vm370, %v1244, 0
        %v1288 = vsel %vm370, %v1245, 0
        %v1291 = vsel %vm370, %v1246, 0
        %v1294 = vsel %vm370, %v1247, 0
        %1296 = vmatprep.subr.bf16.mxu0 0
        %1297 = vmatpush1.bf16.msra.mxu0 %v675
        %1298 = vmatprep.subr.bf16.mxu0 0
        %1299 = vmatpush1.bf16.msra.mxu0 %v676
        %1300 = vmatprep.subr.bf16.mxu0 0
        %1301 = vmatpush1.bf16.msra.mxu0 %v677
        %1302 = vmatprep.subr.bf16.mxu0 0
        %1303 = vmatpush1.bf16.msra.mxu0 %v678
        %1304 = vmatprep.subr.bf16.mxu0 0
        %1305 = vmatpush1.bf16.msra.mxu0 0
        %1306 = vmatprep.subr.bf16.mxu0 0
        %1307 = vmatpush1.bf16.msra.mxu0 0
        %1308 = vmatprep.subr.bf16.mxu0 0
        %1309 = vmatpush1.bf16.msra.mxu0 0
        %1310 = vmatprep.subr.bf16.mxu0 0
        %1311 = vmatpush1.bf16.msra.mxu0 0
        %1312 = vmatprep.subr.bf16.mxu0 0
        %1313 = vmatpush1.bf16.msra.mxu0 0
        %1314 = vmatprep.subr.bf16.mxu0 0
        %1315 = vmatpush1.bf16.msra.mxu0 0
        %1316 = vmatprep.subr.bf16.mxu0 0
        %1317 = vmatpush1.bf16.msra.mxu0 0
        %1318 = vmatprep.subr.bf16.mxu0 0
        %1319 = vmatpush1.bf16.msra.mxu0 0
        %1320 = vmatprep.subr.bf16.mxu0 0
        %1321 = vmatpush1.bf16.msra.mxu0 0
        %1322 = vmatprep.subr.bf16.mxu0 0
        %1323 = vmatpush1.bf16.msra.mxu0 0
        %1324 = vmatprep.subr.bf16.mxu0 0
        %1325 = vmatpush1.bf16.msra.mxu0 0
        %1326 = vmatprep.subr.bf16.mxu0 0
        %1327 = vmatpush1.bf16.msra.mxu0 0
        %1328 = vmatprep.mubr.bf16.mxu0 0
        %1329 = vmatmul.mubr.bf16.gmra.mrb[0].mxu0 %v1249
        %v1330 = vpop.f32.mrb[0].mxu0
        %v1331 = vadd.f32 0.0, %v1330
        %v1332 = vpop.f32.mrb[0].mxu0
        %v1333 = vpop.f32.mrb[0].mxu0
        %v1334 = vadd.f32 0.0, %v1333
        %v1335 = vpop.f32.mrb[0].mxu0
        %1336 = vmatprep.mubr.bf16.mxu0 0
        %1337 = vmatmul.mubr.bf16.gmra.mrb[0].mxu0 %v1252
        %v1338 = vpop.f32.mrb[0].mxu0
        %v1339 = vadd.f32 0.0, %v1338
        %v1340 = vpop.f32.mrb[0].mxu0
        %v1341 = vpop.f32.mrb[0].mxu0
        %v1342 = vadd.f32 0.0, %v1341
        %v1343 = vpop.f32.mrb[0].mxu0
        %1344 = vmatprep.mubr.bf16.mxu0 0
        %1345 = vmatmul.mubr.bf16.gmra.mrb[0].mxu0 %v1255
        %v1346 = vpop.f32.mrb[0].mxu0
        %v1347 = vadd.f32 0.0, %v1346
        %v1348 = vpop.f32.mrb[0].mxu0
        %v1349 = vpop.f32.mrb[0].mxu0
        %v1350 = vadd.f32 0.0, %v1349
        %v1351 = vpop.f32.mrb[0].mxu0
        %1352 = vmatprep.mubr.bf16.mxu0 0
        %1353 = vmatmul.mubr.bf16.gmra.mrb[0].mxu0 %v1258
        %v1354 = vpop.f32.mrb[0].mxu0
        %v1355 = vadd.f32 0.0, %v1354
        %v1356 = vpop.f32.mrb[0].mxu0
        %v1357 = vpop.f32.mrb[0].mxu0
        %v1358 = vadd.f32 0.0, %v1357
        %v1359 = vpop.f32.mrb[0].mxu0
        %1360 = vmatprep.mubr.bf16.mxu0 0
        %1361 = vmatmul.mubr.bf16.gmra.mrb[0].mxu0 %v1261
        %v1362 = vpop.f32.mrb[0].mxu0
        %v1363 = vadd.f32 0.0, %v1362
        %v1364 = vpop.f32.mrb[0].mxu0
        %v1365 = vpop.f32.mrb[0].mxu0
        %v1366 = vadd.f32 0.0, %v1365
        %v1367 = vpop.f32.mrb[0].mxu0
        %1368 = vmatprep.mubr.bf16.mxu0 0
        %1369 = vmatmul.mubr.bf16.gmra.mrb[0].mxu0 %v1264
        %v1370 = vpop.f32.mrb[0].mxu0
        %v1371 = vadd.f32 0.0, %v1370
        %v1372 = vpop.f32.mrb[0].mxu0
        %v1373 = vpop.f32.mrb[0].mxu0
        %v1374 = vadd.f32 0.0, %v1373
        %v1375 = vpop.f32.mrb[0].mxu0
        %1376 = vmatprep.mubr.bf16.mxu0 0
        %1377 = vmatmul.mubr.bf16.gmra.mrb[0].mxu0 %v1267
        %v1378 = vpop.f32.mrb[0].mxu0
        %v1379 = vadd.f32 0.0, %v1378
        %v1380 = vpop.f32.mrb[0].mxu0
        %v1381 = vpop.f32.mrb[0].mxu0
        %v1382 = vadd.f32 0.0, %v1381
        %v1383 = vpop.f32.mrb[0].mxu0
        %1384 = vmatprep.mubr.bf16.mxu0 0
        %1385 = vmatmul.mubr.bf16.gmra.mrb[0].mxu0 %v1270
        %v1386 = vpop.f32.mrb[0].mxu0
        %v1387 = vadd.f32 0.0, %v1386
        %v1388 = vpop.f32.mrb[0].mxu0
        %v1389 = vpop.f32.mrb[0].mxu0
        %v1390 = vadd.f32 0.0, %v1389
        %v1391 = vpop.f32.mrb[0].mxu0
        %1392 = vmatprep.mubr.bf16.mxu0 0
        %1393 = vmatmul.mubr.bf16.gmra.mrb[0].mxu0 %v1273
        %v1394 = vpop.f32.mrb[0].mxu0
        %v1395 = vadd.f32 0.0, %v1394
        %v1396 = vpop.f32.mrb[0].mxu0
        %v1397 = vpop.f32.mrb[0].mxu0
        %v1398 = vadd.f32 0.0, %v1397
        %v1399 = vpop.f32.mrb[0].mxu0
        %1400 = vmatprep.mubr.bf16.mxu0 0
        %1401 = vmatmul.mubr.bf16.gmra.mrb[0].mxu0 %v1276
        %v1402 = vpop.f32.mrb[0].mxu0
        %v1403 = vadd.f32 0.0, %v1402
        %v1404 = vpop.f32.mrb[0].mxu0
        %v1405 = vpop.f32.mrb[0].mxu0
        %v1406 = vadd.f32 0.0, %v1405
        %v1407 = vpop.f32.mrb[0].mxu0
        %1408 = vmatprep.mubr.bf16.mxu0 0
        %1409 = vmatmul.mubr.bf16.gmra.mrb[0].mxu0 %v1279
        %v1410 = vpop.f32.mrb[0].mxu0
        %v1411 = vadd.f32 0.0, %v1410
        %v1412 = vpop.f32.mrb[0].mxu0
        %v1413 = vpop.f32.mrb[0].mxu0
        %v1414 = vadd.f32 0.0, %v1413
        %v1415 = vpop.f32.mrb[0].mxu0
        %1416 = vmatprep.mubr.bf16.mxu0 0
        %1417 = vmatmul.mubr.bf16.gmra.mrb[0].mxu0 %v1282
        %v1418 = vpop.f32.mrb[0].mxu0
        %v1419 = vadd.f32 0.0, %v1418
        %v1420 = vpop.f32.mrb[0].mxu0
        %v1421 = vpop.f32.mrb[0].mxu0
        %v1422 = vadd.f32 0.0, %v1421
        %v1423 = vpop.f32.mrb[0].mxu0
        %1424 = vmatprep.mubr.bf16.mxu0 0
        %1425 = vmatmul.mubr.bf16.gmra.mrb[0].mxu0 %v1285
        %v1426 = vpop.f32.mrb[0].mxu0
        %v1427 = vadd.f32 0.0, %v1426
        %v1428 = vpop.f32.mrb[0].mxu0
        %v1429 = vpop.f32.mrb[0].mxu0
        %v1430 = vadd.f32 0.0, %v1429
        %v1431 = vpop.f32.mrb[0].mxu0
        %1432 = vmatprep.mubr.bf16.mxu0 0
        %1433 = vmatmul.mubr.bf16.gmra.mrb[0].mxu0 %v1288
        %v1434 = vpop.f32.mrb[0].mxu0
        %v1435 = vadd.f32 0.0, %v1434
        %v1436 = vpop.f32.mrb[0].mxu0
        %v1437 = vpop.f32.mrb[0].mxu0
        %v1438 = vadd.f32 0.0, %v1437
        %v1439 = vpop.f32.mrb[0].mxu0
        %1440 = vmatprep.mubr.bf16.mxu0 0
        %1441 = vmatmul.mubr.bf16.gmra.mrb[0].mxu0 %v1291
        %v1442 = vpop.f32.mrb[0].mxu0
        %v1443 = vadd.f32 0.0, %v1442
        %v1444 = vpop.f32.mrb[0].mxu0
        %v1445 = vpop.f32.mrb[0].mxu0
        %v1446 = vadd.f32 0.0, %v1445
        %v1447 = vpop.f32.mrb[0].mxu0
        %1448 = vmatprep.mubr.bf16.mxu0 0
        %1449 = vmatmul.mubr.bf16.gmra.mrb[0].mxu0 %v1294
        %v1450 = vpop.f32.mrb[0].mxu0
        %v1451 = vadd.f32 0.0, %v1450
        %v1452 = vpop.f32.mrb[0].mxu0
        %v1453 = vpop.f32.mrb[0].mxu0
        %v1454 = vadd.f32 0.0, %v1453
        %v1455 = vpop.f32.mrb[0].mxu0
        %1456 = vdwg.mxu0
        %v1457 = vmul.f32 %v1331, %v254
        %v1458 = vmul.f32 %v1334, %v255
        %v1459 = vmul.f32 %v1339, %v256
        %v1460 = vmul.f32 %v1342, %v257
        %v1461 = vmul.f32 %v1347, %v258
        %v1462 = vmul.f32 %v1350, %v259
        %v1463 = vmul.f32 %v1355, %v260
        %v1464 = vmul.f32 %v1358, %v261
        %v1465 = vmul.f32 %v1363, %v262
        %v1466 = vmul.f32 %v1366, %v263
        %v1467 = vmul.f32 %v1371, %v264
        %v1468 = vmul.f32 %v1374, %v265
        %v1469 = vmul.f32 %v1379, %v266
        %v1470 = vmul.f32 %v1382, %v267
        %v1471 = vmul.f32 %v1387, %v268
        %v1472 = vmul.f32 %v1390, %v269
        %v1473 = vmul.f32 %v1395, %v270
        %v1474 = vmul.f32 %v1398, %v271
        %v1475 = vmul.f32 %v1403, %v272
        %v1476 = vmul.f32 %v1406, %v273
        %v1477 = vmul.f32 %v1411, %v274
        %v1478 = vmul.f32 %v1414, %v275
        %v1479 = vmul.f32 %v1419, %v276
        %v1480 = vmul.f32 %v1422, %v277
        %v1481 = vmul.f32 %v1427, %v278
        %v1482 = vmul.f32 %v1430, %v279
        %v1483 = vmul.f32 %v1435, %v280
        %v1484 = vmul.f32 %v1438, %v281
        %v1485 = vmul.f32 %v1443, %v282
        %v1486 = vmul.f32 %v1446, %v283
        %v1487 = vmul.f32 %v1451, %v284
        %v1488 = vmul.f32 %v1454, %v285
        %v1489 = vadd.f32 %v1457, %v286
        %v1490 = vadd.f32 %v1458, %v287
        %v1491 = vadd.f32 %v1459, %v288
        %v1492 = vadd.f32 %v1460, %v289
        %v1493 = vadd.f32 %v1461, %v290
        %v1494 = vadd.f32 %v1462, %v291
        %v1495 = vadd.f32 %v1463, %v292
        %v1496 = vadd.f32 %v1464, %v293
        %v1497 = vadd.f32 %v1465, %v294
        %v1498 = vadd.f32 %v1466, %v295
        %v1499 = vadd.f32 %v1467, %v296
        %v1500 = vadd.f32 %v1468, %v297
        %v1501 = vadd.f32 %v1469, %v298
        %v1502 = vadd.f32 %v1470, %v299
        %v1503 = vadd.f32 %v1471, %v300
        %v1504 = vadd.f32 %v1472, %v301
        %v1505 = vadd.f32 %v1473, %v302
        %v1506 = vadd.f32 %v1474, %v303
        %v1507 = vadd.f32 %v1475, %v304
        %v1508 = vadd.f32 %v1476, %v305
        %v1509 = vadd.f32 %v1477, %v306
        %v1510 = vadd.f32 %v1478, %v307
        %v1511 = vadd.f32 %v1479, %v308
        %v1512 = vadd.f32 %v1480, %v309
        %v1513 = vadd.f32 %v1481, %v310
        %v1514 = vadd.f32 %v1482, %v311
        %v1515 = vadd.f32 %v1483, %v312
        %v1516 = vadd.f32 %v1484, %v313
        %v1517 = vadd.f32 %v1485, %v314
        %v1518 = vadd.f32 %v1486, %v315
        %v1519 = vadd.f32 %v1487, %v316
        %v1520 = vadd.f32 %v1488, %v317
        %v1521 = vpack.c.bf16 %v1490, %v1489
        %v1522 = vpack.c.bf16 %v1492, %v1491
        %v1523 = vpack.c.bf16 %v1494, %v1493
        %v1524 = vpack.c.bf16 %v1496, %v1495
        %v1525 = vpack.c.bf16 %v1498, %v1497
        %v1526 = vpack.c.bf16 %v1500, %v1499
        %v1527 = vpack.c.bf16 %v1502, %v1501
        %v1528 = vpack.c.bf16 %v1504, %v1503
        %v1529 = vpack.c.bf16 %v1506, %v1505
        %v1530 = vpack.c.bf16 %v1508, %v1507
        %v1531 = vpack.c.bf16 %v1510, %v1509
        %v1532 = vpack.c.bf16 %v1512, %v1511
        %v1533 = vpack.c.bf16 %v1514, %v1513
        %v1534 = vpack.c.bf16 %v1516, %v1515
        %v1535 = vpack.c.bf16 %v1518, %v1517
        %v1536 = vpack.c.bf16 %v1520, %v1519
        %1537 = vmatprep.subr.bf16.mxu0 0
        %1538 = vmatpush1.bf16.msra.mxu0 %v1521
        %1539 = vmatprep.subr.bf16.mxu0 0
        %1540 = vmatpush1.bf16.msra.mxu0 %v1522
        %1541 = vmatprep.subr.bf16.mxu0 0
        %1542 = vmatpush1.bf16.msra.mxu0 %v1523
        %1543 = vmatprep.subr.bf16.mxu0 0
        %1544 = vmatpush1.bf16.msra.mxu0 %v1524
        %1545 = vmatprep.subr.bf16.mxu0 0
        %1546 = vmatpush1.bf16.msra.mxu0 0
        %1547 = vmatprep.subr.bf16.mxu0 0
        %1548 = vmatpush1.bf16.msra.mxu0 0
        %1549 = vmatprep.subr.bf16.mxu0 0
        %1550 = vmatpush1.bf16.msra.mxu0 0
        %1551 = vmatprep.subr.bf16.mxu0 0
        %1552 = vmatpush1.bf16.msra.mxu0 0
        %1553 = vmatprep.subr.bf16.mxu0 0
        %1554 = vmatpush1.bf16.msra.mxu0 0
        %1555 = vmatprep.subr.bf16.mxu0 0
        %1556 = vmatpush1.bf16.msra.mxu0 0
        %1557 = vmatprep.subr.bf16.mxu0 0
        %1558 = vmatpush1.bf16.msra.mxu0 0
        %1559 = vmatprep.subr.bf16.mxu0 0
        %1560 = vmatpush1.bf16.msra.mxu0 0
        %1561 = vmatprep.subr.bf16.mxu0 0
        %1562 = vmatpush1.bf16.msra.mxu0 0
        %1563 = vmatprep.subr.bf16.mxu0 0
        %1564 = vmatpush1.bf16.msra.mxu0 0
        %1565 = vmatprep.subr.bf16.mxu0 0
        %1566 = vmatpush1.bf16.msra.mxu0 0
        %1567 = vmatprep.subr.bf16.mxu0 0
        %1568 = vmatpush1.bf16.msra.mxu0 0
        %1569 = vmatprep.mubr.bf16.mxu0 0
        %1570 = vmatmul.mubr.bf16.gmra.mrb[0].mxu0 %v372
        %v1571 = vpop.f32.mrb[0].mxu0
        %v1572 = vadd.f32 0.0, %v1571
        %v1573 = vpop.f32.mrb[0].mxu0
        %v1574 = vpop.f32.mrb[0].mxu0
        %v1575 = vadd.f32 0.0, %v1574
        %v1576 = vpop.f32.mrb[0].mxu0
        %1577 = vmatprep.mubr.bf16.mxu0 0
        %1578 = vmatmul.mubr.bf16.gmra.mrb[0].mxu0 %v375
        %v1579 = vpop.f32.mrb[0].mxu0
        %v1580 = vadd.f32 0.0, %v1579
        %v1581 = vpop.f32.mrb[0].mxu0
        %v1582 = vpop.f32.mrb[0].mxu0
        %v1583 = vadd.f32 0.0, %v1582
        %v1584 = vpop.f32.mrb[0].mxu0
        %1585 = vmatprep.mubr.bf16.mxu0 0
        %1586 = vmatmul.mubr.bf16.gmra.mrb[0].mxu0 %v378
        %v1587 = vpop.f32.mrb[0].mxu0
        %v1588 = vadd.f32 0.0, %v1587
        %v1589 = vpop.f32.mrb[0].mxu0
        %v1590 = vpop.f32.mrb[0].mxu0
        %v1591 = vadd.f32 0.0, %v1590
        %v1592 = vpop.f32.mrb[0].mxu0
        %1593 = vmatprep.mubr.bf16.mxu0 0
        %1594 = vmatmul.mubr.bf16.gmra.mrb[0].mxu0 %v381
        %v1595 = vpop.f32.mrb[0].mxu0
        %v1596 = vadd.f32 0.0, %v1595
        %v1597 = vpop.f32.mrb[0].mxu0
        %v1598 = vpop.f32.mrb[0].mxu0
        %v1599 = vadd.f32 0.0, %v1598
        %v1600 = vpop.f32.mrb[0].mxu0
        %1601 = vdwg.mxu0
        %1602 = vmatprep.subr.bf16.mxu0 0
        %1603 = vmatpush1.bf16.msra.mxu0 %v1525
        %1604 = vmatprep.subr.bf16.mxu0 0
        %1605 = vmatpush1.bf16.msra.mxu0 %v1526
        %1606 = vmatprep.subr.bf16.mxu0 0
        %1607 = vmatpush1.bf16.msra.mxu0 %v1527
        %1608 = vmatprep.subr.bf16.mxu0 0
        %1609 = vmatpush1.bf16.msra.mxu0 %v1528
        %1610 = vmatprep.subr.bf16.mxu0 0
        %1611 = vmatpush1.bf16.msra.mxu0 0
        %1612 = vmatprep.subr.bf16.mxu0 0
        %1613 = vmatpush1.bf16.msra.mxu0 0
        %1614 = vmatprep.subr.bf16.mxu0 0
        %1615 = vmatpush1.bf16.msra.mxu0 0
        %1616 = vmatprep.subr.bf16.mxu0 0
        %1617 = vmatpush1.bf16.msra.mxu0 0
        %1618 = vmatprep.subr.bf16.mxu0 0
        %1619 = vmatpush1.bf16.msra.mxu0 0
        %1620 = vmatprep.subr.bf16.mxu0 0
        %1621 = vmatpush1.bf16.msra.mxu0 0
        %1622 = vmatprep.subr.bf16.mxu0 0
        %1623 = vmatpush1.bf16.msra.mxu0 0
        %1624 = vmatprep.subr.bf16.mxu0 0
        %1625 = vmatpush1.bf16.msra.mxu0 0
        %1626 = vmatprep.subr.bf16.mxu0 0
        %1627 = vmatpush1.bf16.msra.mxu0 0
        %1628 = vmatprep.subr.bf16.mxu0 0
        %1629 = vmatpush1.bf16.msra.mxu0 0
        %1630 = vmatprep.subr.bf16.mxu0 0
        %1631 = vmatpush1.bf16.msra.mxu0 0
        %1632 = vmatprep.subr.bf16.mxu0 0
        %1633 = vmatpush1.bf16.msra.mxu0 0
        %1634 = vmatprep.mubr.bf16.mxu0 0
        %1635 = vmatmul.mubr.bf16.gmra.mrb[0].mxu0 %v372
        %v1636 = vpop.f32.mrb[0].mxu0
        %v1637 = vadd.f32 0.0, %v1636
        %v1638 = vpop.f32.mrb[0].mxu0
        %v1639 = vpop.f32.mrb[0].mxu0
        %v1640 = vadd.f32 0.0, %v1639
        %v1641 = vpop.f32.mrb[0].mxu0
        %1642 = vmatprep.mubr.bf16.mxu0 0
        %1643 = vmatmul.mubr.bf16.gmra.mrb[0].mxu0 %v375
        %v1644 = vpop.f32.mrb[0].mxu0
        %v1645 = vadd.f32 0.0, %v1644
        %v1646 = vpop.f32.mrb[0].mxu0
        %v1647 = vpop.f32.mrb[0].mxu0
        %v1648 = vadd.f32 0.0, %v1647
        %v1649 = vpop.f32.mrb[0].mxu0
        %1650 = vmatprep.mubr.bf16.mxu0 0
        %1651 = vmatmul.mubr.bf16.gmra.mrb[0].mxu0 %v378
        %v1652 = vpop.f32.mrb[0].mxu0
        %v1653 = vadd.f32 0.0, %v1652
        %v1654 = vpop.f32.mrb[0].mxu0
        %v1655 = vpop.f32.mrb[0].mxu0
        %v1656 = vadd.f32 0.0, %v1655
        %v1657 = vpop.f32.mrb[0].mxu0
        %1658 = vmatprep.mubr.bf16.mxu0 0
        %1659 = vmatmul.mubr.bf16.gmra.mrb[0].mxu0 %v381
        %v1660 = vpop.f32.mrb[0].mxu0
        %v1661 = vadd.f32 0.0, %v1660
        %v1662 = vpop.f32.mrb[0].mxu0
        %v1663 = vpop.f32.mrb[0].mxu0
        %v1664 = vadd.f32 0.0, %v1663
        %v1665 = vpop.f32.mrb[0].mxu0
        %1666 = vdwg.mxu0
        %1667 = vmatprep.subr.bf16.mxu0 0
        %1668 = vmatpush1.bf16.msra.mxu0 %v1529
        %1669 = vmatprep.subr.bf16.mxu0 0
        %1670 = vmatpush1.bf16.msra.mxu0 %v1530
        %1671 = vmatprep.subr.bf16.mxu0 0
        %1672 = vmatpush1.bf16.msra.mxu0 %v1531
        %1673 = vmatprep.subr.bf16.mxu0 0
        %1674 = vmatpush1.bf16.msra.mxu0 %v1532
        %1675 = vmatprep.subr.bf16.mxu0 0
        %1676 = vmatpush1.bf16.msra.mxu0 0
        %1677 = vmatprep.subr.bf16.mxu0 0
        %1678 = vmatpush1.bf16.msra.mxu0 0
        %1679 = vmatprep.subr.bf16.mxu0 0
        %1680 = vmatpush1.bf16.msra.mxu0 0
        %1681 = vmatprep.subr.bf16.mxu0 0
        %1682 = vmatpush1.bf16.msra.mxu0 0
        %1683 = vmatprep.subr.bf16.mxu0 0
        %1684 = vmatpush1.bf16.msra.mxu0 0
        %1685 = vmatprep.subr.bf16.mxu0 0
        %1686 = vmatpush1.bf16.msra.mxu0 0
        %1687 = vmatprep.subr.bf16.mxu0 0
        %1688 = vmatpush1.bf16.msra.mxu0 0
        %1689 = vmatprep.subr.bf16.mxu0 0
        %1690 = vmatpush1.bf16.msra.mxu0 0
        %1691 = vmatprep.subr.bf16.mxu0 0
        %1692 = vmatpush1.bf16.msra.mxu0 0
        %1693 = vmatprep.subr.bf16.mxu0 0
        %1694 = vmatpush1.bf16.msra.mxu0 0
        %1695 = vmatprep.subr.bf16.mxu0 0
        %1696 = vmatpush1.bf16.msra.mxu0 0
        %1697 = vmatprep.subr.bf16.mxu0 0
        %1698 = vmatpush1.bf16.msra.mxu0 0
        %1699 = vmatprep.mubr.bf16.mxu0 0
        %1700 = vmatmul.mubr.bf16.gmra.mrb[0].mxu0 %v372
        %v1701 = vpop.f32.mrb[0].mxu0
        %v1702 = vadd.f32 0.0, %v1701
        %v1703 = vpop.f32.mrb[0].mxu0
        %v1704 = vpop.f32.mrb[0].mxu0
        %v1705 = vadd.f32 0.0, %v1704
        %v1706 = vpop.f32.mrb[0].mxu0
        %1707 = vmatprep.mubr.bf16.mxu0 0
        %1708 = vmatmul.mubr.bf16.gmra.mrb[0].mxu0 %v375
        %v1709 = vpop.f32.mrb[0].mxu0
        %v1710 = vadd.f32 0.0, %v1709
        %v1711 = vpop.f32.mrb[0].mxu0
        %v1712 = vpop.f32.mrb[0].mxu0
        %v1713 = vadd.f32 0.0, %v1712
        %v1714 = vpop.f32.mrb[0].mxu0
        %1715 = vmatprep.mubr.bf16.mxu0 0
        %1716 = vmatmul.mubr.bf16.gmra.mrb[0].mxu0 %v378
        %v1717 = vpop.f32.mrb[0].mxu0
        %v1718 = vadd.f32 0.0, %v1717
        %v1719 = vpop.f32.mrb[0].mxu0
        %v1720 = vpop.f32.mrb[0].mxu0
        %v1721 = vadd.f32 0.0, %v1720
        %v1722 = vpop.f32.mrb[0].mxu0
        %1723 = vmatprep.mubr.bf16.mxu0 0
        %1724 = vmatmul.mubr.bf16.gmra.mrb[0].mxu0 %v381
        %v1725 = vpop.f32.mrb[0].mxu0
        %v1726 = vadd.f32 0.0, %v1725
        %v1727 = vpop.f32.mrb[0].mxu0
        %v1728 = vpop.f32.mrb[0].mxu0
        %v1729 = vadd.f32 0.0, %v1728
        %v1730 = vpop.f32.mrb[0].mxu0
        %1731 = vdwg.mxu0
        %1732 = vmatprep.subr.bf16.mxu0 0
        %1733 = vmatpush1.bf16.msra.mxu0 %v1533
        %1734 = vmatprep.subr.bf16.mxu0 0
        %1735 = vmatpush1.bf16.msra.mxu0 %v1534
        %1736 = vmatprep.subr.bf16.mxu0 0
        %1737 = vmatpush1.bf16.msra.mxu0 %v1535
        %1738 = vmatprep.subr.bf16.mxu0 0
        %1739 = vmatpush1.bf16.msra.mxu0 %v1536
        %1740 = vmatprep.subr.bf16.mxu0 0
        %1741 = vmatpush1.bf16.msra.mxu0 0
        %1742 = vmatprep.subr.bf16.mxu0 0
        %1743 = vmatpush1.bf16.msra.mxu0 0
        %1744 = vmatprep.subr.bf16.mxu0 0
        %1745 = vmatpush1.bf16.msra.mxu0 0
        %1746 = vmatprep.subr.bf16.mxu0 0
        %1747 = vmatpush1.bf16.msra.mxu0 0
        %1748 = vmatprep.subr.bf16.mxu0 0
        %1749 = vmatpush1.bf16.msra.mxu0 0
        %1750 = vmatprep.subr.bf16.mxu0 0
        %1751 = vmatpush1.bf16.msra.mxu0 0
        %1752 = vmatprep.subr.bf16.mxu0 0
        %1753 = vmatpush1.bf16.msra.mxu0 0
        %1754 = vmatprep.subr.bf16.mxu0 0
        %1755 = vmatpush1.bf16.msra.mxu0 0
        %1756 = vmatprep.subr.bf16.mxu0 0
        %1757 = vmatpush1.bf16.msra.mxu0 0
        %1758 = vmatprep.subr.bf16.mxu0 0
        %1759 = vmatpush1.bf16.msra.mxu0 0
        %1760 = vmatprep.subr.bf16.mxu0 0
        %1761 = vmatpush1.bf16.msra.mxu0 0
        %1762 = vmatprep.subr.bf16.mxu0 0
        %1763 = vmatpush1.bf16.msra.mxu0 0
        %1764 = vmatprep.mubr.bf16.mxu0 0
        %1765 = vmatmul.mubr.bf16.gmra.mrb[0].mxu0 %v372
        %v1766 = vpop.f32.mrb[0].mxu0
        %v1767 = vadd.f32 0.0, %v1766
        %v1768 = vpop.f32.mrb[0].mxu0
        %v1769 = vpop.f32.mrb[0].mxu0
        %v1770 = vadd.f32 0.0, %v1769
        %v1771 = vpop.f32.mrb[0].mxu0
        %1772 = vmatprep.mubr.bf16.mxu0 0
        %1773 = vmatmul.mubr.bf16.gmra.mrb[0].mxu0 %v375
        %v1774 = vpop.f32.mrb[0].mxu0
        %v1775 = vadd.f32 0.0, %v1774
        %v1776 = vpop.f32.mrb[0].mxu0
        %v1777 = vpop.f32.mrb[0].mxu0
        %v1778 = vadd.f32 0.0, %v1777
        %v1779 = vpop.f32.mrb[0].mxu0
        %1780 = vmatprep.mubr.bf16.mxu0 0
        %1781 = vmatmul.mubr.bf16.gmra.mrb[0].mxu0 %v378
        %v1782 = vpop.f32.mrb[0].mxu0
        %v1783 = vadd.f32 0.0, %v1782
        %v1784 = vpop.f32.mrb[0].mxu0
        %v1785 = vpop.f32.mrb[0].mxu0
        %v1786 = vadd.f32 0.0, %v1785
        %v1787 = vpop.f32.mrb[0].mxu0
        %1788 = vmatprep.mubr.bf16.mxu0 0
        %1789 = vmatmul.mubr.bf16.gmra.mrb[0].mxu0 %v381
        %v1790 = vpop.f32.mrb[0].mxu0
        %v1791 = vadd.f32 0.0, %v1790
        %v1792 = vpop.f32.mrb[0].mxu0
        %v1793 = vpop.f32.mrb[0].mxu0
        %v1794 = vadd.f32 0.0, %v1793
        %v1795 = vpop.f32.mrb[0].mxu0
        %1796 = vdwg.mxu0
        %v1797 = vpack.c.bf16 %v1575, %v1572
        %v1798 = vpack.c.bf16 %v1583, %v1580
        %v1799 = vpack.c.bf16 %v1591, %v1588
        %v1800 = vpack.c.bf16 %v1599, %v1596
        %v1801 = vpack.c.bf16 %v1640, %v1637
        %v1802 = vpack.c.bf16 %v1648, %v1645
        %v1803 = vpack.c.bf16 %v1656, %v1653
        %v1804 = vpack.c.bf16 %v1664, %v1661
        %v1805 = vpack.c.bf16 %v1705, %v1702
        %v1806 = vpack.c.bf16 %v1713, %v1710
        %v1807 = vpack.c.bf16 %v1721, %v1718
        %v1808 = vpack.c.bf16 %v1729, %v1726
        %v1809 = vpack.c.bf16 %v1770, %v1767
        %v1810 = vpack.c.bf16 %v1778, %v1775
        %v1811 = vpack.c.bf16 %v1786, %v1783
        %v1812 = vpack.c.bf16 %v1794, %v1791
        %v1814 = vsel %vm370, %v1797, 0
        %v1817 = vsel %vm370, %v1798, 0
        %v1820 = vsel %vm370, %v1799, 0
        %v1823 = vsel %vm370, %v1800, 0
        %v1826 = vsel %vm370, %v1801, 0
        %v1829 = vsel %vm370, %v1802, 0
        %v1832 = vsel %vm370, %v1803, 0
        %v1835 = vsel %vm370, %v1804, 0
        %v1838 = vsel %vm370, %v1805, 0
        %v1841 = vsel %vm370, %v1806, 0
        %v1844 = vsel %vm370, %v1807, 0
        %v1847 = vsel %vm370, %v1808, 0
        %v1850 = vsel %vm370, %v1809, 0
        %v1853 = vsel %vm370, %v1810, 0
        %v1856 = vsel %vm370, %v1811, 0
        %v1859 = vsel %vm370, %v1812, 0
        %1861 = vmatprep.subr.bf16.mxu0 0
        %1862 = vmatpush1.bf16.msra.mxu0 %v675
        %1863 = vmatprep.subr.bf16.mxu0 0
        %1864 = vmatpush1.bf16.msra.mxu0 %v676
        %1865 = vmatprep.subr.bf16.mxu0 0
        %1866 = vmatpush1.bf16.msra.mxu0 %v677
        %1867 = vmatprep.subr.bf16.mxu0 0
        %1868 = vmatpush1.bf16.msra.mxu0 %v678
        %1869 = vmatprep.subr.bf16.mxu0 0
        %1870 = vmatpush1.bf16.msra.mxu0 0
        %1871 = vmatprep.subr.bf16.mxu0 0
        %1872 = vmatpush1.bf16.msra.mxu0 0
        %1873 = vmatprep.subr.bf16.mxu0 0
        %1874 = vmatpush1.bf16.msra.mxu0 0
        %1875 = vmatprep.subr.bf16.mxu0 0
        %1876 = vmatpush1.bf16.msra.mxu0 0
        %1877 = vmatprep.subr.bf16.mxu0 0
        %1878 = vmatpush1.bf16.msra.mxu0 0
        %1879 = vmatprep.subr.bf16.mxu0 0
        %1880 = vmatpush1.bf16.msra.mxu0 0
        %1881 = vmatprep.subr.bf16.mxu0 0
        %1882 = vmatpush1.bf16.msra.mxu0 0
        %1883 = vmatprep.subr.bf16.mxu0 0
        %1884 = vmatpush1.bf16.msra.mxu0 0
        %1885 = vmatprep.subr.bf16.mxu0 0
        %1886 = vmatpush1.bf16.msra.mxu0 0
        %1887 = vmatprep.subr.bf16.mxu0 0
        %1888 = vmatpush1.bf16.msra.mxu0 0
        %1889 = vmatprep.subr.bf16.mxu0 0
        %1890 = vmatpush1.bf16.msra.mxu0 0
        %1891 = vmatprep.subr.bf16.mxu0 0
        %1892 = vmatpush1.bf16.msra.mxu0 0
        %1893 = vmatprep.mubr.bf16.mxu0 0
        %1894 = vmatmul.mubr.bf16.gmra.mrb[0].mxu0 %v1814
        %v1895 = vpop.f32.mrb[0].mxu0
        %v1896 = vadd.f32 0.0, %v1895
        %v1897 = vpop.f32.mrb[0].mxu0
        %v1898 = vpop.f32.mrb[0].mxu0
        %v1899 = vadd.f32 0.0, %v1898
        %v1900 = vpop.f32.mrb[0].mxu0
        %1901 = vmatprep.mubr.bf16.mxu0 0
        %1902 = vmatmul.mubr.bf16.gmra.mrb[0].mxu0 %v1817
        %v1903 = vpop.f32.mrb[0].mxu0
        %v1904 = vadd.f32 0.0, %v1903
        %v1905 = vpop.f32.mrb[0].mxu0
        %v1906 = vpop.f32.mrb[0].mxu0
        %v1907 = vadd.f32 0.0, %v1906
        %v1908 = vpop.f32.mrb[0].mxu0
        %1909 = vmatprep.mubr.bf16.mxu0 0
        %1910 = vmatmul.mubr.bf16.gmra.mrb[0].mxu0 %v1820
        %v1911 = vpop.f32.mrb[0].mxu0
        %v1912 = vadd.f32 0.0, %v1911
        %v1913 = vpop.f32.mrb[0].mxu0
        %v1914 = vpop.f32.mrb[0].mxu0
        %v1915 = vadd.f32 0.0, %v1914
        %v1916 = vpop.f32.mrb[0].mxu0
        %1917 = vmatprep.mubr.bf16.mxu0 0
        %1918 = vmatmul.mubr.bf16.gmra.mrb[0].mxu0 %v1823
        %v1919 = vpop.f32.mrb[0].mxu0
        %v1920 = vadd.f32 0.0, %v1919
        %v1921 = vpop.f32.mrb[0].mxu0
        %v1922 = vpop.f32.mrb[0].mxu0
        %v1923 = vadd.f32 0.0, %v1922
        %v1924 = vpop.f32.mrb[0].mxu0
        %1925 = vmatprep.mubr.bf16.mxu0 0
        %1926 = vmatmul.mubr.bf16.gmra.mrb[0].mxu0 %v1826
        %v1927 = vpop.f32.mrb[0].mxu0
        %v1928 = vadd.f32 0.0, %v1927
        %v1929 = vpop.f32.mrb[0].mxu0
        %v1930 = vpop.f32.mrb[0].mxu0
        %v1931 = vadd.f32 0.0, %v1930
        %v1932 = vpop.f32.mrb[0].mxu0
        %1933 = vmatprep.mubr.bf16.mxu0 0
        %1934 = vmatmul.mubr.bf16.gmra.mrb[0].mxu0 %v1829
        %v1935 = vpop.f32.mrb[0].mxu0
        %v1936 = vadd.f32 0.0, %v1935
        %v1937 = vpop.f32.mrb[0].mxu0
        %v1938 = vpop.f32.mrb[0].mxu0
        %v1939 = vadd.f32 0.0, %v1938
        %v1940 = vpop.f32.mrb[0].mxu0
        %1941 = vmatprep.mubr.bf16.mxu0 0
        %1942 = vmatmul.mubr.bf16.gmra.mrb[0].mxu0 %v1832
        %v1943 = vpop.f32.mrb[0].mxu0
        %v1944 = vadd.f32 0.0, %v1943
        %v1945 = vpop.f32.mrb[0].mxu0
        %v1946 = vpop.f32.mrb[0].mxu0
        %v1947 = vadd.f32 0.0, %v1946
        %v1948 = vpop.f32.mrb[0].mxu0
        %1949 = vmatprep.mubr.bf16.mxu0 0
        %1950 = vmatmul.mubr.bf16.gmra.mrb[0].mxu0 %v1835
        %v1951 = vpop.f32.mrb[0].mxu0
        %v1952 = vadd.f32 0.0, %v1951
        %v1953 = vpop.f32.mrb[0].mxu0
        %v1954 = vpop.f32.mrb[0].mxu0
        %v1955 = vadd.f32 0.0, %v1954
        %v1956 = vpop.f32.mrb[0].mxu0
        %1957 = vmatprep.mubr.bf16.mxu0 0
        %1958 = vmatmul.mubr.bf16.gmra.mrb[0].mxu0 %v1838
        %v1959 = vpop.f32.mrb[0].mxu0
        %v1960 = vadd.f32 0.0, %v1959
        %v1961 = vpop.f32.mrb[0].mxu0
        %v1962 = vpop.f32.mrb[0].mxu0
        %v1963 = vadd.f32 0.0, %v1962
        %v1964 = vpop.f32.mrb[0].mxu0
        %1965 = vmatprep.mubr.bf16.mxu0 0
        %1966 = vmatmul.mubr.bf16.gmra.mrb[0].mxu0 %v1841
        %v1967 = vpop.f32.mrb[0].mxu0
        %v1968 = vadd.f32 0.0, %v1967
        %v1969 = vpop.f32.mrb[0].mxu0
        %v1970 = vpop.f32.mrb[0].mxu0
        %v1971 = vadd.f32 0.0, %v1970
        %v1972 = vpop.f32.mrb[0].mxu0
        %1973 = vmatprep.mubr.bf16.mxu0 0
        %1974 = vmatmul.mubr.bf16.gmra.mrb[0].mxu0 %v1844
        %v1975 = vpop.f32.mrb[0].mxu0
        %v1976 = vadd.f32 0.0, %v1975
        %v1977 = vpop.f32.mrb[0].mxu0
        %v1978 = vpop.f32.mrb[0].mxu0
        %v1979 = vadd.f32 0.0, %v1978
        %v1980 = vpop.f32.mrb[0].mxu0
        %1981 = vmatprep.mubr.bf16.mxu0 0
        %1982 = vmatmul.mubr.bf16.gmra.mrb[0].mxu0 %v1847
        %v1983 = vpop.f32.mrb[0].mxu0
        %v1984 = vadd.f32 0.0, %v1983
        %v1985 = vpop.f32.mrb[0].mxu0
        %v1986 = vpop.f32.mrb[0].mxu0
        %v1987 = vadd.f32 0.0, %v1986
        %v1988 = vpop.f32.mrb[0].mxu0
        %1989 = vmatprep.mubr.bf16.mxu0 0
        %1990 = vmatmul.mubr.bf16.gmra.mrb[0].mxu0 %v1850
        %v1991 = vpop.f32.mrb[0].mxu0
        %v1992 = vadd.f32 0.0, %v1991
        %v1993 = vpop.f32.mrb[0].mxu0
        %v1994 = vpop.f32.mrb[0].mxu0
        %v1995 = vadd.f32 0.0, %v1994
        %v1996 = vpop.f32.mrb[0].mxu0
        %1997 = vmatprep.mubr.bf16.mxu0 0
        %1998 = vmatmul.mubr.bf16.gmra.mrb[0].mxu0 %v1853
        %v1999 = vpop.f32.mrb[0].mxu0
        %v2000 = vadd.f32 0.0, %v1999
        %v2001 = vpop.f32.mrb[0].mxu0
        %v2002 = vpop.f32.mrb[0].mxu0
        %v2003 = vadd.f32 0.0, %v2002
        %v2004 = vpop.f32.mrb[0].mxu0
        %2005 = vmatprep.mubr.bf16.mxu0 0
        %2006 = vmatmul.mubr.bf16.gmra.mrb[0].mxu0 %v1856
        %v2007 = vpop.f32.mrb[0].mxu0
        %v2008 = vadd.f32 0.0, %v2007
        %v2009 = vpop.f32.mrb[0].mxu0
        %v2010 = vpop.f32.mrb[0].mxu0
        %v2011 = vadd.f32 0.0, %v2010
        %v2012 = vpop.f32.mrb[0].mxu0
        %2013 = vmatprep.mubr.bf16.mxu0 0
        %2014 = vmatmul.mubr.bf16.gmra.mrb[0].mxu0 %v1859
        %v2015 = vpop.f32.mrb[0].mxu0
        %v2016 = vadd.f32 0.0, %v2015
        %v2017 = vpop.f32.mrb[0].mxu0
        %v2018 = vpop.f32.mrb[0].mxu0
        %v2019 = vadd.f32 0.0, %v2018
        %v2020 = vpop.f32.mrb[0].mxu0
        %2021 = vdwg.mxu0
        %v2022 = vmul.f32 %v1896, %v254
        %v2023 = vmul.f32 %v1899, %v255
        %v2024 = vmul.f32 %v1904, %v256
        %v2025 = vmul.f32 %v1907, %v257
        %v2026 = vmul.f32 %v1912, %v258
        %v2027 = vmul.f32 %v1915, %v259
        %v2028 = vmul.f32 %v1920, %v260
        %v2029 = vmul.f32 %v1923, %v261
        %v2030 = vmul.f32 %v1928, %v262
        %v2031 = vmul.f32 %v1931, %v263
        %v2032 = vmul.f32 %v1936, %v264
        %v2033 = vmul.f32 %v1939, %v265
        %v2034 = vmul.f32 %v1944, %v266
        %v2035 = vmul.f32 %v1947, %v267
        %v2036 = vmul.f32 %v1952, %v268
        %v2037 = vmul.f32 %v1955, %v269
        %v2038 = vmul.f32 %v1960, %v270
        %v2039 = vmul.f32 %v1963, %v271
        %v2040 = vmul.f32 %v1968, %v272
        %v2041 = vmul.f32 %v1971, %v273
        %v2042 = vmul.f32 %v1976, %v274
        %v2043 = vmul.f32 %v1979, %v275
        %v2044 = vmul.f32 %v1984, %v276
        %v2045 = vmul.f32 %v1987, %v277
        %v2046 = vmul.f32 %v1992, %v278
        %v2047 = vmul.f32 %v1995, %v279
        %v2048 = vmul.f32 %v2000, %v280
        %v2049 = vmul.f32 %v2003, %v281
        %v2050 = vmul.f32 %v2008, %v282
        %v2051 = vmul.f32 %v2011, %v283
        %v2052 = vmul.f32 %v2016, %v284
        %v2053 = vmul.f32 %v2019, %v285
        %v2054 = vadd.f32 %v2022, %v286
        %v2055 = vadd.f32 %v2023, %v287
        %v2056 = vadd.f32 %v2024, %v288
        %v2057 = vadd.f32 %v2025, %v289
        %v2058 = vadd.f32 %v2026, %v290
        %v2059 = vadd.f32 %v2027, %v291
        %v2060 = vadd.f32 %v2028, %v292
        %v2061 = vadd.f32 %v2029, %v293
        %v2062 = vadd.f32 %v2030, %v294
        %v2063 = vadd.f32 %v2031, %v295
        %v2064 = vadd.f32 %v2032, %v296
        %v2065 = vadd.f32 %v2033, %v297
        %v2066 = vadd.f32 %v2034, %v298
        %v2067 = vadd.f32 %v2035, %v299
        %v2068 = vadd.f32 %v2036, %v300
        %v2069 = vadd.f32 %v2037, %v301
        %v2070 = vadd.f32 %v2038, %v302
        %v2071 = vadd.f32 %v2039, %v303
        %v2072 = vadd.f32 %v2040, %v304
        %v2073 = vadd.f32 %v2041, %v305
        %v2074 = vadd.f32 %v2042, %v306
        %v2075 = vadd.f32 %v2043, %v307
        %v2076 = vadd.f32 %v2044, %v308
        %v2077 = vadd.f32 %v2045, %v309
        %v2078 = vadd.f32 %v2046, %v310
        %v2079 = vadd.f32 %v2047, %v311
        %v2080 = vadd.f32 %v2048, %v312
        %v2081 = vadd.f32 %v2049, %v313
        %v2082 = vadd.f32 %v2050, %v314
        %v2083 = vadd.f32 %v2051, %v315
        %v2084 = vadd.f32 %v2052, %v316
        %v2085 = vadd.f32 %v2053, %v317
        %v2086 = vpack.c.bf16 %v2055, %v2054
        %v2087 = vpack.c.bf16 %v2057, %v2056
        %v2088 = vpack.c.bf16 %v2059, %v2058
        %v2089 = vpack.c.bf16 %v2061, %v2060
        %v2090 = vpack.c.bf16 %v2063, %v2062
        %v2091 = vpack.c.bf16 %v2065, %v2064
        %v2092 = vpack.c.bf16 %v2067, %v2066
        %v2093 = vpack.c.bf16 %v2069, %v2068
        %v2094 = vpack.c.bf16 %v2071, %v2070
        %v2095 = vpack.c.bf16 %v2073, %v2072
        %v2096 = vpack.c.bf16 %v2075, %v2074
        %v2097 = vpack.c.bf16 %v2077, %v2076
        %v2098 = vpack.c.bf16 %v2079, %v2078
        %v2099 = vpack.c.bf16 %v2081, %v2080
        %v2100 = vpack.c.bf16 %v2083, %v2082
        %v2101 = vpack.c.bf16 %v2085, %v2084
        %2102 = vmatprep.subr.bf16.mxu0 0
        %2103 = vmatpush1.bf16.msra.mxu0 %v2086
        %2104 = vmatprep.subr.bf16.mxu0 0
        %2105 = vmatpush1.bf16.msra.mxu0 %v2087
        %2106 = vmatprep.subr.bf16.mxu0 0
        %2107 = vmatpush1.bf16.msra.mxu0 %v2088
        %2108 = vmatprep.subr.bf16.mxu0 0
        %2109 = vmatpush1.bf16.msra.mxu0 %v2089
        %2110 = vmatprep.subr.bf16.mxu0 0
        %2111 = vmatpush1.bf16.msra.mxu0 0
        %2112 = vmatprep.subr.bf16.mxu0 0
        %2113 = vmatpush1.bf16.msra.mxu0 0
        %2114 = vmatprep.subr.bf16.mxu0 0
        %2115 = vmatpush1.bf16.msra.mxu0 0
        %2116 = vmatprep.subr.bf16.mxu0 0
        %2117 = vmatpush1.bf16.msra.mxu0 0
        %2118 = vmatprep.subr.bf16.mxu0 0
        %2119 = vmatpush1.bf16.msra.mxu0 0
        %2120 = vmatprep.subr.bf16.mxu0 0
        %2121 = vmatpush1.bf16.msra.mxu0 0
        %2122 = vmatprep.subr.bf16.mxu0 0
        %2123 = vmatpush1.bf16.msra.mxu0 0
        %2124 = vmatprep.subr.bf16.mxu0 0
        %2125 = vmatpush1.bf16.msra.mxu0 0
        %2126 = vmatprep.subr.bf16.mxu0 0
        %2127 = vmatpush1.bf16.msra.mxu0 0
        %2128 = vmatprep.subr.bf16.mxu0 0
        %2129 = vmatpush1.bf16.msra.mxu0 0
        %2130 = vmatprep.subr.bf16.mxu0 0
        %2131 = vmatpush1.bf16.msra.mxu0 0
        %2132 = vmatprep.subr.bf16.mxu0 0
        %2133 = vmatpush1.bf16.msra.mxu0 0
        %2134 = vmatprep.mubr.bf16.mxu0 0
        %2135 = vmatmul.mubr.bf16.gmra.mrb[0].mxu0 %v372
        %v2136 = vpop.f32.mrb[0].mxu0
        %v2137 = vadd.f32 0.0, %v2136
        %v2138 = vpop.f32.mrb[0].mxu0
        %v2139 = vpop.f32.mrb[0].mxu0
        %v2140 = vadd.f32 0.0, %v2139
        %v2141 = vpop.f32.mrb[0].mxu0
        %2142 = vmatprep.mubr.bf16.mxu0 0
        %2143 = vmatmul.mubr.bf16.gmra.mrb[0].mxu0 %v375
        %v2144 = vpop.f32.mrb[0].mxu0
        %v2145 = vadd.f32 0.0, %v2144
        %v2146 = vpop.f32.mrb[0].mxu0
        %v2147 = vpop.f32.mrb[0].mxu0
        %v2148 = vadd.f32 0.0, %v2147
        %v2149 = vpop.f32.mrb[0].mxu0
        %2150 = vmatprep.mubr.bf16.mxu0 0
        %2151 = vmatmul.mubr.bf16.gmra.mrb[0].mxu0 %v378
        %v2152 = vpop.f32.mrb[0].mxu0
        %v2153 = vadd.f32 0.0, %v2152
        %v2154 = vpop.f32.mrb[0].mxu0
        %v2155 = vpop.f32.mrb[0].mxu0
        %v2156 = vadd.f32 0.0, %v2155
        %v2157 = vpop.f32.mrb[0].mxu0
        %2158 = vmatprep.mubr.bf16.mxu0 0
        %2159 = vmatmul.mubr.bf16.gmra.mrb[0].mxu0 %v381
        %v2160 = vpop.f32.mrb[0].mxu0
        %v2161 = vadd.f32 0.0, %v2160
        %v2162 = vpop.f32.mrb[0].mxu0
        %v2163 = vpop.f32.mrb[0].mxu0
        %v2164 = vadd.f32 0.0, %v2163
        %v2165 = vpop.f32.mrb[0].mxu0
        %2166 = vdwg.mxu0
        %2167 = vmatprep.subr.bf16.mxu0 0
        %2168 = vmatpush1.bf16.msra.mxu0 %v2090
        %2169 = vmatprep.subr.bf16.mxu0 0
        %2170 = vmatpush1.bf16.msra.mxu0 %v2091
        %2171 = vmatprep.subr.bf16.mxu0 0
        %2172 = vmatpush1.bf16.msra.mxu0 %v2092
        %2173 = vmatprep.subr.bf16.mxu0 0
        %2174 = vmatpush1.bf16.msra.mxu0 %v2093
        %2175 = vmatprep.subr.bf16.mxu0 0
        %2176 = vmatpush1.bf16.msra.mxu0 0
        %2177 = vmatprep.subr.bf16.mxu0 0
        %2178 = vmatpush1.bf16.msra.mxu0 0
        %2179 = vmatprep.subr.bf16.mxu0 0
        %2180 = vmatpush1.bf16.msra.mxu0 0
        %2181 = vmatprep.subr.bf16.mxu0 0
        %2182 = vmatpush1.bf16.msra.mxu0 0
        %2183 = vmatprep.subr.bf16.mxu0 0
        %2184 = vmatpush1.bf16.msra.mxu0 0
        %2185 = vmatprep.subr.bf16.mxu0 0
        %2186 = vmatpush1.bf16.msra.mxu0 0
        %2187 = vmatprep.subr.bf16.mxu0 0
        %2188 = vmatpush1.bf16.msra.mxu0 0
        %2189 = vmatprep.subr.bf16.mxu0 0
        %2190 = vmatpush1.bf16.msra.mxu0 0
        %2191 = vmatprep.subr.bf16.mxu0 0
        %2192 = vmatpush1.bf16.msra.mxu0 0
        %2193 = vmatprep.subr.bf16.mxu0 0
        %2194 = vmatpush1.bf16.msra.mxu0 0
        %2195 = vmatprep.subr.bf16.mxu0 0
        %2196 = vmatpush1.bf16.msra.mxu0 0
        %2197 = vmatprep.subr.bf16.mxu0 0
        %2198 = vmatpush1.bf16.msra.mxu0 0
        %2199 = vmatprep.mubr.bf16.mxu0 0
        %2200 = vmatmul.mubr.bf16.gmra.mrb[0].mxu0 %v372
        %v2201 = vpop.f32.mrb[0].mxu0
        %v2202 = vadd.f32 0.0, %v2201
        %v2203 = vpop.f32.mrb[0].mxu0
        %v2204 = vpop.f32.mrb[0].mxu0
        %v2205 = vadd.f32 0.0, %v2204
        %v2206 = vpop.f32.mrb[0].mxu0
        %2207 = vmatprep.mubr.bf16.mxu0 0
        %2208 = vmatmul.mubr.bf16.gmra.mrb[0].mxu0 %v375
        %v2209 = vpop.f32.mrb[0].mxu0
        %v2210 = vadd.f32 0.0, %v2209
        %v2211 = vpop.f32.mrb[0].mxu0
        %v2212 = vpop.f32.mrb[0].mxu0
        %v2213 = vadd.f32 0.0, %v2212
        %v2214 = vpop.f32.mrb[0].mxu0
        %2215 = vmatprep.mubr.bf16.mxu0 0
        %2216 = vmatmul.mubr.bf16.gmra.mrb[0].mxu0 %v378
        %v2217 = vpop.f32.mrb[0].mxu0
        %v2218 = vadd.f32 0.0, %v2217
        %v2219 = vpop.f32.mrb[0].mxu0
        %v2220 = vpop.f32.mrb[0].mxu0
        %v2221 = vadd.f32 0.0, %v2220
        %v2222 = vpop.f32.mrb[0].mxu0
        %2223 = vmatprep.mubr.bf16.mxu0 0
        %2224 = vmatmul.mubr.bf16.gmra.mrb[0].mxu0 %v381
        %v2225 = vpop.f32.mrb[0].mxu0
        %v2226 = vadd.f32 0.0, %v2225
        %v2227 = vpop.f32.mrb[0].mxu0
        %v2228 = vpop.f32.mrb[0].mxu0
        %v2229 = vadd.f32 0.0, %v2228
        %v2230 = vpop.f32.mrb[0].mxu0
        %2231 = vdwg.mxu0
        %2232 = vmatprep.subr.bf16.mxu0 0
        %2233 = vmatpush1.bf16.msra.mxu0 %v2094
        %2234 = vmatprep.subr.bf16.mxu0 0
        %2235 = vmatpush1.bf16.msra.mxu0 %v2095
        %2236 = vmatprep.subr.bf16.mxu0 0
        %2237 = vmatpush1.bf16.msra.mxu0 %v2096
        %2238 = vmatprep.subr.bf16.mxu0 0
        %2239 = vmatpush1.bf16.msra.mxu0 %v2097
        %2240 = vmatprep.subr.bf16.mxu0 0
        %2241 = vmatpush1.bf16.msra.mxu0 0
        %2242 = vmatprep.subr.bf16.mxu0 0
        %2243 = vmatpush1.bf16.msra.mxu0 0
        %2244 = vmatprep.subr.bf16.mxu0 0
        %2245 = vmatpush1.bf16.msra.mxu0 0
        %2246 = vmatprep.subr.bf16.mxu0 0
        %2247 = vmatpush1.bf16.msra.mxu0 0
        %2248 = vmatprep.subr.bf16.mxu0 0
        %2249 = vmatpush1.bf16.msra.mxu0 0
        %2250 = vmatprep.subr.bf16.mxu0 0
        %2251 = vmatpush1.bf16.msra.mxu0 0
        %2252 = vmatprep.subr.bf16.mxu0 0
        %2253 = vmatpush1.bf16.msra.mxu0 0
        %2254 = vmatprep.subr.bf16.mxu0 0
        %2255 = vmatpush1.bf16.msra.mxu0 0
        %2256 = vmatprep.subr.bf16.mxu0 0
        %2257 = vmatpush1.bf16.msra.mxu0 0
        %2258 = vmatprep.subr.bf16.mxu0 0
        %2259 = vmatpush1.bf16.msra.mxu0 0
        %2260 = vmatprep.subr.bf16.mxu0 0
        %2261 = vmatpush1.bf16.msra.mxu0 0
        %2262 = vmatprep.subr.bf16.mxu0 0
        %2263 = vmatpush1.bf16.msra.mxu0 0
        %2264 = vmatprep.mubr.bf16.mxu0 0
        %2265 = vmatmul.mubr.bf16.gmra.mrb[0].mxu0 %v372
        %v2266 = vpop.f32.mrb[0].mxu0
        %v2267 = vadd.f32 0.0, %v2266
        %v2268 = vpop.f32.mrb[0].mxu0
        %v2269 = vpop.f32.mrb[0].mxu0
        %v2270 = vadd.f32 0.0, %v2269
        %v2271 = vpop.f32.mrb[0].mxu0
        %2272 = vmatprep.mubr.bf16.mxu0 0
        %2273 = vmatmul.mubr.bf16.gmra.mrb[0].mxu0 %v375
        %v2274 = vpop.f32.mrb[0].mxu0
        %v2275 = vadd.f32 0.0, %v2274
        %v2276 = vpop.f32.mrb[0].mxu0
        %v2277 = vpop.f32.mrb[0].mxu0
        %v2278 = vadd.f32 0.0, %v2277
        %v2279 = vpop.f32.mrb[0].mxu0
        %2280 = vmatprep.mubr.bf16.mxu0 0
        %2281 = vmatmul.mubr.bf16.gmra.mrb[0].mxu0 %v378
        %v2282 = vpop.f32.mrb[0].mxu0
        %v2283 = vadd.f32 0.0, %v2282
        %v2284 = vpop.f32.mrb[0].mxu0
        %v2285 = vpop.f32.mrb[0].mxu0
        %v2286 = vadd.f32 0.0, %v2285
        %v2287 = vpop.f32.mrb[0].mxu0
        %2288 = vmatprep.mubr.bf16.mxu0 0
        %2289 = vmatmul.mubr.bf16.gmra.mrb[0].mxu0 %v381
        %v2290 = vpop.f32.mrb[0].mxu0
        %v2291 = vadd.f32 0.0, %v2290
        %v2292 = vpop.f32.mrb[0].mxu0
        %v2293 = vpop.f32.mrb[0].mxu0
        %v2294 = vadd.f32 0.0, %v2293
        %v2295 = vpop.f32.mrb[0].mxu0
        %2296 = vdwg.mxu0
        %2297 = vmatprep.subr.bf16.mxu0 0
        %2298 = vmatpush1.bf16.msra.mxu0 %v2098
        %2299 = vmatprep.subr.bf16.mxu0 0
        %2300 = vmatpush1.bf16.msra.mxu0 %v2099
        %2301 = vmatprep.subr.bf16.mxu0 0
        %2302 = vmatpush1.bf16.msra.mxu0 %v2100
        %2303 = vmatprep.subr.bf16.mxu0 0
        %2304 = vmatpush1.bf16.msra.mxu0 %v2101
        %2305 = vmatprep.subr.bf16.mxu0 0
        %2306 = vmatpush1.bf16.msra.mxu0 0
        %2307 = vmatprep.subr.bf16.mxu0 0
        %2308 = vmatpush1.bf16.msra.mxu0 0
        %2309 = vmatprep.subr.bf16.mxu0 0
        %2310 = vmatpush1.bf16.msra.mxu0 0
        %2311 = vmatprep.subr.bf16.mxu0 0
        %2312 = vmatpush1.bf16.msra.mxu0 0
        %2313 = vmatprep.subr.bf16.mxu0 0
        %2314 = vmatpush1.bf16.msra.mxu0 0
        %2315 = vmatprep.subr.bf16.mxu0 0
        %2316 = vmatpush1.bf16.msra.mxu0 0
        %2317 = vmatprep.subr.bf16.mxu0 0
        %2318 = vmatpush1.bf16.msra.mxu0 0
        %2319 = vmatprep.subr.bf16.mxu0 0
        %2320 = vmatpush1.bf16.msra.mxu0 0
        %2321 = vmatprep.subr.bf16.mxu0 0
        %2322 = vmatpush1.bf16.msra.mxu0 0
        %2323 = vmatprep.subr.bf16.mxu0 0
        %2324 = vmatpush1.bf16.msra.mxu0 0
        %2325 = vmatprep.subr.bf16.mxu0 0
        %2326 = vmatpush1.bf16.msra.mxu0 0
        %2327 = vmatprep.subr.bf16.mxu0 0
        %2328 = vmatpush1.bf16.msra.mxu0 0
        %2329 = vmatprep.mubr.bf16.mxu0 0
        %2330 = vmatmul.mubr.bf16.gmra.mrb[0].mxu0 %v372
        %v2331 = vpop.f32.mrb[0].mxu0
        %v2332 = vadd.f32 0.0, %v2331
        %v2333 = vpop.f32.mrb[0].mxu0
        %v2334 = vpop.f32.mrb[0].mxu0
        %v2335 = vadd.f32 0.0, %v2334
        %v2336 = vpop.f32.mrb[0].mxu0
        %2337 = vmatprep.mubr.bf16.mxu0 0
        %2338 = vmatmul.mubr.bf16.gmra.mrb[0].mxu0 %v375
        %v2339 = vpop.f32.mrb[0].mxu0
        %v2340 = vadd.f32 0.0, %v2339
        %v2341 = vpop.f32.mrb[0].mxu0
        %v2342 = vpop.f32.mrb[0].mxu0
        %v2343 = vadd.f32 0.0, %v2342
        %v2344 = vpop.f32.mrb[0].mxu0
        %2345 = vmatprep.mubr.bf16.mxu0 0
        %2346 = vmatmul.mubr.bf16.gmra.mrb[0].mxu0 %v378
        %v2347 = vpop.f32.mrb[0].mxu0
        %v2348 = vadd.f32 0.0, %v2347
        %v2349 = vpop.f32.mrb[0].mxu0
        %v2350 = vpop.f32.mrb[0].mxu0
        %v2351 = vadd.f32 0.0, %v2350
        %v2352 = vpop.f32.mrb[0].mxu0
        %2353 = vmatprep.mubr.bf16.mxu0 0
        %2354 = vmatmul.mubr.bf16.gmra.mrb[0].mxu0 %v381
        %v2355 = vpop.f32.mrb[0].mxu0
        %v2356 = vadd.f32 0.0, %v2355
        %v2357 = vpop.f32.mrb[0].mxu0
        %v2358 = vpop.f32.mrb[0].mxu0
        %v2359 = vadd.f32 0.0, %v2358
        %v2360 = vpop.f32.mrb[0].mxu0
        %2361 = vdwg.mxu0
        %v2362 = vpack.c.bf16 %v2140, %v2137
        %v2363 = vpack.c.bf16 %v2148, %v2145
        %v2364 = vpack.c.bf16 %v2156, %v2153
        %v2365 = vpack.c.bf16 %v2164, %v2161
        %v2366 = vpack.c.bf16 %v2205, %v2202
        %v2367 = vpack.c.bf16 %v2213, %v2210
        %v2368 = vpack.c.bf16 %v2221, %v2218
        %v2369 = vpack.c.bf16 %v2229, %v2226
        %v2370 = vpack.c.bf16 %v2270, %v2267
        %v2371 = vpack.c.bf16 %v2278, %v2275
        %v2372 = vpack.c.bf16 %v2286, %v2283
        %v2373 = vpack.c.bf16 %v2294, %v2291
        %v2374 = vpack.c.bf16 %v2335, %v2332
        %v2375 = vpack.c.bf16 %v2343, %v2340
        %v2376 = vpack.c.bf16 %v2351, %v2348
        %v2377 = vpack.c.bf16 %v2359, %v2356
        %v2379 = vsel %vm370, %v2362, 0
        %v2382 = vsel %vm370, %v2363, 0
        %v2385 = vsel %vm370, %v2364, 0
        %v2388 = vsel %vm370, %v2365, 0
        %v2391 = vsel %vm370, %v2366, 0
        %v2394 = vsel %vm370, %v2367, 0
        %v2397 = vsel %vm370, %v2368, 0
        %v2400 = vsel %vm370, %v2369, 0
        %v2403 = vsel %vm370, %v2370, 0
        %v2406 = vsel %vm370, %v2371, 0
        %v2409 = vsel %vm370, %v2372, 0
        %v2412 = vsel %vm370, %v2373, 0
        %v2415 = vsel %vm370, %v2374, 0
        %v2418 = vsel %vm370, %v2375, 0
        %v2421 = vsel %vm370, %v2376, 0
        %v2424 = vsel %vm370, %v2377, 0
        %2426 = vmatprep.subr.bf16.mxu0 0
        %2427 = vmatpush1.bf16.msra.mxu0 %v675
        %2428 = vmatprep.subr.bf16.mxu0 0
        %2429 = vmatpush1.bf16.msra.mxu0 %v676
        %2430 = vmatprep.subr.bf16.mxu0 0
        %2431 = vmatpush1.bf16.msra.mxu0 %v677
        %2432 = vmatprep.subr.bf16.mxu0 0
        %2433 = vmatpush1.bf16.msra.mxu0 %v678
        %2434 = vmatprep.subr.bf16.mxu0 0
        %2435 = vmatpush1.bf16.msra.mxu0 0
        %2436 = vmatprep.subr.bf16.mxu0 0
        %2437 = vmatpush1.bf16.msra.mxu0 0
        %2438 = vmatprep.subr.bf16.mxu0 0
        %2439 = vmatpush1.bf16.msra.mxu0 0
        %2440 = vmatprep.subr.bf16.mxu0 0
        %2441 = vmatpush1.bf16.msra.mxu0 0
        %2442 = vmatprep.subr.bf16.mxu0 0
        %2443 = vmatpush1.bf16.msra.mxu0 0
        %2444 = vmatprep.subr.bf16.mxu0 0
        %2445 = vmatpush1.bf16.msra.mxu0 0
        %2446 = vmatprep.subr.bf16.mxu0 0
        %2447 = vmatpush1.bf16.msra.mxu0 0
        %2448 = vmatprep.subr.bf16.mxu0 0
        %2449 = vmatpush1.bf16.msra.mxu0 0
        %2450 = vmatprep.subr.bf16.mxu0 0
        %2451 = vmatpush1.bf16.msra.mxu0 0
        %2452 = vmatprep.subr.bf16.mxu0 0
        %2453 = vmatpush1.bf16.msra.mxu0 0
        %2454 = vmatprep.subr.bf16.mxu0 0
        %2455 = vmatpush1.bf16.msra.mxu0 0
        %2456 = vmatprep.subr.bf16.mxu0 0
        %2457 = vmatpush1.bf16.msra.mxu0 0
        %2458 = vmatprep.mubr.bf16.mxu0 0
        %2459 = vmatmul.mubr.bf16.gmra.mrb[0].mxu0 %v2379
        %v2460 = vpop.f32.mrb[0].mxu0
        %v2461 = vadd.f32 0.0, %v2460
        %v2462 = vpop.f32.mrb[0].mxu0
        %v2463 = vpop.f32.mrb[0].mxu0
        %v2464 = vadd.f32 0.0, %v2463
        %v2465 = vpop.f32.mrb[0].mxu0
        %2466 = vmatprep.mubr.bf16.mxu0 0
        %2467 = vmatmul.mubr.bf16.gmra.mrb[0].mxu0 %v2382
        %v2468 = vpop.f32.mrb[0].mxu0
        %v2469 = vadd.f32 0.0, %v2468
        %v2470 = vpop.f32.mrb[0].mxu0
        %v2471 = vpop.f32.mrb[0].mxu0
        %v2472 = vadd.f32 0.0, %v2471
        %v2473 = vpop.f32.mrb[0].mxu0
        %2474 = vmatprep.mubr.bf16.mxu0 0
        %2475 = vmatmul.mubr.bf16.gmra.mrb[0].mxu0 %v2385
        %v2476 = vpop.f32.mrb[0].mxu0
        %v2477 = vadd.f32 0.0, %v2476
        %v2478 = vpop.f32.mrb[0].mxu0
        %v2479 = vpop.f32.mrb[0].mxu0
        %v2480 = vadd.f32 0.0, %v2479
        %v2481 = vpop.f32.mrb[0].mxu0
        %2482 = vmatprep.mubr.bf16.mxu0 0
        %2483 = vmatmul.mubr.bf16.gmra.mrb[0].mxu0 %v2388
        %v2484 = vpop.f32.mrb[0].mxu0
        %v2485 = vadd.f32 0.0, %v2484
        %v2486 = vpop.f32.mrb[0].mxu0
        %v2487 = vpop.f32.mrb[0].mxu0
        %v2488 = vadd.f32 0.0, %v2487
        %v2489 = vpop.f32.mrb[0].mxu0
        %2490 = vmatprep.mubr.bf16.mxu0 0
        %2491 = vmatmul.mubr.bf16.gmra.mrb[0].mxu0 %v2391
        %v2492 = vpop.f32.mrb[0].mxu0
        %v2493 = vadd.f32 0.0, %v2492
        %v2494 = vpop.f32.mrb[0].mxu0
        %v2495 = vpop.f32.mrb[0].mxu0
        %v2496 = vadd.f32 0.0, %v2495
        %v2497 = vpop.f32.mrb[0].mxu0
        %2498 = vmatprep.mubr.bf16.mxu0 0
        %2499 = vmatmul.mubr.bf16.gmra.mrb[0].mxu0 %v2394
        %v2500 = vpop.f32.mrb[0].mxu0
        %v2501 = vadd.f32 0.0, %v2500
        %v2502 = vpop.f32.mrb[0].mxu0
        %v2503 = vpop.f32.mrb[0].mxu0
        %v2504 = vadd.f32 0.0, %v2503
        %v2505 = vpop.f32.mrb[0].mxu0
        %2506 = vmatprep.mubr.bf16.mxu0 0
        %2507 = vmatmul.mubr.bf16.gmra.mrb[0].mxu0 %v2397
        %v2508 = vpop.f32.mrb[0].mxu0
        %v2509 = vadd.f32 0.0, %v2508
        %v2510 = vpop.f32.mrb[0].mxu0
        %v2511 = vpop.f32.mrb[0].mxu0
        %v2512 = vadd.f32 0.0, %v2511
        %v2513 = vpop.f32.mrb[0].mxu0
        %2514 = vmatprep.mubr.bf16.mxu0 0
        %2515 = vmatmul.mubr.bf16.gmra.mrb[0].mxu0 %v2400
        %v2516 = vpop.f32.mrb[0].mxu0
        %v2517 = vadd.f32 0.0, %v2516
        %v2518 = vpop.f32.mrb[0].mxu0
        %v2519 = vpop.f32.mrb[0].mxu0
        %v2520 = vadd.f32 0.0, %v2519
        %v2521 = vpop.f32.mrb[0].mxu0
        %2522 = vmatprep.mubr.bf16.mxu0 0
        %2523 = vmatmul.mubr.bf16.gmra.mrb[0].mxu0 %v2403
        %v2524 = vpop.f32.mrb[0].mxu0
        %v2525 = vadd.f32 0.0, %v2524
        %v2526 = vpop.f32.mrb[0].mxu0
        %v2527 = vpop.f32.mrb[0].mxu0
        %v2528 = vadd.f32 0.0, %v2527
        %v2529 = vpop.f32.mrb[0].mxu0
        %2530 = vmatprep.mubr.bf16.mxu0 0
        %2531 = vmatmul.mubr.bf16.gmra.mrb[0].mxu0 %v2406
        %v2532 = vpop.f32.mrb[0].mxu0
        %v2533 = vadd.f32 0.0, %v2532
        %v2534 = vpop.f32.mrb[0].mxu0
        %v2535 = vpop.f32.mrb[0].mxu0
        %v2536 = vadd.f32 0.0, %v2535
        %v2537 = vpop.f32.mrb[0].mxu0
        %2538 = vmatprep.mubr.bf16.mxu0 0
        %2539 = vmatmul.mubr.bf16.gmra.mrb[0].mxu0 %v2409
        %v2540 = vpop.f32.mrb[0].mxu0
        %v2541 = vadd.f32 0.0, %v2540
        %v2542 = vpop.f32.mrb[0].mxu0
        %v2543 = vpop.f32.mrb[0].mxu0
        %v2544 = vadd.f32 0.0, %v2543
        %v2545 = vpop.f32.mrb[0].mxu0
        %2546 = vmatprep.mubr.bf16.mxu0 0
        %2547 = vmatmul.mubr.bf16.gmra.mrb[0].mxu0 %v2412
        %v2548 = vpop.f32.mrb[0].mxu0
        %v2549 = vadd.f32 0.0, %v2548
        %v2550 = vpop.f32.mrb[0].mxu0
        %v2551 = vpop.f32.mrb[0].mxu0
        %v2552 = vadd.f32 0.0, %v2551
        %v2553 = vpop.f32.mrb[0].mxu0
        %2554 = vmatprep.mubr.bf16.mxu0 0
        %2555 = vmatmul.mubr.bf16.gmra.mrb[0].mxu0 %v2415
        %v2556 = vpop.f32.mrb[0].mxu0
        %v2557 = vadd.f32 0.0, %v2556
        %v2558 = vpop.f32.mrb[0].mxu0
        %v2559 = vpop.f32.mrb[0].mxu0
        %v2560 = vadd.f32 0.0, %v2559
        %v2561 = vpop.f32.mrb[0].mxu0
        %2562 = vmatprep.mubr.bf16.mxu0 0
        %2563 = vmatmul.mubr.bf16.gmra.mrb[0].mxu0 %v2418
        %v2564 = vpop.f32.mrb[0].mxu0
        %v2565 = vadd.f32 0.0, %v2564
        %v2566 = vpop.f32.mrb[0].mxu0
        %v2567 = vpop.f32.mrb[0].mxu0
        %v2568 = vadd.f32 0.0, %v2567
        %v2569 = vpop.f32.mrb[0].mxu0
        %2570 = vmatprep.mubr.bf16.mxu0 0
        %2571 = vmatmul.mubr.bf16.gmra.mrb[0].mxu0 %v2421
        %v2572 = vpop.f32.mrb[0].mxu0
        %v2573 = vadd.f32 0.0, %v2572
        %v2574 = vpop.f32.mrb[0].mxu0
        %v2575 = vpop.f32.mrb[0].mxu0
        %v2576 = vadd.f32 0.0, %v2575
        %v2577 = vpop.f32.mrb[0].mxu0
        %2578 = vmatprep.mubr.bf16.mxu0 0
        %2579 = vmatmul.mubr.bf16.gmra.mrb[0].mxu0 %v2424
        %v2580 = vpop.f32.mrb[0].mxu0
        %v2581 = vadd.f32 0.0, %v2580
        %v2582 = vpop.f32.mrb[0].mxu0
        %v2583 = vpop.f32.mrb[0].mxu0
        %v2584 = vadd.f32 0.0, %v2583
        %v2585 = vpop.f32.mrb[0].mxu0
        %2586 = vdwg.mxu0
        %v2587 = vmul.f32 %v2461, %v254
        %v2588 = vmul.f32 %v2464, %v255
        %v2589 = vmul.f32 %v2469, %v256
        %v2590 = vmul.f32 %v2472, %v257
        %v2591 = vmul.f32 %v2477, %v258
        %v2592 = vmul.f32 %v2480, %v259
        %v2593 = vmul.f32 %v2485, %v260
        %v2594 = vmul.f32 %v2488, %v261
        %v2595 = vmul.f32 %v2493, %v262
        %v2596 = vmul.f32 %v2496, %v263
        %v2597 = vmul.f32 %v2501, %v264
        %v2598 = vmul.f32 %v2504, %v265
        %v2599 = vmul.f32 %v2509, %v266
        %v2600 = vmul.f32 %v2512, %v267
        %v2601 = vmul.f32 %v2517, %v268
        %v2602 = vmul.f32 %v2520, %v269
        %v2603 = vmul.f32 %v2525, %v270
        %v2604 = vmul.f32 %v2528, %v271
        %v2605 = vmul.f32 %v2533, %v272
        %v2606 = vmul.f32 %v2536, %v273
        %v2607 = vmul.f32 %v2541, %v274
        %v2608 = vmul.f32 %v2544, %v275
        %v2609 = vmul.f32 %v2549, %v276
        %v2610 = vmul.f32 %v2552, %v277
        %v2611 = vmul.f32 %v2557, %v278
        %v2612 = vmul.f32 %v2560, %v279
        %v2613 = vmul.f32 %v2565, %v280
        %v2614 = vmul.f32 %v2568, %v281
        %v2615 = vmul.f32 %v2573, %v282
        %v2616 = vmul.f32 %v2576, %v283
        %v2617 = vmul.f32 %v2581, %v284
        %v2618 = vmul.f32 %v2584, %v285
        %v2619 = vadd.f32 %v2587, %v286
        %v2620 = vadd.f32 %v2588, %v287
        %v2621 = vadd.f32 %v2589, %v288
        %v2622 = vadd.f32 %v2590, %v289
        %v2623 = vadd.f32 %v2591, %v290
        %v2624 = vadd.f32 %v2592, %v291
        %v2625 = vadd.f32 %v2593, %v292
        %v2626 = vadd.f32 %v2594, %v293
        %v2627 = vadd.f32 %v2595, %v294
        %v2628 = vadd.f32 %v2596, %v295
        %v2629 = vadd.f32 %v2597, %v296
        %v2630 = vadd.f32 %v2598, %v297
        %v2631 = vadd.f32 %v2599, %v298
        %v2632 = vadd.f32 %v2600, %v299
        %v2633 = vadd.f32 %v2601, %v300
        %v2634 = vadd.f32 %v2602, %v301
        %v2635 = vadd.f32 %v2603, %v302
        %v2636 = vadd.f32 %v2604, %v303
        %v2637 = vadd.f32 %v2605, %v304
        %v2638 = vadd.f32 %v2606, %v305
        %v2639 = vadd.f32 %v2607, %v306
        %v2640 = vadd.f32 %v2608, %v307
        %v2641 = vadd.f32 %v2609, %v308
        %v2642 = vadd.f32 %v2610, %v309
        %v2643 = vadd.f32 %v2611, %v310
        %v2644 = vadd.f32 %v2612, %v311
        %v2645 = vadd.f32 %v2613, %v312
        %v2646 = vadd.f32 %v2614, %v313
        %v2647 = vadd.f32 %v2615, %v314
        %v2648 = vadd.f32 %v2616, %v315
        %v2649 = vadd.f32 %v2617, %v316
        %v2650 = vadd.f32 %v2618, %v317
        %v2651 = vpack.c.bf16 %v2620, %v2619
        %v2652 = vpack.c.bf16 %v2622, %v2621
        %v2653 = vpack.c.bf16 %v2624, %v2623
        %v2654 = vpack.c.bf16 %v2626, %v2625
        %v2655 = vpack.c.bf16 %v2628, %v2627
        %v2656 = vpack.c.bf16 %v2630, %v2629
        %v2657 = vpack.c.bf16 %v2632, %v2631
        %v2658 = vpack.c.bf16 %v2634, %v2633
        %v2659 = vpack.c.bf16 %v2636, %v2635
        %v2660 = vpack.c.bf16 %v2638, %v2637
        %v2661 = vpack.c.bf16 %v2640, %v2639
        %v2662 = vpack.c.bf16 %v2642, %v2641
        %v2663 = vpack.c.bf16 %v2644, %v2643
        %v2664 = vpack.c.bf16 %v2646, %v2645
        %v2665 = vpack.c.bf16 %v2648, %v2647
        %v2666 = vpack.c.bf16 %v2650, %v2649
        %2667 = vmatprep.subr.bf16.mxu0 0
        %2668 = vmatpush1.bf16.msra.mxu0 %v2651
        %2669 = vmatprep.subr.bf16.mxu0 0
        %2670 = vmatpush1.bf16.msra.mxu0 %v2652
        %2671 = vmatprep.subr.bf16.mxu0 0
        %2672 = vmatpush1.bf16.msra.mxu0 %v2653
        %2673 = vmatprep.subr.bf16.mxu0 0
        %2674 = vmatpush1.bf16.msra.mxu0 %v2654
        %2675 = vmatprep.subr.bf16.mxu0 0
        %2676 = vmatpush1.bf16.msra.mxu0 0
        %2677 = vmatprep.subr.bf16.mxu0 0
        %2678 = vmatpush1.bf16.msra.mxu0 0
        %2679 = vmatprep.subr.bf16.mxu0 0
        %2680 = vmatpush1.bf16.msra.mxu0 0
        %2681 = vmatprep.subr.bf16.mxu0 0
        %2682 = vmatpush1.bf16.msra.mxu0 0
        %2683 = vmatprep.subr.bf16.mxu0 0
        %2684 = vmatpush1.bf16.msra.mxu0 0
        %2685 = vmatprep.subr.bf16.mxu0 0
        %2686 = vmatpush1.bf16.msra.mxu0 0
        %2687 = vmatprep.subr.bf16.mxu0 0
        %2688 = vmatpush1.bf16.msra.mxu0 0
        %2689 = vmatprep.subr.bf16.mxu0 0
        %2690 = vmatpush1.bf16.msra.mxu0 0
        %2691 = vmatprep.subr.bf16.mxu0 0
        %2692 = vmatpush1.bf16.msra.mxu0 0
        %2693 = vmatprep.subr.bf16.mxu0 0
        %2694 = vmatpush1.bf16.msra.mxu0 0
        %2695 = vmatprep.subr.bf16.mxu0 0
        %2696 = vmatpush1.bf16.msra.mxu0 0
        %2697 = vmatprep.subr.bf16.mxu0 0
        %2698 = vmatpush1.bf16.msra.mxu0 0
        %2699 = vmatprep.mubr.bf16.mxu0 0
        %2700 = vmatmul.mubr.bf16.gmra.mrb[0].mxu0 %v372
        %v2701 = vpop.f32.mrb[0].mxu0
        %v2702 = vadd.f32 0.0, %v2701
        %v2703 = vpop.f32.mrb[0].mxu0
        %v2704 = vpop.f32.mrb[0].mxu0
        %v2705 = vadd.f32 0.0, %v2704
        %v2706 = vpop.f32.mrb[0].mxu0
        %2707 = vmatprep.mubr.bf16.mxu0 0
        %2708 = vmatmul.mubr.bf16.gmra.mrb[0].mxu0 %v375
        %v2709 = vpop.f32.mrb[0].mxu0
        %v2710 = vadd.f32 0.0, %v2709
        %v2711 = vpop.f32.mrb[0].mxu0
        %v2712 = vpop.f32.mrb[0].mxu0
        %v2713 = vadd.f32 0.0, %v2712
        %v2714 = vpop.f32.mrb[0].mxu0
        %2715 = vmatprep.mubr.bf16.mxu0 0
        %2716 = vmatmul.mubr.bf16.gmra.mrb[0].mxu0 %v378
        %v2717 = vpop.f32.mrb[0].mxu0
        %v2718 = vadd.f32 0.0, %v2717
        %v2719 = vpop.f32.mrb[0].mxu0
        %v2720 = vpop.f32.mrb[0].mxu0
        %v2721 = vadd.f32 0.0, %v2720
        %v2722 = vpop.f32.mrb[0].mxu0
        %2723 = vmatprep.mubr.bf16.mxu0 0
        %2724 = vmatmul.mubr.bf16.gmra.mrb[0].mxu0 %v381
        %v2725 = vpop.f32.mrb[0].mxu0
        %v2726 = vadd.f32 0.0, %v2725
        %v2727 = vpop.f32.mrb[0].mxu0
        %v2728 = vpop.f32.mrb[0].mxu0
        %v2729 = vadd.f32 0.0, %v2728
        %v2730 = vpop.f32.mrb[0].mxu0
        %2731 = vdwg.mxu0
        %2732 = vmatprep.subr.bf16.mxu0 0
        %2733 = vmatpush1.bf16.msra.mxu0 %v2655
        %2734 = vmatprep.subr.bf16.mxu0 0
        %2735 = vmatpush1.bf16.msra.mxu0 %v2656
        %2736 = vmatprep.subr.bf16.mxu0 0
        %2737 = vmatpush1.bf16.msra.mxu0 %v2657
        %2738 = vmatprep.subr.bf16.mxu0 0
        %2739 = vmatpush1.bf16.msra.mxu0 %v2658
        %2740 = vmatprep.subr.bf16.mxu0 0
        %2741 = vmatpush1.bf16.msra.mxu0 0
        %2742 = vmatprep.subr.bf16.mxu0 0
        %2743 = vmatpush1.bf16.msra.mxu0 0
        %2744 = vmatprep.subr.bf16.mxu0 0
        %2745 = vmatpush1.bf16.msra.mxu0 0
        %2746 = vmatprep.subr.bf16.mxu0 0
        %2747 = vmatpush1.bf16.msra.mxu0 0
        %2748 = vmatprep.subr.bf16.mxu0 0
        %2749 = vmatpush1.bf16.msra.mxu0 0
        %2750 = vmatprep.subr.bf16.mxu0 0
        %2751 = vmatpush1.bf16.msra.mxu0 0
        %2752 = vmatprep.subr.bf16.mxu0 0
        %2753 = vmatpush1.bf16.msra.mxu0 0
        %2754 = vmatprep.subr.bf16.mxu0 0
        %2755 = vmatpush1.bf16.msra.mxu0 0
        %2756 = vmatprep.subr.bf16.mxu0 0
        %2757 = vmatpush1.bf16.msra.mxu0 0
        %2758 = vmatprep.subr.bf16.mxu0 0
        %2759 = vmatpush1.bf16.msra.mxu0 0
        %2760 = vmatprep.subr.bf16.mxu0 0
        %2761 = vmatpush1.bf16.msra.mxu0 0
        %2762 = vmatprep.subr.bf16.mxu0 0
        %2763 = vmatpush1.bf16.msra.mxu0 0
        %2764 = vmatprep.mubr.bf16.mxu0 0
        %2765 = vmatmul.mubr.bf16.gmra.mrb[0].mxu0 %v372
        %v2766 = vpop.f32.mrb[0].mxu0
        %v2767 = vadd.f32 0.0, %v2766
        %v2768 = vpop.f32.mrb[0].mxu0
        %v2769 = vpop.f32.mrb[0].mxu0
        %v2770 = vadd.f32 0.0, %v2769
        %v2771 = vpop.f32.mrb[0].mxu0
        %2772 = vmatprep.mubr.bf16.mxu0 0
        %2773 = vmatmul.mubr.bf16.gmra.mrb[0].mxu0 %v375
        %v2774 = vpop.f32.mrb[0].mxu0
        %v2775 = vadd.f32 0.0, %v2774
        %v2776 = vpop.f32.mrb[0].mxu0
        %v2777 = vpop.f32.mrb[0].mxu0
        %v2778 = vadd.f32 0.0, %v2777
        %v2779 = vpop.f32.mrb[0].mxu0
        %2780 = vmatprep.mubr.bf16.mxu0 0
        %2781 = vmatmul.mubr.bf16.gmra.mrb[0].mxu0 %v378
        %v2782 = vpop.f32.mrb[0].mxu0
        %v2783 = vadd.f32 0.0, %v2782
        %v2784 = vpop.f32.mrb[0].mxu0
        %v2785 = vpop.f32.mrb[0].mxu0
        %v2786 = vadd.f32 0.0, %v2785
        %v2787 = vpop.f32.mrb[0].mxu0
        %2788 = vmatprep.mubr.bf16.mxu0 0
        %2789 = vmatmul.mubr.bf16.gmra.mrb[0].mxu0 %v381
        %v2790 = vpop.f32.mrb[0].mxu0
        %v2791 = vadd.f32 0.0, %v2790
        %v2792 = vpop.f32.mrb[0].mxu0
        %v2793 = vpop.f32.mrb[0].mxu0
        %v2794 = vadd.f32 0.0, %v2793
        %v2795 = vpop.f32.mrb[0].mxu0
        %2796 = vdwg.mxu0
        %2797 = vmatprep.subr.bf16.mxu0 0
        %2798 = vmatpush1.bf16.msra.mxu0 %v2659
        %2799 = vmatprep.subr.bf16.mxu0 0
        %2800 = vmatpush1.bf16.msra.mxu0 %v2660
        %2801 = vmatprep.subr.bf16.mxu0 0
        %2802 = vmatpush1.bf16.msra.mxu0 %v2661
        %2803 = vmatprep.subr.bf16.mxu0 0
        %2804 = vmatpush1.bf16.msra.mxu0 %v2662
        %2805 = vmatprep.subr.bf16.mxu0 0
        %2806 = vmatpush1.bf16.msra.mxu0 0
        %2807 = vmatprep.subr.bf16.mxu0 0
        %2808 = vmatpush1.bf16.msra.mxu0 0
        %2809 = vmatprep.subr.bf16.mxu0 0
        %2810 = vmatpush1.bf16.msra.mxu0 0
        %2811 = vmatprep.subr.bf16.mxu0 0
        %2812 = vmatpush1.bf16.msra.mxu0 0
        %2813 = vmatprep.subr.bf16.mxu0 0
        %2814 = vmatpush1.bf16.msra.mxu0 0
        %2815 = vmatprep.subr.bf16.mxu0 0
        %2816 = vmatpush1.bf16.msra.mxu0 0
        %2817 = vmatprep.subr.bf16.mxu0 0
        %2818 = vmatpush1.bf16.msra.mxu0 0
        %2819 = vmatprep.subr.bf16.mxu0 0
        %2820 = vmatpush1.bf16.msra.mxu0 0
        %2821 = vmatprep.subr.bf16.mxu0 0
        %2822 = vmatpush1.bf16.msra.mxu0 0
        %2823 = vmatprep.subr.bf16.mxu0 0
        %2824 = vmatpush1.bf16.msra.mxu0 0
        %2825 = vmatprep.subr.bf16.mxu0 0
        %2826 = vmatpush1.bf16.msra.mxu0 0
        %2827 = vmatprep.subr.bf16.mxu0 0
        %2828 = vmatpush1.bf16.msra.mxu0 0
        %2829 = vmatprep.mubr.bf16.mxu0 0
        %2830 = vmatmul.mubr.bf16.gmra.mrb[0].mxu0 %v372
        %v2831 = vpop.f32.mrb[0].mxu0
        %v2832 = vadd.f32 0.0, %v2831
        %v2833 = vpop.f32.mrb[0].mxu0
        %v2834 = vpop.f32.mrb[0].mxu0
        %v2835 = vadd.f32 0.0, %v2834
        %v2836 = vpop.f32.mrb[0].mxu0
        %2837 = vmatprep.mubr.bf16.mxu0 0
        %2838 = vmatmul.mubr.bf16.gmra.mrb[0].mxu0 %v375
        %v2839 = vpop.f32.mrb[0].mxu0
        %v2840 = vadd.f32 0.0, %v2839
        %v2841 = vpop.f32.mrb[0].mxu0
        %v2842 = vpop.f32.mrb[0].mxu0
        %v2843 = vadd.f32 0.0, %v2842
        %v2844 = vpop.f32.mrb[0].mxu0
        %2845 = vmatprep.mubr.bf16.mxu0 0
        %2846 = vmatmul.mubr.bf16.gmra.mrb[0].mxu0 %v378
        %v2847 = vpop.f32.mrb[0].mxu0
        %v2848 = vadd.f32 0.0, %v2847
        %v2849 = vpop.f32.mrb[0].mxu0
        %v2850 = vpop.f32.mrb[0].mxu0
        %v2851 = vadd.f32 0.0, %v2850
        %v2852 = vpop.f32.mrb[0].mxu0
        %2853 = vmatprep.mubr.bf16.mxu0 0
        %2854 = vmatmul.mubr.bf16.gmra.mrb[0].mxu0 %v381
        %v2855 = vpop.f32.mrb[0].mxu0
        %v2856 = vadd.f32 0.0, %v2855
        %v2857 = vpop.f32.mrb[0].mxu0
        %v2858 = vpop.f32.mrb[0].mxu0
        %v2859 = vadd.f32 0.0, %v2858
        %v2860 = vpop.f32.mrb[0].mxu0
        %2861 = vdwg.mxu0
        %2862 = vmatprep.subr.bf16.mxu0 0
        %2863 = vmatpush1.bf16.msra.mxu0 %v2663
        %2864 = vmatprep.subr.bf16.mxu0 0
        %2865 = vmatpush1.bf16.msra.mxu0 %v2664
        %2866 = vmatprep.subr.bf16.mxu0 0
        %2867 = vmatpush1.bf16.msra.mxu0 %v2665
        %2868 = vmatprep.subr.bf16.mxu0 0
        %2869 = vmatpush1.bf16.msra.mxu0 %v2666
        %2870 = vmatprep.subr.bf16.mxu0 0
        %2871 = vmatpush1.bf16.msra.mxu0 0
        %2872 = vmatprep.subr.bf16.mxu0 0
        %2873 = vmatpush1.bf16.msra.mxu0 0
        %2874 = vmatprep.subr.bf16.mxu0 0
        %2875 = vmatpush1.bf16.msra.mxu0 0
        %2876 = vmatprep.subr.bf16.mxu0 0
        %2877 = vmatpush1.bf16.msra.mxu0 0
        %2878 = vmatprep.subr.bf16.mxu0 0
        %2879 = vmatpush1.bf16.msra.mxu0 0
        %2880 = vmatprep.subr.bf16.mxu0 0
        %2881 = vmatpush1.bf16.msra.mxu0 0
        %2882 = vmatprep.subr.bf16.mxu0 0
        %2883 = vmatpush1.bf16.msra.mxu0 0
        %2884 = vmatprep.subr.bf16.mxu0 0
        %2885 = vmatpush1.bf16.msra.mxu0 0
        %2886 = vmatprep.subr.bf16.mxu0 0
        %2887 = vmatpush1.bf16.msra.mxu0 0
        %2888 = vmatprep.subr.bf16.mxu0 0
        %2889 = vmatpush1.bf16.msra.mxu0 0
        %2890 = vmatprep.subr.bf16.mxu0 0
        %2891 = vmatpush1.bf16.msra.mxu0 0
        %2892 = vmatprep.subr.bf16.mxu0 0
        %2893 = vmatpush1.bf16.msra.mxu0 0
        %2894 = vmatprep.mubr.bf16.mxu0 0
        %2895 = vmatmul.mubr.bf16.gmra.mrb[0].mxu0 %v372
        %v2896 = vpop.f32.mrb[0].mxu0
        %v2897 = vadd.f32 0.0, %v2896
        %v2898 = vpop.f32.mrb[0].mxu0
        %v2899 = vpop.f32.mrb[0].mxu0
        %v2900 = vadd.f32 0.0, %v2899
        %v2901 = vpop.f32.mrb[0].mxu0
        %2902 = vmatprep.mubr.bf16.mxu0 0
        %2903 = vmatmul.mubr.bf16.gmra.mrb[0].mxu0 %v375
        %v2904 = vpop.f32.mrb[0].mxu0
        %v2905 = vadd.f32 0.0, %v2904
        %v2906 = vpop.f32.mrb[0].mxu0
        %v2907 = vpop.f32.mrb[0].mxu0
        %v2908 = vadd.f32 0.0, %v2907
        %v2909 = vpop.f32.mrb[0].mxu0
        %2910 = vmatprep.mubr.bf16.mxu0 0
        %2911 = vmatmul.mubr.bf16.gmra.mrb[0].mxu0 %v378
        %v2912 = vpop.f32.mrb[0].mxu0
        %v2913 = vadd.f32 0.0, %v2912
        %v2914 = vpop.f32.mrb[0].mxu0
        %v2915 = vpop.f32.mrb[0].mxu0
        %v2916 = vadd.f32 0.0, %v2915
        %v2917 = vpop.f32.mrb[0].mxu0
        %2918 = vmatprep.mubr.bf16.mxu0 0
        %2919 = vmatmul.mubr.bf16.gmra.mrb[0].mxu0 %v381
        %v2920 = vpop.f32.mrb[0].mxu0
        %v2921 = vadd.f32 0.0, %v2920
        %v2922 = vpop.f32.mrb[0].mxu0
        %v2923 = vpop.f32.mrb[0].mxu0
        %v2924 = vadd.f32 0.0, %v2923
        %v2925 = vpop.f32.mrb[0].mxu0
        %2926 = vdwg.mxu0
        %v2927 = vpack.c.bf16 %v2705, %v2702
        %v2928 = vpack.c.bf16 %v2713, %v2710
        %v2929 = vpack.c.bf16 %v2721, %v2718
        %v2930 = vpack.c.bf16 %v2729, %v2726
        %v2931 = vpack.c.bf16 %v2770, %v2767
        %v2932 = vpack.c.bf16 %v2778, %v2775
        %v2933 = vpack.c.bf16 %v2786, %v2783
        %v2934 = vpack.c.bf16 %v2794, %v2791
        %v2935 = vpack.c.bf16 %v2835, %v2832
        %v2936 = vpack.c.bf16 %v2843, %v2840
        %v2937 = vpack.c.bf16 %v2851, %v2848
        %v2938 = vpack.c.bf16 %v2859, %v2856
        %v2939 = vpack.c.bf16 %v2900, %v2897
        %v2940 = vpack.c.bf16 %v2908, %v2905
        %v2941 = vpack.c.bf16 %v2916, %v2913
        %v2942 = vpack.c.bf16 %v2924, %v2921
        %v2944 = vsel %vm370, %v2927, 0
        %v2947 = vsel %vm370, %v2928, 0
        %v2950 = vsel %vm370, %v2929, 0
        %v2953 = vsel %vm370, %v2930, 0
        %v2956 = vsel %vm370, %v2931, 0
        %v2959 = vsel %vm370, %v2932, 0
        %v2962 = vsel %vm370, %v2933, 0
        %v2965 = vsel %vm370, %v2934, 0
        %v2968 = vsel %vm370, %v2935, 0
        %v2971 = vsel %vm370, %v2936, 0
        %v2974 = vsel %vm370, %v2937, 0
        %v2977 = vsel %vm370, %v2938, 0
        %v2980 = vsel %vm370, %v2939, 0
        %v2983 = vsel %vm370, %v2940, 0
        %v2986 = vsel %vm370, %v2941, 0
        %v2989 = vsel %vm370, %v2942, 0
        %2991 = vmatprep.subr.bf16.mxu0 0
        %2992 = vmatpush1.bf16.msra.mxu0 %v675
        %2993 = vmatprep.subr.bf16.mxu0 0
        %2994 = vmatpush1.bf16.msra.mxu0 %v676
        %2995 = vmatprep.subr.bf16.mxu0 0
        %2996 = vmatpush1.bf16.msra.mxu0 %v677
        %2997 = vmatprep.subr.bf16.mxu0 0
        %2998 = vmatpush1.bf16.msra.mxu0 %v678
        %2999 = vmatprep.subr.bf16.mxu0 0
        %3000 = vmatpush1.bf16.msra.mxu0 0
        %3001 = vmatprep.subr.bf16.mxu0 0
        %3002 = vmatpush1.bf16.msra.mxu0 0
        %3003 = vmatprep.subr.bf16.mxu0 0
        %3004 = vmatpush1.bf16.msra.mxu0 0
        %3005 = vmatprep.subr.bf16.mxu0 0
        %3006 = vmatpush1.bf16.msra.mxu0 0
        %3007 = vmatprep.subr.bf16.mxu0 0
        %3008 = vmatpush1.bf16.msra.mxu0 0
        %3009 = vmatprep.subr.bf16.mxu0 0
        %3010 = vmatpush1.bf16.msra.mxu0 0
        %3011 = vmatprep.subr.bf16.mxu0 0
        %3012 = vmatpush1.bf16.msra.mxu0 0
        %3013 = vmatprep.subr.bf16.mxu0 0
        %3014 = vmatpush1.bf16.msra.mxu0 0
        %3015 = vmatprep.subr.bf16.mxu0 0
        %3016 = vmatpush1.bf16.msra.mxu0 0
        %3017 = vmatprep.subr.bf16.mxu0 0
        %3018 = vmatpush1.bf16.msra.mxu0 0
        %3019 = vmatprep.subr.bf16.mxu0 0
        %3020 = vmatpush1.bf16.msra.mxu0 0
        %3021 = vmatprep.subr.bf16.mxu0 0
        %3022 = vmatpush1.bf16.msra.mxu0 0
        %3023 = vmatprep.mubr.bf16.mxu0 0
        %3024 = vmatmul.mubr.bf16.gmra.mrb[0].mxu0 %v2944
        %v3025 = vpop.f32.mrb[0].mxu0
        %v3026 = vadd.f32 0.0, %v3025
        %v3027 = vpop.f32.mrb[0].mxu0
        %v3028 = vpop.f32.mrb[0].mxu0
        %v3029 = vadd.f32 0.0, %v3028
        %v3030 = vpop.f32.mrb[0].mxu0
        %3031 = vmatprep.mubr.bf16.mxu0 0
        %3032 = vmatmul.mubr.bf16.gmra.mrb[0].mxu0 %v2947
        %v3033 = vpop.f32.mrb[0].mxu0
        %v3034 = vadd.f32 0.0, %v3033
        %v3035 = vpop.f32.mrb[0].mxu0
        %v3036 = vpop.f32.mrb[0].mxu0
        %v3037 = vadd.f32 0.0, %v3036
        %v3038 = vpop.f32.mrb[0].mxu0
        %3039 = vmatprep.mubr.bf16.mxu0 0
        %3040 = vmatmul.mubr.bf16.gmra.mrb[0].mxu0 %v2950
        %v3041 = vpop.f32.mrb[0].mxu0
        %v3042 = vadd.f32 0.0, %v3041
        %v3043 = vpop.f32.mrb[0].mxu0
        %v3044 = vpop.f32.mrb[0].mxu0
        %v3045 = vadd.f32 0.0, %v3044
        %v3046 = vpop.f32.mrb[0].mxu0
        %3047 = vmatprep.mubr.bf16.mxu0 0
        %3048 = vmatmul.mubr.bf16.gmra.mrb[0].mxu0 %v2953
        %v3049 = vpop.f32.mrb[0].mxu0
        %v3050 = vadd.f32 0.0, %v3049
        %v3051 = vpop.f32.mrb[0].mxu0
        %v3052 = vpop.f32.mrb[0].mxu0
        %v3053 = vadd.f32 0.0, %v3052
        %v3054 = vpop.f32.mrb[0].mxu0
        %3055 = vmatprep.mubr.bf16.mxu0 0
        %3056 = vmatmul.mubr.bf16.gmra.mrb[0].mxu0 %v2956
        %v3057 = vpop.f32.mrb[0].mxu0
        %v3058 = vadd.f32 0.0, %v3057
        %v3059 = vpop.f32.mrb[0].mxu0
        %v3060 = vpop.f32.mrb[0].mxu0
        %v3061 = vadd.f32 0.0, %v3060
        %v3062 = vpop.f32.mrb[0].mxu0
        %3063 = vmatprep.mubr.bf16.mxu0 0
        %3064 = vmatmul.mubr.bf16.gmra.mrb[0].mxu0 %v2959
        %v3065 = vpop.f32.mrb[0].mxu0
        %v3066 = vadd.f32 0.0, %v3065
        %v3067 = vpop.f32.mrb[0].mxu0
        %v3068 = vpop.f32.mrb[0].mxu0
        %v3069 = vadd.f32 0.0, %v3068
        %v3070 = vpop.f32.mrb[0].mxu0
        %3071 = vmatprep.mubr.bf16.mxu0 0
        %3072 = vmatmul.mubr.bf16.gmra.mrb[0].mxu0 %v2962
        %v3073 = vpop.f32.mrb[0].mxu0
        %v3074 = vadd.f32 0.0, %v3073
        %v3075 = vpop.f32.mrb[0].mxu0
        %v3076 = vpop.f32.mrb[0].mxu0
        %v3077 = vadd.f32 0.0, %v3076
        %v3078 = vpop.f32.mrb[0].mxu0
        %3079 = vmatprep.mubr.bf16.mxu0 0
        %3080 = vmatmul.mubr.bf16.gmra.mrb[0].mxu0 %v2965
        %v3081 = vpop.f32.mrb[0].mxu0
        %v3082 = vadd.f32 0.0, %v3081
        %v3083 = vpop.f32.mrb[0].mxu0
        %v3084 = vpop.f32.mrb[0].mxu0
        %v3085 = vadd.f32 0.0, %v3084
        %v3086 = vpop.f32.mrb[0].mxu0
        %3087 = vmatprep.mubr.bf16.mxu0 0
        %3088 = vmatmul.mubr.bf16.gmra.mrb[0].mxu0 %v2968
        %v3089 = vpop.f32.mrb[0].mxu0
        %v3090 = vadd.f32 0.0, %v3089
        %v3091 = vpop.f32.mrb[0].mxu0
        %v3092 = vpop.f32.mrb[0].mxu0
        %v3093 = vadd.f32 0.0, %v3092
        %v3094 = vpop.f32.mrb[0].mxu0
        %3095 = vmatprep.mubr.bf16.mxu0 0
        %3096 = vmatmul.mubr.bf16.gmra.mrb[0].mxu0 %v2971
        %v3097 = vpop.f32.mrb[0].mxu0
        %v3098 = vadd.f32 0.0, %v3097
        %v3099 = vpop.f32.mrb[0].mxu0
        %v3100 = vpop.f32.mrb[0].mxu0
        %v3101 = vadd.f32 0.0, %v3100
        %v3102 = vpop.f32.mrb[0].mxu0
        %3103 = vmatprep.mubr.bf16.mxu0 0
        %3104 = vmatmul.mubr.bf16.gmra.mrb[0].mxu0 %v2974
        %v3105 = vpop.f32.mrb[0].mxu0
        %v3106 = vadd.f32 0.0, %v3105
        %v3107 = vpop.f32.mrb[0].mxu0
        %v3108 = vpop.f32.mrb[0].mxu0
        %v3109 = vadd.f32 0.0, %v3108
        %v3110 = vpop.f32.mrb[0].mxu0
        %3111 = vmatprep.mubr.bf16.mxu0 0
        %3112 = vmatmul.mubr.bf16.gmra.mrb[0].mxu0 %v2977
        %v3113 = vpop.f32.mrb[0].mxu0
        %v3114 = vadd.f32 0.0, %v3113
        %v3115 = vpop.f32.mrb[0].mxu0
        %v3116 = vpop.f32.mrb[0].mxu0
        %v3117 = vadd.f32 0.0, %v3116
        %v3118 = vpop.f32.mrb[0].mxu0
        %3119 = vmatprep.mubr.bf16.mxu0 0
        %3120 = vmatmul.mubr.bf16.gmra.mrb[0].mxu0 %v2980
        %v3121 = vpop.f32.mrb[0].mxu0
        %v3122 = vadd.f32 0.0, %v3121
        %v3123 = vpop.f32.mrb[0].mxu0
        %v3124 = vpop.f32.mrb[0].mxu0
        %v3125 = vadd.f32 0.0, %v3124
        %v3126 = vpop.f32.mrb[0].mxu0
        %3127 = vmatprep.mubr.bf16.mxu0 0
        %3128 = vmatmul.mubr.bf16.gmra.mrb[0].mxu0 %v2983
        %v3129 = vpop.f32.mrb[0].mxu0
        %v3130 = vadd.f32 0.0, %v3129
        %v3131 = vpop.f32.mrb[0].mxu0
        %v3132 = vpop.f32.mrb[0].mxu0
        %v3133 = vadd.f32 0.0, %v3132
        %v3134 = vpop.f32.mrb[0].mxu0
        %3135 = vmatprep.mubr.bf16.mxu0 0
        %3136 = vmatmul.mubr.bf16.gmra.mrb[0].mxu0 %v2986
        %v3137 = vpop.f32.mrb[0].mxu0
        %v3138 = vadd.f32 0.0, %v3137
        %v3139 = vpop.f32.mrb[0].mxu0
        %v3140 = vpop.f32.mrb[0].mxu0
        %v3141 = vadd.f32 0.0, %v3140
        %v3142 = vpop.f32.mrb[0].mxu0
        %3143 = vmatprep.mubr.bf16.mxu0 0
        %3144 = vmatmul.mubr.bf16.gmra.mrb[0].mxu0 %v2989
        %v3145 = vpop.f32.mrb[0].mxu0
        %v3146 = vadd.f32 0.0, %v3145
        %v3147 = vpop.f32.mrb[0].mxu0
        %v3148 = vpop.f32.mrb[0].mxu0
        %v3149 = vadd.f32 0.0, %v3148
        %v3150 = vpop.f32.mrb[0].mxu0
        %3151 = vdwg.mxu0
        %v3152 = vmul.f32 %v3026, %v254
        %v3153 = vmul.f32 %v3029, %v255
        %v3154 = vmul.f32 %v3034, %v256
        %v3155 = vmul.f32 %v3037, %v257
        %v3156 = vmul.f32 %v3042, %v258
        %v3157 = vmul.f32 %v3045, %v259
        %v3158 = vmul.f32 %v3050, %v260
        %v3159 = vmul.f32 %v3053, %v261
        %v3160 = vmul.f32 %v3058, %v262
        %v3161 = vmul.f32 %v3061, %v263
        %v3162 = vmul.f32 %v3066, %v264
        %v3163 = vmul.f32 %v3069, %v265
        %v3164 = vmul.f32 %v3074, %v266
        %v3165 = vmul.f32 %v3077, %v267
        %v3166 = vmul.f32 %v3082, %v268
        %v3167 = vmul.f32 %v3085, %v269
        %v3168 = vmul.f32 %v3090, %v270
        %v3169 = vmul.f32 %v3093, %v271
        %v3170 = vmul.f32 %v3098, %v272
        %v3171 = vmul.f32 %v3101, %v273
        %v3172 = vmul.f32 %v3106, %v274
        %v3173 = vmul.f32 %v3109, %v275
        %v3174 = vmul.f32 %v3114, %v276
        %v3175 = vmul.f32 %v3117, %v277
        %v3176 = vmul.f32 %v3122, %v278
        %v3177 = vmul.f32 %v3125, %v279
        %v3178 = vmul.f32 %v3130, %v280
        %v3179 = vmul.f32 %v3133, %v281
        %v3180 = vmul.f32 %v3138, %v282
        %v3181 = vmul.f32 %v3141, %v283
        %v3182 = vmul.f32 %v3146, %v284
        %v3183 = vmul.f32 %v3149, %v285
        %v3184 = vadd.f32 %v3152, %v286
        %v3185 = vadd.f32 %v3153, %v287
        %v3186 = vadd.f32 %v3154, %v288
        %v3187 = vadd.f32 %v3155, %v289
        %v3188 = vadd.f32 %v3156, %v290
        %v3189 = vadd.f32 %v3157, %v291
        %v3190 = vadd.f32 %v3158, %v292
        %v3191 = vadd.f32 %v3159, %v293
        %v3192 = vadd.f32 %v3160, %v294
        %v3193 = vadd.f32 %v3161, %v295
        %v3194 = vadd.f32 %v3162, %v296
        %v3195 = vadd.f32 %v3163, %v297
        %v3196 = vadd.f32 %v3164, %v298
        %v3197 = vadd.f32 %v3165, %v299
        %v3198 = vadd.f32 %v3166, %v300
        %v3199 = vadd.f32 %v3167, %v301
        %v3200 = vadd.f32 %v3168, %v302
        %v3201 = vadd.f32 %v3169, %v303
        %v3202 = vadd.f32 %v3170, %v304
        %v3203 = vadd.f32 %v3171, %v305
        %v3204 = vadd.f32 %v3172, %v306
        %v3205 = vadd.f32 %v3173, %v307
        %v3206 = vadd.f32 %v3174, %v308
        %v3207 = vadd.f32 %v3175, %v309
        %v3208 = vadd.f32 %v3176, %v310
        %v3209 = vadd.f32 %v3177, %v311
        %v3210 = vadd.f32 %v3178, %v312
        %v3211 = vadd.f32 %v3179, %v313
        %v3212 = vadd.f32 %v3180, %v314
        %v3213 = vadd.f32 %v3181, %v315
        %v3214 = vadd.f32 %v3182, %v316
        %v3215 = vadd.f32 %v3183, %v317
        %v3216 = vpack.c.bf16 %v3185, %v3184
        %v3217 = vpack.c.bf16 %v3187, %v3186
        %v3218 = vpack.c.bf16 %v3189, %v3188
        %v3219 = vpack.c.bf16 %v3191, %v3190
        %v3220 = vpack.c.bf16 %v3193, %v3192
        %v3221 = vpack.c.bf16 %v3195, %v3194
        %v3222 = vpack.c.bf16 %v3197, %v3196
        %v3223 = vpack.c.bf16 %v3199, %v3198
        %v3224 = vpack.c.bf16 %v3201, %v3200
        %v3225 = vpack.c.bf16 %v3203, %v3202
        %v3226 = vpack.c.bf16 %v3205, %v3204
        %v3227 = vpack.c.bf16 %v3207, %v3206
        %v3228 = vpack.c.bf16 %v3209, %v3208
        %v3229 = vpack.c.bf16 %v3211, %v3210
        %v3230 = vpack.c.bf16 %v3213, %v3212
        %v3231 = vpack.c.bf16 %v3215, %v3214
        %3232 = vmatprep.subr.bf16.mxu0 0
        %3233 = vmatpush1.bf16.msra.mxu0 %v3216
        %3234 = vmatprep.subr.bf16.mxu0 0
        %3235 = vmatpush1.bf16.msra.mxu0 %v3217
        %3236 = vmatprep.subr.bf16.mxu0 0
        %3237 = vmatpush1.bf16.msra.mxu0 %v3218
        %3238 = vmatprep.subr.bf16.mxu0 0
        %3239 = vmatpush1.bf16.msra.mxu0 %v3219
        %3240 = vmatprep.subr.bf16.mxu0 0
        %3241 = vmatpush1.bf16.msra.mxu0 0
        %3242 = vmatprep.subr.bf16.mxu0 0
        %3243 = vmatpush1.bf16.msra.mxu0 0
        %3244 = vmatprep.subr.bf16.mxu0 0
        %3245 = vmatpush1.bf16.msra.mxu0 0
        %3246 = vmatprep.subr.bf16.mxu0 0
        %3247 = vmatpush1.bf16.msra.mxu0 0
        %3248 = vmatprep.subr.bf16.mxu0 0
        %3249 = vmatpush1.bf16.msra.mxu0 0
        %3250 = vmatprep.subr.bf16.mxu0 0
        %3251 = vmatpush1.bf16.msra.mxu0 0
        %3252 = vmatprep.subr.bf16.mxu0 0
        %3253 = vmatpush1.bf16.msra.mxu0 0
        %3254 = vmatprep.subr.bf16.mxu0 0
        %3255 = vmatpush1.bf16.msra.mxu0 0
        %3256 = vmatprep.subr.bf16.mxu0 0
        %3257 = vmatpush1.bf16.msra.mxu0 0
        %3258 = vmatprep.subr.bf16.mxu0 0
        %3259 = vmatpush1.bf16.msra.mxu0 0
        %3260 = vmatprep.subr.bf16.mxu0 0
        %3261 = vmatpush1.bf16.msra.mxu0 0
        %3262 = vmatprep.subr.bf16.mxu0 0
        %3263 = vmatpush1.bf16.msra.mxu0 0
        %3264 = vmatprep.mubr.bf16.mxu0 0
        %3265 = vmatmul.mubr.bf16.gmra.mrb[0].mxu0 %v372
        %v3266 = vpop.f32.mrb[0].mxu0
        %v3267 = vadd.f32 0.0, %v3266
        %v3268 = vpop.f32.mrb[0].mxu0
        %v3269 = vpop.f32.mrb[0].mxu0
        %v3270 = vadd.f32 0.0, %v3269
        %v3271 = vpop.f32.mrb[0].mxu0
        %3272 = vmatprep.mubr.bf16.mxu0 0
        %3273 = vmatmul.mubr.bf16.gmra.mrb[0].mxu0 %v375
        %v3274 = vpop.f32.mrb[0].mxu0
        %v3275 = vadd.f32 0.0, %v3274
        %v3276 = vpop.f32.mrb[0].mxu0
        %v3277 = vpop.f32.mrb[0].mxu0
        %v3278 = vadd.f32 0.0, %v3277
        %v3279 = vpop.f32.mrb[0].mxu0
        %3280 = vmatprep.mubr.bf16.mxu0 0
        %3281 = vmatmul.mubr.bf16.gmra.mrb[0].mxu0 %v378
        %v3282 = vpop.f32.mrb[0].mxu0
        %v3283 = vadd.f32 0.0, %v3282
        %v3284 = vpop.f32.mrb[0].mxu0
        %v3285 = vpop.f32.mrb[0].mxu0
        %v3286 = vadd.f32 0.0, %v3285
        %v3287 = vpop.f32.mrb[0].mxu0
        %3288 = vmatprep.mubr.bf16.mxu0 0
        %3289 = vmatmul.mubr.bf16.gmra.mrb[0].mxu0 %v381
        %v3290 = vpop.f32.mrb[0].mxu0
        %v3291 = vadd.f32 0.0, %v3290
        %v3292 = vpop.f32.mrb[0].mxu0
        %v3293 = vpop.f32.mrb[0].mxu0
        %v3294 = vadd.f32 0.0, %v3293
        %v3295 = vpop.f32.mrb[0].mxu0
        %3296 = vdwg.mxu0
        %3297 = vmatprep.subr.bf16.mxu0 0
        %3298 = vmatpush1.bf16.msra.mxu0 %v3220
        %3299 = vmatprep.subr.bf16.mxu0 0
        %3300 = vmatpush1.bf16.msra.mxu0 %v3221
        %3301 = vmatprep.subr.bf16.mxu0 0
        %3302 = vmatpush1.bf16.msra.mxu0 %v3222
        %3303 = vmatprep.subr.bf16.mxu0 0
        %3304 = vmatpush1.bf16.msra.mxu0 %v3223
        %3305 = vmatprep.subr.bf16.mxu0 0
        %3306 = vmatpush1.bf16.msra.mxu0 0
        %3307 = vmatprep.subr.bf16.mxu0 0
        %3308 = vmatpush1.bf16.msra.mxu0 0
        %3309 = vmatprep.subr.bf16.mxu0 0
        %3310 = vmatpush1.bf16.msra.mxu0 0
        %3311 = vmatprep.subr.bf16.mxu0 0
        %3312 = vmatpush1.bf16.msra.mxu0 0
        %3313 = vmatprep.subr.bf16.mxu0 0
        %3314 = vmatpush1.bf16.msra.mxu0 0
        %3315 = vmatprep.subr.bf16.mxu0 0
        %3316 = vmatpush1.bf16.msra.mxu0 0
        %3317 = vmatprep.subr.bf16.mxu0 0
        %3318 = vmatpush1.bf16.msra.mxu0 0
        %3319 = vmatprep.subr.bf16.mxu0 0
        %3320 = vmatpush1.bf16.msra.mxu0 0
        %3321 = vmatprep.subr.bf16.mxu0 0
        %3322 = vmatpush1.bf16.msra.mxu0 0
        %3323 = vmatprep.subr.bf16.mxu0 0
        %3324 = vmatpush1.bf16.msra.mxu0 0
        %3325 = vmatprep.subr.bf16.mxu0 0
        %3326 = vmatpush1.bf16.msra.mxu0 0
        %3327 = vmatprep.subr.bf16.mxu0 0
        %3328 = vmatpush1.bf16.msra.mxu0 0
        %3329 = vmatprep.mubr.bf16.mxu0 0
        %3330 = vmatmul.mubr.bf16.gmra.mrb[0].mxu0 %v372
        %v3331 = vpop.f32.mrb[0].mxu0
        %v3332 = vadd.f32 0.0, %v3331
        %v3333 = vpop.f32.mrb[0].mxu0
        %v3334 = vpop.f32.mrb[0].mxu0
        %v3335 = vadd.f32 0.0, %v3334
        %v3336 = vpop.f32.mrb[0].mxu0
        %3337 = vmatprep.mubr.bf16.mxu0 0
        %3338 = vmatmul.mubr.bf16.gmra.mrb[0].mxu0 %v375
        %v3339 = vpop.f32.mrb[0].mxu0
        %v3340 = vadd.f32 0.0, %v3339
        %v3341 = vpop.f32.mrb[0].mxu0
        %v3342 = vpop.f32.mrb[0].mxu0
        %v3343 = vadd.f32 0.0, %v3342
        %v3344 = vpop.f32.mrb[0].mxu0
        %3345 = vmatprep.mubr.bf16.mxu0 0
        %3346 = vmatmul.mubr.bf16.gmra.mrb[0].mxu0 %v378
        %v3347 = vpop.f32.mrb[0].mxu0
        %v3348 = vadd.f32 0.0, %v3347
        %v3349 = vpop.f32.mrb[0].mxu0
        %v3350 = vpop.f32.mrb[0].mxu0
        %v3351 = vadd.f32 0.0, %v3350
        %v3352 = vpop.f32.mrb[0].mxu0
        %3353 = vmatprep.mubr.bf16.mxu0 0
        %3354 = vmatmul.mubr.bf16.gmra.mrb[0].mxu0 %v381
        %v3355 = vpop.f32.mrb[0].mxu0
        %v3356 = vadd.f32 0.0, %v3355
        %v3357 = vpop.f32.mrb[0].mxu0
        %v3358 = vpop.f32.mrb[0].mxu0
        %v3359 = vadd.f32 0.0, %v3358
        %v3360 = vpop.f32.mrb[0].mxu0
        %3361 = vdwg.mxu0
        %3362 = vmatprep.subr.bf16.mxu0 0
        %3363 = vmatpush1.bf16.msra.mxu0 %v3224
        %3364 = vmatprep.subr.bf16.mxu0 0
        %3365 = vmatpush1.bf16.msra.mxu0 %v3225
        %3366 = vmatprep.subr.bf16.mxu0 0
        %3367 = vmatpush1.bf16.msra.mxu0 %v3226
        %3368 = vmatprep.subr.bf16.mxu0 0
        %3369 = vmatpush1.bf16.msra.mxu0 %v3227
        %3370 = vmatprep.subr.bf16.mxu0 0
        %3371 = vmatpush1.bf16.msra.mxu0 0
        %3372 = vmatprep.subr.bf16.mxu0 0
        %3373 = vmatpush1.bf16.msra.mxu0 0
        %3374 = vmatprep.subr.bf16.mxu0 0
        %3375 = vmatpush1.bf16.msra.mxu0 0
        %3376 = vmatprep.subr.bf16.mxu0 0
        %3377 = vmatpush1.bf16.msra.mxu0 0
        %3378 = vmatprep.subr.bf16.mxu0 0
        %3379 = vmatpush1.bf16.msra.mxu0 0
        %3380 = vmatprep.subr.bf16.mxu0 0
        %3381 = vmatpush1.bf16.msra.mxu0 0
        %3382 = vmatprep.subr.bf16.mxu0 0
        %3383 = vmatpush1.bf16.msra.mxu0 0
        %3384 = vmatprep.subr.bf16.mxu0 0
        %3385 = vmatpush1.bf16.msra.mxu0 0
        %3386 = vmatprep.subr.bf16.mxu0 0
        %3387 = vmatpush1.bf16.msra.mxu0 0
        %3388 = vmatprep.subr.bf16.mxu0 0
        %3389 = vmatpush1.bf16.msra.mxu0 0
        %3390 = vmatprep.subr.bf16.mxu0 0
        %3391 = vmatpush1.bf16.msra.mxu0 0
        %3392 = vmatprep.subr.bf16.mxu0 0
        %3393 = vmatpush1.bf16.msra.mxu0 0
        %3394 = vmatprep.mubr.bf16.mxu0 0
        %3395 = vmatmul.mubr.bf16.gmra.mrb[0].mxu0 %v372
        %v3396 = vpop.f32.mrb[0].mxu0
        %v3397 = vadd.f32 0.0, %v3396
        %v3398 = vpop.f32.mrb[0].mxu0
        %v3399 = vpop.f32.mrb[0].mxu0
        %v3400 = vadd.f32 0.0, %v3399
        %v3401 = vpop.f32.mrb[0].mxu0
        %3402 = vmatprep.mubr.bf16.mxu0 0
        %3403 = vmatmul.mubr.bf16.gmra.mrb[0].mxu0 %v375
        %v3404 = vpop.f32.mrb[0].mxu0
        %v3405 = vadd.f32 0.0, %v3404
        %v3406 = vpop.f32.mrb[0].mxu0
        %v3407 = vpop.f32.mrb[0].mxu0
        %v3408 = vadd.f32 0.0, %v3407
        %v3409 = vpop.f32.mrb[0].mxu0
        %3410 = vmatprep.mubr.bf16.mxu0 0
        %3411 = vmatmul.mubr.bf16.gmra.mrb[0].mxu0 %v378
        %v3412 = vpop.f32.mrb[0].mxu0
        %v3413 = vadd.f32 0.0, %v3412
        %v3414 = vpop.f32.mrb[0].mxu0
        %v3415 = vpop.f32.mrb[0].mxu0
        %v3416 = vadd.f32 0.0, %v3415
        %v3417 = vpop.f32.mrb[0].mxu0
        %3418 = vmatprep.mubr.bf16.mxu0 0
        %3419 = vmatmul.mubr.bf16.gmra.mrb[0].mxu0 %v381
        %v3420 = vpop.f32.mrb[0].mxu0
        %v3421 = vadd.f32 0.0, %v3420
        %v3422 = vpop.f32.mrb[0].mxu0
        %v3423 = vpop.f32.mrb[0].mxu0
        %v3424 = vadd.f32 0.0, %v3423
        %v3425 = vpop.f32.mrb[0].mxu0
        %3426 = vdwg.mxu0
        %3427 = vmatprep.subr.bf16.mxu0 0
        %3428 = vmatpush1.bf16.msra.mxu0 %v3228
        %3429 = vmatprep.subr.bf16.mxu0 0
        %3430 = vmatpush1.bf16.msra.mxu0 %v3229
        %3431 = vmatprep.subr.bf16.mxu0 0
        %3432 = vmatpush1.bf16.msra.mxu0 %v3230
        %3433 = vmatprep.subr.bf16.mxu0 0
        %3434 = vmatpush1.bf16.msra.mxu0 %v3231
        %3435 = vmatprep.subr.bf16.mxu0 0
        %3436 = vmatpush1.bf16.msra.mxu0 0
        %3437 = vmatprep.subr.bf16.mxu0 0
        %3438 = vmatpush1.bf16.msra.mxu0 0
        %3439 = vmatprep.subr.bf16.mxu0 0
        %3440 = vmatpush1.bf16.msra.mxu0 0
        %3441 = vmatprep.subr.bf16.mxu0 0
        %3442 = vmatpush1.bf16.msra.mxu0 0
        %3443 = vmatprep.subr.bf16.mxu0 0
        %3444 = vmatpush1.bf16.msra.mxu0 0
        %3445 = vmatprep.subr.bf16.mxu0 0
        %3446 = vmatpush1.bf16.msra.mxu0 0
        %3447 = vmatprep.subr.bf16.mxu0 0
        %3448 = vmatpush1.bf16.msra.mxu0 0
        %3449 = vmatprep.subr.bf16.mxu0 0
        %3450 = vmatpush1.bf16.msra.mxu0 0
        %3451 = vmatprep.subr.bf16.mxu0 0
        %3452 = vmatpush1.bf16.msra.mxu0 0
        %3453 = vmatprep.subr.bf16.mxu0 0
        %3454 = vmatpush1.bf16.msra.mxu0 0
        %3455 = vmatprep.subr.bf16.mxu0 0
        %3456 = vmatpush1.bf16.msra.mxu0 0
        %3457 = vmatprep.subr.bf16.mxu0 0
        %3458 = vmatpush1.bf16.msra.mxu0 0
        %3459 = vmatprep.mubr.bf16.mxu0 0
        %3460 = vmatmul.mubr.bf16.gmra.mrb[0].mxu0 %v372
        %v3461 = vpop.f32.mrb[0].mxu0
        %v3462 = vadd.f32 0.0, %v3461
        %v3463 = vpop.f32.mrb[0].mxu0
        %v3464 = vpop.f32.mrb[0].mxu0
        %v3465 = vadd.f32 0.0, %v3464
        %v3466 = vpop.f32.mrb[0].mxu0
        %3467 = vmatprep.mubr.bf16.mxu0 0
        %3468 = vmatmul.mubr.bf16.gmra.mrb[0].mxu0 %v375
        %v3469 = vpop.f32.mrb[0].mxu0
        %v3470 = vadd.f32 0.0, %v3469
        %v3471 = vpop.f32.mrb[0].mxu0
        %v3472 = vpop.f32.mrb[0].mxu0
        %v3473 = vadd.f32 0.0, %v3472
        %v3474 = vpop.f32.mrb[0].mxu0
        %3475 = vmatprep.mubr.bf16.mxu0 0
        %3476 = vmatmul.mubr.bf16.gmra.mrb[0].mxu0 %v378
        %v3477 = vpop.f32.mrb[0].mxu0
        %v3478 = vadd.f32 0.0, %v3477
        %v3479 = vpop.f32.mrb[0].mxu0
        %v3480 = vpop.f32.mrb[0].mxu0
        %v3481 = vadd.f32 0.0, %v3480
        %v3482 = vpop.f32.mrb[0].mxu0
        %3483 = vmatprep.mubr.bf16.mxu0 0
        %3484 = vmatmul.mubr.bf16.gmra.mrb[0].mxu0 %v381
        %v3485 = vpop.f32.mrb[0].mxu0
        %v3486 = vadd.f32 0.0, %v3485
        %v3487 = vpop.f32.mrb[0].mxu0
        %v3488 = vpop.f32.mrb[0].mxu0
        %v3489 = vadd.f32 0.0, %v3488
        %v3490 = vpop.f32.mrb[0].mxu0
        %3491 = vdwg.mxu0
        %v3492 = vpack.c.bf16 %v3270, %v3267
        %v3493 = vpack.c.bf16 %v3278, %v3275
        %v3494 = vpack.c.bf16 %v3286, %v3283
        %v3495 = vpack.c.bf16 %v3294, %v3291
        %v3496 = vpack.c.bf16 %v3335, %v3332
        %v3497 = vpack.c.bf16 %v3343, %v3340
        %v3498 = vpack.c.bf16 %v3351, %v3348
        %v3499 = vpack.c.bf16 %v3359, %v3356
        %v3500 = vpack.c.bf16 %v3400, %v3397
        %v3501 = vpack.c.bf16 %v3408, %v3405
        %v3502 = vpack.c.bf16 %v3416, %v3413
        %v3503 = vpack.c.bf16 %v3424, %v3421
        %v3504 = vpack.c.bf16 %v3465, %v3462
        %v3505 = vpack.c.bf16 %v3473, %v3470
        %v3506 = vpack.c.bf16 %v3481, %v3478
        %v3507 = vpack.c.bf16 %v3489, %v3486
        %v3509 = vsel %vm370, %v3492, 0
        %v3512 = vsel %vm370, %v3493, 0
        %v3515 = vsel %vm370, %v3494, 0
        %v3518 = vsel %vm370, %v3495, 0
        %v3521 = vsel %vm370, %v3496, 0
        %v3524 = vsel %vm370, %v3497, 0
        %v3527 = vsel %vm370, %v3498, 0
        %v3530 = vsel %vm370, %v3499, 0
        %v3533 = vsel %vm370, %v3500, 0
        %v3536 = vsel %vm370, %v3501, 0
        %v3539 = vsel %vm370, %v3502, 0
        %v3542 = vsel %vm370, %v3503, 0
        %v3545 = vsel %vm370, %v3504, 0
        %v3548 = vsel %vm370, %v3505, 0
        %v3551 = vsel %vm370, %v3506, 0
        %v3554 = vsel %vm370, %v3507, 0
        %3556 = vmatprep.subr.bf16.mxu0 0
        %3557 = vmatpush1.bf16.msra.mxu0 %v675
        %3558 = vmatprep.subr.bf16.mxu0 0
        %3559 = vmatpush1.bf16.msra.mxu0 %v676
        %3560 = vmatprep.subr.bf16.mxu0 0
        %3561 = vmatpush1.bf16.msra.mxu0 %v677
        %3562 = vmatprep.subr.bf16.mxu0 0
        %3563 = vmatpush1.bf16.msra.mxu0 %v678
        %3564 = vmatprep.subr.bf16.mxu0 0
        %3565 = vmatpush1.bf16.msra.mxu0 0
        %3566 = vmatprep.subr.bf16.mxu0 0
        %3567 = vmatpush1.bf16.msra.mxu0 0
        %3568 = vmatprep.subr.bf16.mxu0 0
        %3569 = vmatpush1.bf16.msra.mxu0 0
        %3570 = vmatprep.subr.bf16.mxu0 0
        %3571 = vmatpush1.bf16.msra.mxu0 0
        %3572 = vmatprep.subr.bf16.mxu0 0
        %3573 = vmatpush1.bf16.msra.mxu0 0
        %3574 = vmatprep.subr.bf16.mxu0 0
        %3575 = vmatpush1.bf16.msra.mxu0 0
        %3576 = vmatprep.subr.bf16.mxu0 0
        %3577 = vmatpush1.bf16.msra.mxu0 0
        %3578 = vmatprep.subr.bf16.mxu0 0
        %3579 = vmatpush1.bf16.msra.mxu0 0
        %3580 = vmatprep.subr.bf16.mxu0 0
        %3581 = vmatpush1.bf16.msra.mxu0 0
        %3582 = vmatprep.subr.bf16.mxu0 0
        %3583 = vmatpush1.bf16.msra.mxu0 0
        %3584 = vmatprep.subr.bf16.mxu0 0
        %3585 = vmatpush1.bf16.msra.mxu0 0
        %3586 = vmatprep.subr.bf16.mxu0 0
        %3587 = vmatpush1.bf16.msra.mxu0 0
        %3588 = vmatprep.mubr.bf16.mxu0 0
        %3589 = vmatmul.mubr.bf16.gmra.mrb[0].mxu0 %v3509
        %v3590 = vpop.f32.mrb[0].mxu0
        %v3591 = vadd.f32 0.0, %v3590
        %v3592 = vpop.f32.mrb[0].mxu0
        %v3593 = vpop.f32.mrb[0].mxu0
        %v3594 = vadd.f32 0.0, %v3593
        %v3595 = vpop.f32.mrb[0].mxu0
        %3596 = vmatprep.mubr.bf16.mxu0 0
        %3597 = vmatmul.mubr.bf16.gmra.mrb[0].mxu0 %v3512
        %v3598 = vpop.f32.mrb[0].mxu0
        %v3599 = vadd.f32 0.0, %v3598
        %v3600 = vpop.f32.mrb[0].mxu0
        %v3601 = vpop.f32.mrb[0].mxu0
        %v3602 = vadd.f32 0.0, %v3601
        %v3603 = vpop.f32.mrb[0].mxu0
        %3604 = vmatprep.mubr.bf16.mxu0 0
        %3605 = vmatmul.mubr.bf16.gmra.mrb[0].mxu0 %v3515
        %v3606 = vpop.f32.mrb[0].mxu0
        %v3607 = vadd.f32 0.0, %v3606
        %v3608 = vpop.f32.mrb[0].mxu0
        %v3609 = vpop.f32.mrb[0].mxu0
        %v3610 = vadd.f32 0.0, %v3609
        %v3611 = vpop.f32.mrb[0].mxu0
        %3612 = vmatprep.mubr.bf16.mxu0 0
        %3613 = vmatmul.mubr.bf16.gmra.mrb[0].mxu0 %v3518
        %v3614 = vpop.f32.mrb[0].mxu0
        %v3615 = vadd.f32 0.0, %v3614
        %v3616 = vpop.f32.mrb[0].mxu0
        %v3617 = vpop.f32.mrb[0].mxu0
        %v3618 = vadd.f32 0.0, %v3617
        %v3619 = vpop.f32.mrb[0].mxu0
        %3620 = vmatprep.mubr.bf16.mxu0 0
        %3621 = vmatmul.mubr.bf16.gmra.mrb[0].mxu0 %v3521
        %v3622 = vpop.f32.mrb[0].mxu0
        %v3623 = vadd.f32 0.0, %v3622
        %v3624 = vpop.f32.mrb[0].mxu0
        %v3625 = vpop.f32.mrb[0].mxu0
        %v3626 = vadd.f32 0.0, %v3625
        %v3627 = vpop.f32.mrb[0].mxu0
        %3628 = vmatprep.mubr.bf16.mxu0 0
        %3629 = vmatmul.mubr.bf16.gmra.mrb[0].mxu0 %v3524
        %v3630 = vpop.f32.mrb[0].mxu0
        %v3631 = vadd.f32 0.0, %v3630
        %v3632 = vpop.f32.mrb[0].mxu0
        %v3633 = vpop.f32.mrb[0].mxu0
        %v3634 = vadd.f32 0.0, %v3633
        %v3635 = vpop.f32.mrb[0].mxu0
        %3636 = vmatprep.mubr.bf16.mxu0 0
        %3637 = vmatmul.mubr.bf16.gmra.mrb[0].mxu0 %v3527
        %v3638 = vpop.f32.mrb[0].mxu0
        %v3639 = vadd.f32 0.0, %v3638
        %v3640 = vpop.f32.mrb[0].mxu0
        %v3641 = vpop.f32.mrb[0].mxu0
        %v3642 = vadd.f32 0.0, %v3641
        %v3643 = vpop.f32.mrb[0].mxu0
        %3644 = vmatprep.mubr.bf16.mxu0 0
        %3645 = vmatmul.mubr.bf16.gmra.mrb[0].mxu0 %v3530
        %v3646 = vpop.f32.mrb[0].mxu0
        %v3647 = vadd.f32 0.0, %v3646
        %v3648 = vpop.f32.mrb[0].mxu0
        %v3649 = vpop.f32.mrb[0].mxu0
        %v3650 = vadd.f32 0.0, %v3649
        %v3651 = vpop.f32.mrb[0].mxu0
        %3652 = vmatprep.mubr.bf16.mxu0 0
        %3653 = vmatmul.mubr.bf16.gmra.mrb[0].mxu0 %v3533
        %v3654 = vpop.f32.mrb[0].mxu0
        %v3655 = vadd.f32 0.0, %v3654
        %v3656 = vpop.f32.mrb[0].mxu0
        %v3657 = vpop.f32.mrb[0].mxu0
        %v3658 = vadd.f32 0.0, %v3657
        %v3659 = vpop.f32.mrb[0].mxu0
        %3660 = vmatprep.mubr.bf16.mxu0 0
        %3661 = vmatmul.mubr.bf16.gmra.mrb[0].mxu0 %v3536
        %v3662 = vpop.f32.mrb[0].mxu0
        %v3663 = vadd.f32 0.0, %v3662
        %v3664 = vpop.f32.mrb[0].mxu0
        %v3665 = vpop.f32.mrb[0].mxu0
        %v3666 = vadd.f32 0.0, %v3665
        %v3667 = vpop.f32.mrb[0].mxu0
        %3668 = vmatprep.mubr.bf16.mxu0 0
        %3669 = vmatmul.mubr.bf16.gmra.mrb[0].mxu0 %v3539
        %v3670 = vpop.f32.mrb[0].mxu0
        %v3671 = vadd.f32 0.0, %v3670
        %v3672 = vpop.f32.mrb[0].mxu0
        %v3673 = vpop.f32.mrb[0].mxu0
        %v3674 = vadd.f32 0.0, %v3673
        %v3675 = vpop.f32.mrb[0].mxu0
        %3676 = vmatprep.mubr.bf16.mxu0 0
        %3677 = vmatmul.mubr.bf16.gmra.mrb[0].mxu0 %v3542
        %v3678 = vpop.f32.mrb[0].mxu0
        %v3679 = vadd.f32 0.0, %v3678
        %v3680 = vpop.f32.mrb[0].mxu0
        %v3681 = vpop.f32.mrb[0].mxu0
        %v3682 = vadd.f32 0.0, %v3681
        %v3683 = vpop.f32.mrb[0].mxu0
        %3684 = vmatprep.mubr.bf16.mxu0 0
        %3685 = vmatmul.mubr.bf16.gmra.mrb[0].mxu0 %v3545
        %v3686 = vpop.f32.mrb[0].mxu0
        %v3687 = vadd.f32 0.0, %v3686
        %v3688 = vpop.f32.mrb[0].mxu0
        %v3689 = vpop.f32.mrb[0].mxu0
        %v3690 = vadd.f32 0.0, %v3689
        %v3691 = vpop.f32.mrb[0].mxu0
        %3692 = vmatprep.mubr.bf16.mxu0 0
        %3693 = vmatmul.mubr.bf16.gmra.mrb[0].mxu0 %v3548
        %v3694 = vpop.f32.mrb[0].mxu0
        %v3695 = vadd.f32 0.0, %v3694
        %v3696 = vpop.f32.mrb[0].mxu0
        %v3697 = vpop.f32.mrb[0].mxu0
        %v3698 = vadd.f32 0.0, %v3697
        %v3699 = vpop.f32.mrb[0].mxu0
        %3700 = vmatprep.mubr.bf16.mxu0 0
        %3701 = vmatmul.mubr.bf16.gmra.mrb[0].mxu0 %v3551
        %v3702 = vpop.f32.mrb[0].mxu0
        %v3703 = vadd.f32 0.0, %v3702
        %v3704 = vpop.f32.mrb[0].mxu0
        %v3705 = vpop.f32.mrb[0].mxu0
        %v3706 = vadd.f32 0.0, %v3705
        %v3707 = vpop.f32.mrb[0].mxu0
        %3708 = vmatprep.mubr.bf16.mxu0 0
        %3709 = vmatmul.mubr.bf16.gmra.mrb[0].mxu0 %v3554
        %v3710 = vpop.f32.mrb[0].mxu0
        %v3711 = vadd.f32 0.0, %v3710
        %v3712 = vpop.f32.mrb[0].mxu0
        %v3713 = vpop.f32.mrb[0].mxu0
        %v3714 = vadd.f32 0.0, %v3713
        %v3715 = vpop.f32.mrb[0].mxu0
        %3716 = vdwg.mxu0
        %v3717 = vmul.f32 %v3591, %v254
        %v3718 = vmul.f32 %v3594, %v255
        %v3719 = vmul.f32 %v3599, %v256
        %v3720 = vmul.f32 %v3602, %v257
        %v3721 = vmul.f32 %v3607, %v258
        %v3722 = vmul.f32 %v3610, %v259
        %v3723 = vmul.f32 %v3615, %v260
        %v3724 = vmul.f32 %v3618, %v261
        %v3725 = vmul.f32 %v3623, %v262
        %v3726 = vmul.f32 %v3626, %v263
        %v3727 = vmul.f32 %v3631, %v264
        %v3728 = vmul.f32 %v3634, %v265
        %v3729 = vmul.f32 %v3639, %v266
        %v3730 = vmul.f32 %v3642, %v267
        %v3731 = vmul.f32 %v3647, %v268
        %v3732 = vmul.f32 %v3650, %v269
        %v3733 = vmul.f32 %v3655, %v270
        %v3734 = vmul.f32 %v3658, %v271
        %v3735 = vmul.f32 %v3663, %v272
        %v3736 = vmul.f32 %v3666, %v273
        %v3737 = vmul.f32 %v3671, %v274
        %v3738 = vmul.f32 %v3674, %v275
        %v3739 = vmul.f32 %v3679, %v276
        %v3740 = vmul.f32 %v3682, %v277
        %v3741 = vmul.f32 %v3687, %v278
        %v3742 = vmul.f32 %v3690, %v279
        %v3743 = vmul.f32 %v3695, %v280
        %v3744 = vmul.f32 %v3698, %v281
        %v3745 = vmul.f32 %v3703, %v282
        %v3746 = vmul.f32 %v3706, %v283
        %v3747 = vmul.f32 %v3711, %v284
        %v3748 = vmul.f32 %v3714, %v285
        %v3749 = vadd.f32 %v3717, %v286
        %v3750 = vadd.f32 %v3718, %v287
        %v3751 = vadd.f32 %v3719, %v288
        %v3752 = vadd.f32 %v3720, %v289
        %v3753 = vadd.f32 %v3721, %v290
        %v3754 = vadd.f32 %v3722, %v291
        %v3755 = vadd.f32 %v3723, %v292
        %v3756 = vadd.f32 %v3724, %v293
        %v3757 = vadd.f32 %v3725, %v294
        %v3758 = vadd.f32 %v3726, %v295
        %v3759 = vadd.f32 %v3727, %v296
        %v3760 = vadd.f32 %v3728, %v297
        %v3761 = vadd.f32 %v3729, %v298
        %v3762 = vadd.f32 %v3730, %v299
        %v3763 = vadd.f32 %v3731, %v300
        %v3764 = vadd.f32 %v3732, %v301
        %v3765 = vadd.f32 %v3733, %v302
        %v3766 = vadd.f32 %v3734, %v303
        %v3767 = vadd.f32 %v3735, %v304
        %v3768 = vadd.f32 %v3736, %v305
        %v3769 = vadd.f32 %v3737, %v306
        %v3770 = vadd.f32 %v3738, %v307
        %v3771 = vadd.f32 %v3739, %v308
        %v3772 = vadd.f32 %v3740, %v309
        %v3773 = vadd.f32 %v3741, %v310
        %v3774 = vadd.f32 %v3742, %v311
        %v3775 = vadd.f32 %v3743, %v312
        %v3776 = vadd.f32 %v3744, %v313
        %v3777 = vadd.f32 %v3745, %v314
        %v3778 = vadd.f32 %v3746, %v315
        %v3779 = vadd.f32 %v3747, %v316
        %v3780 = vadd.f32 %v3748, %v317
        %v3781 = vpack.c.bf16 %v3750, %v3749
        %v3782 = vpack.c.bf16 %v3752, %v3751
        %v3783 = vpack.c.bf16 %v3754, %v3753
        %v3784 = vpack.c.bf16 %v3756, %v3755
        %v3785 = vpack.c.bf16 %v3758, %v3757
        %v3786 = vpack.c.bf16 %v3760, %v3759
        %v3787 = vpack.c.bf16 %v3762, %v3761
        %v3788 = vpack.c.bf16 %v3764, %v3763
        %v3789 = vpack.c.bf16 %v3766, %v3765
        %v3790 = vpack.c.bf16 %v3768, %v3767
        %v3791 = vpack.c.bf16 %v3770, %v3769
        %v3792 = vpack.c.bf16 %v3772, %v3771
        %v3793 = vpack.c.bf16 %v3774, %v3773
        %v3794 = vpack.c.bf16 %v3776, %v3775
        %v3795 = vpack.c.bf16 %v3778, %v3777
        %v3796 = vpack.c.bf16 %v3780, %v3779
        %3797 = vmatprep.subr.bf16.mxu0 0
        %3798 = vmatpush1.bf16.msra.mxu0 %v3781
        %3799 = vmatprep.subr.bf16.mxu0 0
        %3800 = vmatpush1.bf16.msra.mxu0 %v3782
        %3801 = vmatprep.subr.bf16.mxu0 0
        %3802 = vmatpush1.bf16.msra.mxu0 %v3783
        %3803 = vmatprep.subr.bf16.mxu0 0
        %3804 = vmatpush1.bf16.msra.mxu0 %v3784
        %3805 = vmatprep.subr.bf16.mxu0 0
        %3806 = vmatpush1.bf16.msra.mxu0 0
        %3807 = vmatprep.subr.bf16.mxu0 0
        %3808 = vmatpush1.bf16.msra.mxu0 0
        %3809 = vmatprep.subr.bf16.mxu0 0
        %3810 = vmatpush1.bf16.msra.mxu0 0
        %3811 = vmatprep.subr.bf16.mxu0 0
        %3812 = vmatpush1.bf16.msra.mxu0 0
        %3813 = vmatprep.subr.bf16.mxu0 0
        %3814 = vmatpush1.bf16.msra.mxu0 0
        %3815 = vmatprep.subr.bf16.mxu0 0
        %3816 = vmatpush1.bf16.msra.mxu0 0
        %3817 = vmatprep.subr.bf16.mxu0 0
        %3818 = vmatpush1.bf16.msra.mxu0 0
        %3819 = vmatprep.subr.bf16.mxu0 0
        %3820 = vmatpush1.bf16.msra.mxu0 0
        %3821 = vmatprep.subr.bf16.mxu0 0
        %3822 = vmatpush1.bf16.msra.mxu0 0
        %3823 = vmatprep.subr.bf16.mxu0 0
        %3824 = vmatpush1.bf16.msra.mxu0 0
        %3825 = vmatprep.subr.bf16.mxu0 0
        %3826 = vmatpush1.bf16.msra.mxu0 0
        %3827 = vmatprep.subr.bf16.mxu0 0
        %3828 = vmatpush1.bf16.msra.mxu0 0
        %3829 = vmatprep.mubr.bf16.mxu0 0
        %3830 = vmatmul.mubr.bf16.gmra.mrb[0].mxu0 %v372
        %v3831 = vpop.f32.mrb[0].mxu0
        %v3832 = vadd.f32 0.0, %v3831
        %v3833 = vpop.f32.mrb[0].mxu0
        %v3834 = vpop.f32.mrb[0].mxu0
        %v3835 = vadd.f32 0.0, %v3834
        %v3836 = vpop.f32.mrb[0].mxu0
        %3837 = vmatprep.mubr.bf16.mxu0 0
        %3838 = vmatmul.mubr.bf16.gmra.mrb[0].mxu0 %v375
        %v3839 = vpop.f32.mrb[0].mxu0
        %v3840 = vadd.f32 0.0, %v3839
        %v3841 = vpop.f32.mrb[0].mxu0
        %v3842 = vpop.f32.mrb[0].mxu0
        %v3843 = vadd.f32 0.0, %v3842
        %v3844 = vpop.f32.mrb[0].mxu0
        %3845 = vmatprep.mubr.bf16.mxu0 0
        %3846 = vmatmul.mubr.bf16.gmra.mrb[0].mxu0 %v378
        %v3847 = vpop.f32.mrb[0].mxu0
        %v3848 = vadd.f32 0.0, %v3847
        %v3849 = vpop.f32.mrb[0].mxu0
        %v3850 = vpop.f32.mrb[0].mxu0
        %v3851 = vadd.f32 0.0, %v3850
        %v3852 = vpop.f32.mrb[0].mxu0
        %3853 = vmatprep.mubr.bf16.mxu0 0
        %3854 = vmatmul.mubr.bf16.gmra.mrb[0].mxu0 %v381
        %v3855 = vpop.f32.mrb[0].mxu0
        %v3856 = vadd.f32 0.0, %v3855
        %v3857 = vpop.f32.mrb[0].mxu0
        %v3858 = vpop.f32.mrb[0].mxu0
        %v3859 = vadd.f32 0.0, %v3858
        %v3860 = vpop.f32.mrb[0].mxu0
        %3861 = vdwg.mxu0
        %3862 = vmatprep.subr.bf16.mxu0 0
        %3863 = vmatpush1.bf16.msra.mxu0 %v3785
        %3864 = vmatprep.subr.bf16.mxu0 0
        %3865 = vmatpush1.bf16.msra.mxu0 %v3786
        %3866 = vmatprep.subr.bf16.mxu0 0
        %3867 = vmatpush1.bf16.msra.mxu0 %v3787
        %3868 = vmatprep.subr.bf16.mxu0 0
        %3869 = vmatpush1.bf16.msra.mxu0 %v3788
        %3870 = vmatprep.subr.bf16.mxu0 0
        %3871 = vmatpush1.bf16.msra.mxu0 0
        %3872 = vmatprep.subr.bf16.mxu0 0
        %3873 = vmatpush1.bf16.msra.mxu0 0
        %3874 = vmatprep.subr.bf16.mxu0 0
        %3875 = vmatpush1.bf16.msra.mxu0 0
        %3876 = vmatprep.subr.bf16.mxu0 0
        %3877 = vmatpush1.bf16.msra.mxu0 0
        %3878 = vmatprep.subr.bf16.mxu0 0
        %3879 = vmatpush1.bf16.msra.mxu0 0
        %3880 = vmatprep.subr.bf16.mxu0 0
        %3881 = vmatpush1.bf16.msra.mxu0 0
        %3882 = vmatprep.subr.bf16.mxu0 0
        %3883 = vmatpush1.bf16.msra.mxu0 0
        %3884 = vmatprep.subr.bf16.mxu0 0
        %3885 = vmatpush1.bf16.msra.mxu0 0
        %3886 = vmatprep.subr.bf16.mxu0 0
        %3887 = vmatpush1.bf16.msra.mxu0 0
        %3888 = vmatprep.subr.bf16.mxu0 0
        %3889 = vmatpush1.bf16.msra.mxu0 0
        %3890 = vmatprep.subr.bf16.mxu0 0
        %3891 = vmatpush1.bf16.msra.mxu0 0
        %3892 = vmatprep.subr.bf16.mxu0 0
        %3893 = vmatpush1.bf16.msra.mxu0 0
        %3894 = vmatprep.mubr.bf16.mxu0 0
        %3895 = vmatmul.mubr.bf16.gmra.mrb[0].mxu0 %v372
        %v3896 = vpop.f32.mrb[0].mxu0
        %v3897 = vadd.f32 0.0, %v3896
        %v3898 = vpop.f32.mrb[0].mxu0
        %v3899 = vpop.f32.mrb[0].mxu0
        %v3900 = vadd.f32 0.0, %v3899
        %v3901 = vpop.f32.mrb[0].mxu0
        %3902 = vmatprep.mubr.bf16.mxu0 0
        %3903 = vmatmul.mubr.bf16.gmra.mrb[0].mxu0 %v375
        %v3904 = vpop.f32.mrb[0].mxu0
        %v3905 = vadd.f32 0.0, %v3904
        %v3906 = vpop.f32.mrb[0].mxu0
        %v3907 = vpop.f32.mrb[0].mxu0
        %v3908 = vadd.f32 0.0, %v3907
        %v3909 = vpop.f32.mrb[0].mxu0
        %3910 = vmatprep.mubr.bf16.mxu0 0
        %3911 = vmatmul.mubr.bf16.gmra.mrb[0].mxu0 %v378
        %v3912 = vpop.f32.mrb[0].mxu0
        %v3913 = vadd.f32 0.0, %v3912
        %v3914 = vpop.f32.mrb[0].mxu0
        %v3915 = vpop.f32.mrb[0].mxu0
        %v3916 = vadd.f32 0.0, %v3915
        %v3917 = vpop.f32.mrb[0].mxu0
        %3918 = vmatprep.mubr.bf16.mxu0 0
        %3919 = vmatmul.mubr.bf16.gmra.mrb[0].mxu0 %v381
        %v3920 = vpop.f32.mrb[0].mxu0
        %v3921 = vadd.f32 0.0, %v3920
        %v3922 = vpop.f32.mrb[0].mxu0
        %v3923 = vpop.f32.mrb[0].mxu0
        %v3924 = vadd.f32 0.0, %v3923
        %v3925 = vpop.f32.mrb[0].mxu0
        %3926 = vdwg.mxu0
        %3927 = vmatprep.subr.bf16.mxu0 0
        %3928 = vmatpush1.bf16.msra.mxu0 %v3789
        %3929 = vmatprep.subr.bf16.mxu0 0
        %3930 = vmatpush1.bf16.msra.mxu0 %v3790
        %3931 = vmatprep.subr.bf16.mxu0 0
        %3932 = vmatpush1.bf16.msra.mxu0 %v3791
        %3933 = vmatprep.subr.bf16.mxu0 0
        %3934 = vmatpush1.bf16.msra.mxu0 %v3792
        %3935 = vmatprep.subr.bf16.mxu0 0
        %3936 = vmatpush1.bf16.msra.mxu0 0
        %3937 = vmatprep.subr.bf16.mxu0 0
        %3938 = vmatpush1.bf16.msra.mxu0 0
        %3939 = vmatprep.subr.bf16.mxu0 0
        %3940 = vmatpush1.bf16.msra.mxu0 0
        %3941 = vmatprep.subr.bf16.mxu0 0
        %3942 = vmatpush1.bf16.msra.mxu0 0
        %3943 = vmatprep.subr.bf16.mxu0 0
        %3944 = vmatpush1.bf16.msra.mxu0 0
        %3945 = vmatprep.subr.bf16.mxu0 0
        %3946 = vmatpush1.bf16.msra.mxu0 0
        %3947 = vmatprep.subr.bf16.mxu0 0
        %3948 = vmatpush1.bf16.msra.mxu0 0
        %3949 = vmatprep.subr.bf16.mxu0 0
        %3950 = vmatpush1.bf16.msra.mxu0 0
        %3951 = vmatprep.subr.bf16.mxu0 0
        %3952 = vmatpush1.bf16.msra.mxu0 0
        %3953 = vmatprep.subr.bf16.mxu0 0
        %3954 = vmatpush1.bf16.msra.mxu0 0
        %3955 = vmatprep.subr.bf16.mxu0 0
        %3956 = vmatpush1.bf16.msra.mxu0 0
        %3957 = vmatprep.subr.bf16.mxu0 0
        %3958 = vmatpush1.bf16.msra.mxu0 0
        %3959 = vmatprep.mubr.bf16.mxu0 0
        %3960 = vmatmul.mubr.bf16.gmra.mrb[0].mxu0 %v372
        %v3961 = vpop.f32.mrb[0].mxu0
        %v3962 = vadd.f32 0.0, %v3961
        %v3963 = vpop.f32.mrb[0].mxu0
        %v3964 = vpop.f32.mrb[0].mxu0
        %v3965 = vadd.f32 0.0, %v3964
        %v3966 = vpop.f32.mrb[0].mxu0
        %3967 = vmatprep.mubr.bf16.mxu0 0
        %3968 = vmatmul.mubr.bf16.gmra.mrb[0].mxu0 %v375
        %v3969 = vpop.f32.mrb[0].mxu0
        %v3970 = vadd.f32 0.0, %v3969
        %v3971 = vpop.f32.mrb[0].mxu0
        %v3972 = vpop.f32.mrb[0].mxu0
        %v3973 = vadd.f32 0.0, %v3972
        %v3974 = vpop.f32.mrb[0].mxu0
        %3975 = vmatprep.mubr.bf16.mxu0 0
        %3976 = vmatmul.mubr.bf16.gmra.mrb[0].mxu0 %v378
        %v3977 = vpop.f32.mrb[0].mxu0
        %v3978 = vadd.f32 0.0, %v3977
        %v3979 = vpop.f32.mrb[0].mxu0
        %v3980 = vpop.f32.mrb[0].mxu0
        %v3981 = vadd.f32 0.0, %v3980
        %v3982 = vpop.f32.mrb[0].mxu0
        %3983 = vmatprep.mubr.bf16.mxu0 0
        %3984 = vmatmul.mubr.bf16.gmra.mrb[0].mxu0 %v381
        %v3985 = vpop.f32.mrb[0].mxu0
        %v3986 = vadd.f32 0.0, %v3985
        %v3987 = vpop.f32.mrb[0].mxu0
        %v3988 = vpop.f32.mrb[0].mxu0
        %v3989 = vadd.f32 0.0, %v3988
        %v3990 = vpop.f32.mrb[0].mxu0
        %3991 = vdwg.mxu0
        %3992 = vmatprep.subr.bf16.mxu0 0
        %3993 = vmatpush1.bf16.msra.mxu0 %v3793
        %3994 = vmatprep.subr.bf16.mxu0 0
        %3995 = vmatpush1.bf16.msra.mxu0 %v3794
        %3996 = vmatprep.subr.bf16.mxu0 0
        %3997 = vmatpush1.bf16.msra.mxu0 %v3795
        %3998 = vmatprep.subr.bf16.mxu0 0
        %3999 = vmatpush1.bf16.msra.mxu0 %v3796
        %4000 = vmatprep.subr.bf16.mxu0 0
        %4001 = vmatpush1.bf16.msra.mxu0 0
        %4002 = vmatprep.subr.bf16.mxu0 0
        %4003 = vmatpush1.bf16.msra.mxu0 0
        %4004 = vmatprep.subr.bf16.mxu0 0
        %4005 = vmatpush1.bf16.msra.mxu0 0
        %4006 = vmatprep.subr.bf16.mxu0 0
        %4007 = vmatpush1.bf16.msra.mxu0 0
        %4008 = vmatprep.subr.bf16.mxu0 0
        %4009 = vmatpush1.bf16.msra.mxu0 0
        %4010 = vmatprep.subr.bf16.mxu0 0
        %4011 = vmatpush1.bf16.msra.mxu0 0
        %4012 = vmatprep.subr.bf16.mxu0 0
        %4013 = vmatpush1.bf16.msra.mxu0 0
        %4014 = vmatprep.subr.bf16.mxu0 0
        %4015 = vmatpush1.bf16.msra.mxu0 0
        %4016 = vmatprep.subr.bf16.mxu0 0
        %4017 = vmatpush1.bf16.msra.mxu0 0
        %4018 = vmatprep.subr.bf16.mxu0 0
        %4019 = vmatpush1.bf16.msra.mxu0 0
        %4020 = vmatprep.subr.bf16.mxu0 0
        %4021 = vmatpush1.bf16.msra.mxu0 0
        %4022 = vmatprep.subr.bf16.mxu0 0
        %4023 = vmatpush1.bf16.msra.mxu0 0
        %4024 = vmatprep.mubr.bf16.mxu0 0
        %4025 = vmatmul.mubr.bf16.gmra.mrb[0].mxu0 %v372
        %v4026 = vpop.f32.mrb[0].mxu0
        %v4027 = vadd.f32 0.0, %v4026
        %v4028 = vpop.f32.mrb[0].mxu0
        %v4029 = vpop.f32.mrb[0].mxu0
        %v4030 = vadd.f32 0.0, %v4029
        %v4031 = vpop.f32.mrb[0].mxu0
        %4032 = vmatprep.mubr.bf16.mxu0 0
        %4033 = vmatmul.mubr.bf16.gmra.mrb[0].mxu0 %v375
        %v4034 = vpop.f32.mrb[0].mxu0
        %v4035 = vadd.f32 0.0, %v4034
        %v4036 = vpop.f32.mrb[0].mxu0
        %v4037 = vpop.f32.mrb[0].mxu0
        %v4038 = vadd.f32 0.0, %v4037
        %v4039 = vpop.f32.mrb[0].mxu0
        %4040 = vmatprep.mubr.bf16.mxu0 0
        %4041 = vmatmul.mubr.bf16.gmra.mrb[0].mxu0 %v378
        %v4042 = vpop.f32.mrb[0].mxu0
        %v4043 = vadd.f32 0.0, %v4042
        %v4044 = vpop.f32.mrb[0].mxu0
        %v4045 = vpop.f32.mrb[0].mxu0
        %v4046 = vadd.f32 0.0, %v4045
        %v4047 = vpop.f32.mrb[0].mxu0
        %4048 = vmatprep.mubr.bf16.mxu0 0
        %4049 = vmatmul.mubr.bf16.gmra.mrb[0].mxu0 %v381
        %v4050 = vpop.f32.mrb[0].mxu0
        %v4051 = vadd.f32 0.0, %v4050
        %v4052 = vpop.f32.mrb[0].mxu0
        %v4053 = vpop.f32.mrb[0].mxu0
        %v4054 = vadd.f32 0.0, %v4053
        %v4055 = vpop.f32.mrb[0].mxu0
        %4056 = vdwg.mxu0
        %v4057 = vpack.c.bf16 %v3835, %v3832
        %v4058 = vpack.c.bf16 %v3843, %v3840
        %v4059 = vpack.c.bf16 %v3851, %v3848
        %v4060 = vpack.c.bf16 %v3859, %v3856
        %v4061 = vpack.c.bf16 %v3900, %v3897
        %v4062 = vpack.c.bf16 %v3908, %v3905
        %v4063 = vpack.c.bf16 %v3916, %v3913
        %v4064 = vpack.c.bf16 %v3924, %v3921
        %v4065 = vpack.c.bf16 %v3965, %v3962
        %v4066 = vpack.c.bf16 %v3973, %v3970
        %v4067 = vpack.c.bf16 %v3981, %v3978
        %v4068 = vpack.c.bf16 %v3989, %v3986
        %v4069 = vpack.c.bf16 %v4030, %v4027
        %v4070 = vpack.c.bf16 %v4038, %v4035
        %v4071 = vpack.c.bf16 %v4046, %v4043
        %v4072 = vpack.c.bf16 %v4054, %v4051
        %v4074 = vsel %vm370, %v4057, 0
        %v4077 = vsel %vm370, %v4058, 0
        %v4080 = vsel %vm370, %v4059, 0
        %v4083 = vsel %vm370, %v4060, 0
        %v4086 = vsel %vm370, %v4061, 0
        %v4089 = vsel %vm370, %v4062, 0
        %v4092 = vsel %vm370, %v4063, 0
        %v4095 = vsel %vm370, %v4064, 0
        %v4098 = vsel %vm370, %v4065, 0
        %v4101 = vsel %vm370, %v4066, 0
        %v4104 = vsel %vm370, %v4067, 0
        %v4107 = vsel %vm370, %v4068, 0
        %v4110 = vsel %vm370, %v4069, 0
        %v4113 = vsel %vm370, %v4070, 0
        %v4116 = vsel %vm370, %v4071, 0
        %v4119 = vsel %vm370, %v4072, 0
        %4121 = vmatprep.subr.bf16.mxu0 0
        %4122 = vmatpush1.bf16.msra.mxu0 %v675
        %4123 = vmatprep.subr.bf16.mxu0 0
        %4124 = vmatpush1.bf16.msra.mxu0 %v676
        %4125 = vmatprep.subr.bf16.mxu0 0
        %4126 = vmatpush1.bf16.msra.mxu0 %v677
        %4127 = vmatprep.subr.bf16.mxu0 0
        %4128 = vmatpush1.bf16.msra.mxu0 %v678
        %4129 = vmatprep.subr.bf16.mxu0 0
        %4130 = vmatpush1.bf16.msra.mxu0 0
        %4131 = vmatprep.subr.bf16.mxu0 0
        %4132 = vmatpush1.bf16.msra.mxu0 0
        %4133 = vmatprep.subr.bf16.mxu0 0
        %4134 = vmatpush1.bf16.msra.mxu0 0
        %4135 = vmatprep.subr.bf16.mxu0 0
        %4136 = vmatpush1.bf16.msra.mxu0 0
        %4137 = vmatprep.subr.bf16.mxu0 0
        %4138 = vmatpush1.bf16.msra.mxu0 0
        %4139 = vmatprep.subr.bf16.mxu0 0
        %4140 = vmatpush1.bf16.msra.mxu0 0
        %4141 = vmatprep.subr.bf16.mxu0 0
        %4142 = vmatpush1.bf16.msra.mxu0 0
        %4143 = vmatprep.subr.bf16.mxu0 0
        %4144 = vmatpush1.bf16.msra.mxu0 0
        %4145 = vmatprep.subr.bf16.mxu0 0
        %4146 = vmatpush1.bf16.msra.mxu0 0
        %4147 = vmatprep.subr.bf16.mxu0 0
        %4148 = vmatpush1.bf16.msra.mxu0 0
        %4149 = vmatprep.subr.bf16.mxu0 0
        %4150 = vmatpush1.bf16.msra.mxu0 0
        %4151 = vmatprep.subr.bf16.mxu0 0
        %4152 = vmatpush1.bf16.msra.mxu0 0
        %4153 = vmatprep.mubr.bf16.mxu0 0
        %4154 = vmatmul.mubr.bf16.gmra.mrb[0].mxu0 %v4074
        %v4155 = vpop.f32.mrb[0].mxu0
        %v4156 = vadd.f32 0.0, %v4155
        %v4157 = vpop.f32.mrb[0].mxu0
        %v4158 = vpop.f32.mrb[0].mxu0
        %v4159 = vadd.f32 0.0, %v4158
        %v4160 = vpop.f32.mrb[0].mxu0
        %4161 = vmatprep.mubr.bf16.mxu0 0
        %4162 = vmatmul.mubr.bf16.gmra.mrb[0].mxu0 %v4077
        %v4163 = vpop.f32.mrb[0].mxu0
        %v4164 = vadd.f32 0.0, %v4163
        %v4165 = vpop.f32.mrb[0].mxu0
        %v4166 = vpop.f32.mrb[0].mxu0
        %v4167 = vadd.f32 0.0, %v4166
        %v4168 = vpop.f32.mrb[0].mxu0
        %4169 = vmatprep.mubr.bf16.mxu0 0
        %4170 = vmatmul.mubr.bf16.gmra.mrb[0].mxu0 %v4080
        %v4171 = vpop.f32.mrb[0].mxu0
        %v4172 = vadd.f32 0.0, %v4171
        %v4173 = vpop.f32.mrb[0].mxu0
        %v4174 = vpop.f32.mrb[0].mxu0
        %v4175 = vadd.f32 0.0, %v4174
        %v4176 = vpop.f32.mrb[0].mxu0
        %4177 = vmatprep.mubr.bf16.mxu0 0
        %4178 = vmatmul.mubr.bf16.gmra.mrb[0].mxu0 %v4083
        %v4179 = vpop.f32.mrb[0].mxu0
        %v4180 = vadd.f32 0.0, %v4179
        %v4181 = vpop.f32.mrb[0].mxu0
        %v4182 = vpop.f32.mrb[0].mxu0
        %v4183 = vadd.f32 0.0, %v4182
        %v4184 = vpop.f32.mrb[0].mxu0
        %4185 = vmatprep.mubr.bf16.mxu0 0
        %4186 = vmatmul.mubr.bf16.gmra.mrb[0].mxu0 %v4086
        %v4187 = vpop.f32.mrb[0].mxu0
        %v4188 = vadd.f32 0.0, %v4187
        %v4189 = vpop.f32.mrb[0].mxu0
        %v4190 = vpop.f32.mrb[0].mxu0
        %v4191 = vadd.f32 0.0, %v4190
        %v4192 = vpop.f32.mrb[0].mxu0
        %4193 = vmatprep.mubr.bf16.mxu0 0
        %4194 = vmatmul.mubr.bf16.gmra.mrb[0].mxu0 %v4089
        %v4195 = vpop.f32.mrb[0].mxu0
        %v4196 = vadd.f32 0.0, %v4195
        %v4197 = vpop.f32.mrb[0].mxu0
        %v4198 = vpop.f32.mrb[0].mxu0
        %v4199 = vadd.f32 0.0, %v4198
        %v4200 = vpop.f32.mrb[0].mxu0
        %4201 = vmatprep.mubr.bf16.mxu0 0
        %4202 = vmatmul.mubr.bf16.gmra.mrb[0].mxu0 %v4092
        %v4203 = vpop.f32.mrb[0].mxu0
        %v4204 = vadd.f32 0.0, %v4203
        %v4205 = vpop.f32.mrb[0].mxu0
        %v4206 = vpop.f32.mrb[0].mxu0
        %v4207 = vadd.f32 0.0, %v4206
        %v4208 = vpop.f32.mrb[0].mxu0
        %4209 = vmatprep.mubr.bf16.mxu0 0
        %4210 = vmatmul.mubr.bf16.gmra.mrb[0].mxu0 %v4095
        %v4211 = vpop.f32.mrb[0].mxu0
        %v4212 = vadd.f32 0.0, %v4211
        %v4213 = vpop.f32.mrb[0].mxu0
        %v4214 = vpop.f32.mrb[0].mxu0
        %v4215 = vadd.f32 0.0, %v4214
        %v4216 = vpop.f32.mrb[0].mxu0
        %4217 = vmatprep.mubr.bf16.mxu0 0
        %4218 = vmatmul.mubr.bf16.gmra.mrb[0].mxu0 %v4098
        %v4219 = vpop.f32.mrb[0].mxu0
        %v4220 = vadd.f32 0.0, %v4219
        %v4221 = vpop.f32.mrb[0].mxu0
        %v4222 = vpop.f32.mrb[0].mxu0
        %v4223 = vadd.f32 0.0, %v4222
        %v4224 = vpop.f32.mrb[0].mxu0
        %4225 = vmatprep.mubr.bf16.mxu0 0
        %4226 = vmatmul.mubr.bf16.gmra.mrb[0].mxu0 %v4101
        %v4227 = vpop.f32.mrb[0].mxu0
        %v4228 = vadd.f32 0.0, %v4227
        %v4229 = vpop.f32.mrb[0].mxu0
        %v4230 = vpop.f32.mrb[0].mxu0
        %v4231 = vadd.f32 0.0, %v4230
        %v4232 = vpop.f32.mrb[0].mxu0
        %4233 = vmatprep.mubr.bf16.mxu0 0
        %4234 = vmatmul.mubr.bf16.gmra.mrb[0].mxu0 %v4104
        %v4235 = vpop.f32.mrb[0].mxu0
        %v4236 = vadd.f32 0.0, %v4235
        %v4237 = vpop.f32.mrb[0].mxu0
        %v4238 = vpop.f32.mrb[0].mxu0
        %v4239 = vadd.f32 0.0, %v4238
        %v4240 = vpop.f32.mrb[0].mxu0
        %4241 = vmatprep.mubr.bf16.mxu0 0
        %4242 = vmatmul.mubr.bf16.gmra.mrb[0].mxu0 %v4107
        %v4243 = vpop.f32.mrb[0].mxu0
        %v4244 = vadd.f32 0.0, %v4243
        %v4245 = vpop.f32.mrb[0].mxu0
        %v4246 = vpop.f32.mrb[0].mxu0
        %v4247 = vadd.f32 0.0, %v4246
        %v4248 = vpop.f32.mrb[0].mxu0
        %4249 = vmatprep.mubr.bf16.mxu0 0
        %4250 = vmatmul.mubr.bf16.gmra.mrb[0].mxu0 %v4110
        %v4251 = vpop.f32.mrb[0].mxu0
        %v4252 = vadd.f32 0.0, %v4251
        %v4253 = vpop.f32.mrb[0].mxu0
        %v4254 = vpop.f32.mrb[0].mxu0
        %v4255 = vadd.f32 0.0, %v4254
        %v4256 = vpop.f32.mrb[0].mxu0
        %4257 = vmatprep.mubr.bf16.mxu0 0
        %4258 = vmatmul.mubr.bf16.gmra.mrb[0].mxu0 %v4113
        %v4259 = vpop.f32.mrb[0].mxu0
        %v4260 = vadd.f32 0.0, %v4259
        %v4261 = vpop.f32.mrb[0].mxu0
        %v4262 = vpop.f32.mrb[0].mxu0
        %v4263 = vadd.f32 0.0, %v4262
        %v4264 = vpop.f32.mrb[0].mxu0
        %4265 = vmatprep.mubr.bf16.mxu0 0
        %4266 = vmatmul.mubr.bf16.gmra.mrb[0].mxu0 %v4116
        %v4267 = vpop.f32.mrb[0].mxu0
        %v4268 = vadd.f32 0.0, %v4267
        %v4269 = vpop.f32.mrb[0].mxu0
        %v4270 = vpop.f32.mrb[0].mxu0
        %v4271 = vadd.f32 0.0, %v4270
        %v4272 = vpop.f32.mrb[0].mxu0
        %4273 = vmatprep.mubr.bf16.mxu0 0
        %4274 = vmatmul.mubr.bf16.gmra.mrb[0].mxu0 %v4119
        %v4275 = vpop.f32.mrb[0].mxu0
        %v4276 = vadd.f32 0.0, %v4275
        %v4277 = vpop.f32.mrb[0].mxu0
        %v4278 = vpop.f32.mrb[0].mxu0
        %v4279 = vadd.f32 0.0, %v4278
        %v4280 = vpop.f32.mrb[0].mxu0
        %4281 = vdwg.mxu0
        %v4282 = vmul.f32 %v4156, %v254
        %v4283 = vmul.f32 %v4159, %v255
        %v4284 = vmul.f32 %v4164, %v256
        %v4285 = vmul.f32 %v4167, %v257
        %v4286 = vmul.f32 %v4172, %v258
        %v4287 = vmul.f32 %v4175, %v259
        %v4288 = vmul.f32 %v4180, %v260
        %v4289 = vmul.f32 %v4183, %v261
        %v4290 = vmul.f32 %v4188, %v262
        %v4291 = vmul.f32 %v4191, %v263
        %v4292 = vmul.f32 %v4196, %v264
        %v4293 = vmul.f32 %v4199, %v265
        %v4294 = vmul.f32 %v4204, %v266
        %v4295 = vmul.f32 %v4207, %v267
        %v4296 = vmul.f32 %v4212, %v268
        %v4297 = vmul.f32 %v4215, %v269
        %v4298 = vmul.f32 %v4220, %v270
        %v4299 = vmul.f32 %v4223, %v271
        %v4300 = vmul.f32 %v4228, %v272
        %v4301 = vmul.f32 %v4231, %v273
        %v4302 = vmul.f32 %v4236, %v274
        %v4303 = vmul.f32 %v4239, %v275
        %v4304 = vmul.f32 %v4244, %v276
        %v4305 = vmul.f32 %v4247, %v277
        %v4306 = vmul.f32 %v4252, %v278
        %v4307 = vmul.f32 %v4255, %v279
        %v4308 = vmul.f32 %v4260, %v280
        %v4309 = vmul.f32 %v4263, %v281
        %v4310 = vmul.f32 %v4268, %v282
        %v4311 = vmul.f32 %v4271, %v283
        %v4312 = vmul.f32 %v4276, %v284
        %v4313 = vmul.f32 %v4279, %v285
        %4314 = vst.msk [vmem:[%s218] sm:$0xff] %vm370, %v4282
        %4315 = vst.msk [vmem:[%s218 + $0x8] sm:$0xff] %vm370, %v4283
        %4316 = vst.msk [vmem:[%s218 + $0x10] sm:$0xff] %vm370, %v4284
        %4317 = vst.msk [vmem:[%s218 + $0x18] sm:$0xff] %vm370, %v4285
        %4318 = vst.msk [vmem:[%s218 + $0x20] sm:$0xff] %vm370, %v4286
        %4319 = vst.msk [vmem:[%s218 + $0x28] sm:$0xff] %vm370, %v4287
        %4320 = vst.msk [vmem:[%s218 + $0x30] sm:$0xff] %vm370, %v4288
        %4321 = vst.msk [vmem:[%s218 + $0x38] sm:$0xff] %vm370, %v4289
        %4322 = vst.msk [vmem:[%s218 + $0x40] sm:$0xff] %vm370, %v4290
        %4323 = vst.msk [vmem:[%s218 + $0x48] sm:$0xff] %vm370, %v4291
        %4324 = vst.msk [vmem:[%s218 + $0x50] sm:$0xff] %vm370, %v4292
        %4325 = vst.msk [vmem:[%s218 + $0x58] sm:$0xff] %vm370, %v4293
        %4326 = vst.msk [vmem:[%s218 + $0x60] sm:$0xff] %vm370, %v4294
        %4327 = vst.msk [vmem:[%s218 + $0x68] sm:$0xff] %vm370, %v4295
        %4328 = vst.msk [vmem:[%s218 + $0x70] sm:$0xff] %vm370, %v4296
        %4329 = vst.msk [vmem:[%s218 + $0x78] sm:$0xff] %vm370, %v4297
        %4330 = vst.msk [vmem:[%s218 + $0x80] sm:$0xff] %vm370, %v4298
        %4331 = vst.msk [vmem:[%s218 + $0x88] sm:$0xff] %vm370, %v4299
        %4332 = vst.msk [vmem:[%s218 + $0x90] sm:$0xff] %vm370, %v4300
        %4333 = vst.msk [vmem:[%s218 + $0x98] sm:$0xff] %vm370, %v4301
        %4334 = vst.msk [vmem:[%s218 + $0xa0] sm:$0xff] %vm370, %v4302
        %4335 = vst.msk [vmem:[%s218 + $0xa8] sm:$0xff] %vm370, %v4303
        %4336 = vst.msk [vmem:[%s218 + $0xb0] sm:$0xff] %vm370, %v4304
        %4337 = vst.msk [vmem:[%s218 + $0xb8] sm:$0xff] %vm370, %v4305
        %4338 = vst.msk [vmem:[%s218 + $0xc0] sm:$0xff] %vm370, %v4306
        %4339 = vst.msk [vmem:[%s218 + $0xc8] sm:$0xff] %vm370, %v4307
        %4340 = vst.msk [vmem:[%s218 + $0xd0] sm:$0xff] %vm370, %v4308
        %4341 = vst.msk [vmem:[%s218 + $0xd8] sm:$0xff] %vm370, %v4309
        %4342 = vst.msk [vmem:[%s218 + $0xe0] sm:$0xff] %vm370, %v4310
        %4343 = vst.msk [vmem:[%s218 + $0xe8] sm:$0xff] %vm370, %v4311
        %4344 = vst.msk [vmem:[%s218 + $0xf0] sm:$0xff] %vm370, %v4312
        %4345 = vst.msk [vmem:[%s218 + $0xf8] sm:$0xff] %vm370, %v4313
        %s4346 = sand.u32 %s97, 1
        %s4347 = scalar_lea.sflag [#allocation4], %s4346
        %s4348 = sand.u32 %s97, 1
        %s4349 = smul.addr %s4348, 256
        %s4350 = scalar_lea.vmem [#allocation8], %s4349
        // Predicated region
        $region45: #{tpu_custom_call.1} parent=31 // pred_check
          %p4351 = pneg %p107
        $region46: #{tpu_custom_call.1} parent=31 // pred_check_branch
          %4353 = sbr.rel (%p4351) target = $region48
        $region47: #{tpu_custom_call.1} parent=31 // pred_region
          %s4354 = smul.u32 4, %s21
          %s4356 = ssub.s32 4096, 4096
          %4357 = vsyncadd %s4347, %s4356
          %s4358 = smul.addr %s4354, 8
          %s4359 = smul.addr %s4358, 128
          %s4360 = scalar_lea.hbm %s3, %s4359
          %s4361 = sshll.u32 %s4350, 4
          %s4362 = int_to_ptr.vmem [resolvable:$true] %s4361
          %4367 = dma.vmem_to_hbm [thread:$0]  %s4362, 4096, %s4360, %s4347, 128, 128, 8
        $region48: #{tpu_custom_call.1} parent=31 // pred_fallthru
          _
      $region32: #{tpu_custom_call.1} parent=5 // pred_fallthru
        _
      %p4368 = scmp.le.s32.totalorder 2, %s16
      // Predicated region
      $region49: #{tpu_custom_call.1} parent=5 // pred_check
        %p4369 = pneg %p4368
      $region50: #{tpu_custom_call.1} parent=5 // pred_check_branch
        %4371 = sbr.rel (%p4369) target = $region52
      $region51: #{tpu_custom_call.1} parent=5 // pred_region
        %s4372 = ssub.s32 %s16, 2
        // Predicated region
        $region53: #{tpu_custom_call.1} parent=51 // pred_check
          %p4373 = pneg %p113
        $region54: #{tpu_custom_call.1} parent=51 // pred_check_branch
          %4375 = sbr.rel (%p4373) target = $region56
        $region55: #{tpu_custom_call.1} parent=51 // pred_region
          %s4376 = sand.u32 %s98, 1
          %s4377 = scalar_lea.sflag [#allocation4], %s4376
          %s4378 = sand.u32 %s98, 1
          %s4379 = smul.addr %s4378, 256
          %s4380 = scalar_lea.vmem [#allocation8], %s4379
          %4381 = dma.done %s4377, 4096
        $region56: #{tpu_custom_call.1} parent=51 // pred_fallthru
          _
      $region52: #{tpu_custom_call.1} parent=5 // pred_fallthru
        _
    $region6: #{tpu_custom_call.1} parent=1 // loop_footer
      %s20 = sadd.s32 1, %s16
    $region7: #{tpu_custom_call.1} parent=1 // loop_footer_branch
      %15 = sbr.rel target = $region3
    $region8: #{tpu_custom_call.1} parent=1 // loop_exit
      _
    %4382 = vsyncpa [#allocation3], 1
    %s4383 = scalar_lea.sflag [#allocation3], 1
    %4384 = vsyncpa %s4383, 1
    %4385 = vsyncpa [#allocation6], 1
    %4386 = vsyncpa [#allocation4], 1
    %s4387 = scalar_lea.sflag [#allocation4], 1
    %4388 = vsyncpa %s4387, 1

</llo_original>
